<compile_context>
chip_gen: v6e
topology: v6e:2x2x1
jax: 0.10.0
libtpu: 0.0.40
codegen_flags: <defaults>
</compile_context>

<pallas_src>
import numpy as np
import jax
import jax.numpy as jnp
from jax.experimental import pallas as pl
from jax.experimental.pallas import tpu as pltpu


# ----------------------------------------------------------------------------
# Small tiled linear kernel (runs ONCE per relation; hoisted out of the
# destination-tiled GAT grid).  out = x @ W_ext + b_ext, f32 accumulation.
# ----------------------------------------------------------------------------

def _linear_kernel(x_ref, w_ref, b_ref, o_ref):
    o_ref[...] = jnp.dot(x_ref[...], w_ref[...],
                         preferred_element_type=jnp.float32) + b_ref[...]


def _linear(x, w, b, compute_dtype, row_tile=1024):
    n, f = x.shape
    fo = w.shape[1]
    tile = n if n <= row_tile else max(8, (row_tile // 8) * 8)
    grid = (pl.cdiv(n, tile),)
    return pl.pallas_call(
        _linear_kernel,
        out_shape=jax.ShapeDtypeStruct((n, fo), jnp.float32),
        grid=grid,
        in_specs=[pl.BlockSpec((tile, f), lambda i: (i, 0)),
                  pl.BlockSpec((f, fo), lambda i: (0, 0)),
                  pl.BlockSpec((1, fo), lambda i: (0, 0))],
        out_specs=pl.BlockSpec((tile, fo), lambda i: (i, 0)),
        compiler_params=pltpu.CompilerParams(
            dimension_semantics=("parallel",)),
    )(x.astype(compute_dtype), w.astype(compute_dtype),
      b.reshape(1, fo).astype(jnp.float32))


# ----------------------------------------------------------------------------
# Fused per-destination-node-type GAT kernel
#   out = relu( fc[ntype](feat_dst_tile)
#               + GAT(self relation : same-type sources  -> dst tile)
#               + GAT(other relation: other-type sources -> dst tile) )
# ----------------------------------------------------------------------------

def _make_dst_kernel(H, D, HD_pad, alpha, compute_dtype):
    HD = H * D

    def _gat(lg_dst, lg_src_ref, wh_heads_ref, adj_ref):
        # lg_dst       : (Td, H)      f32  dst-side logits (from folded weights)
        # lg_src_ref   : (H, Ns)      f32  hoisted src-side logits (pre-transposed)
        # wh_heads_ref : (H, Ns, D)   compute dtype, hoisted edge-type transform
        # adj_ref      : (Td, Ns)     int8 {0,1}, adj[j, i] = 1 iff edge i -> j
        mask = adj_ref[...].astype(jnp.float32) > 0.0   # transient widen; only the
        lg_src = lg_src_ref[...]                        # bool mask stays live
        neg_inf = jnp.float32(-1e30)
        cols = []
        for h in range(H):                              # H small & static -> unrolled
            e = lg_dst[:, h:h + 1] + lg_src[h:h + 1, :]          # u_add_v -> (Td, Ns)
            e = jnp.where(e > 0, e, alpha * e)                   # LeakyReLU
            e = jnp.where(mask, e, neg_inf)                      # mask non-edges
            m = jnp.max(e, axis=1, keepdims=True)
            p = jnp.where(mask, jnp.exp(e - m), 0.0)             # softmax numerator
            s = jnp.maximum(jnp.sum(p, axis=1, keepdims=True), jnp.float32(1e-30))
            r = pl.reciprocal(s, approx=True)                    # EUP slot
            r = r * (2.0 - s * r)                                # 1 Newton step
            a = (p * r).astype(compute_dtype)                    # zero rows w/o in-edges
            # per-head sliced aggregation: (Td, Ns) x (Ns, D) -> (Td, D)
            cols.append(jnp.dot(a, wh_heads_ref[h],
                                preferred_element_type=jnp.float32))
        return jnp.concatenate(cols, axis=-1)                    # (Td, HD)

    def kernel(feat_dst_ref, w_node_ref, b_node_ref,
               wh_self_ref, lg_self_ref, wh_oth_ref, lg_oth_ref,
               adj_self_ref, adj_oth_ref, out_ref):
        # node transform + BOTH relations' dst attention logits in ONE MXU pass
        node_ext = jnp.dot(feat_dst_ref[...], w_node_ref[...],
                           preferred_element_type=jnp.float32) + b_node_ref[...]
        wh_node = node_ext[:, :HD]                    # (Td, HD) f32
        lg_dst_self = node_ext[:, HD:HD + H]          # (Td, H)
        lg_dst_oth = node_ext[:, HD + H:HD + 2 * H]   # (Td, H)

        acc = wh_node
        acc = acc + _gat(lg_dst_self, lg_self_ref, wh_self_ref, adj_self_ref)
        acc = acc + _gat(lg_dst_oth, lg_oth_ref, wh_oth_ref, adj_oth_ref)
        acc = jnp.maximum(acc, 0.0)                   # use_relu=True (merge='cat')
        if HD_pad > HD:                               # lane-dense store (pad to 128 mult)
            acc = jnp.concatenate(
                [acc, jnp.zeros((acc.shape[0], HD_pad - HD), jnp.float32)], axis=-1)
        out_ref[...] = acc

    return kernel


# ----------------------------------------------------------------------------
# Host-side helpers
# ----------------------------------------------------------------------------

def _round_up(x, m):
    return ((x + m - 1) // m) * m


def _fold_attn(w, b, attn, H, D):
    """Fold the per-head attention projection into the linear layer (exact f32
    elementwise fold): feat @ w_fold + b_fold == ((feat@w+b).view(-1,H,D)*attn).sum(-1)."""
    f = w.shape[0]
    w_fold = (w.reshape(f, H, D) * attn[None, :, :]).sum(-1)   # (f, H)
    b_fold = (b.reshape(H, D) * attn).sum(-1)                  # (H,)
    return w_fold, b_fold


def _source_transform(feat_src, w_rel, b_rel, attn_src, H, D, compute_dtype):
    """Hoisted source-side work (runs once, NOT per destination tile).
    Returns wh_heads (H, Ns, D) in compute dtype and logit_src_t (H, Ns) f32."""
    HD = H * D
    w_fold, b_fold = _fold_attn(w_rel, b_rel, attn_src, H, D)
    w_ext = jnp.concatenate([w_rel, w_fold], axis=1)           # (f, HD + H)
    b_ext = jnp.concatenate([b_rel, b_fold])                   # (HD + H,)
    ext = _linear(feat_src, w_ext, b_ext, compute_dtype)       # (Ns, HD + H) f32
    ns = feat_src.shape[0]
    wh_heads = (ext[:, :HD].reshape(ns, H, D)
                .transpose(1, 0, 2).astype(compute_dtype))     # (H, Ns, D)
    logit_src_t = ext[:, HD:].T                                # (H, Ns) f32
    return wh_heads, logit_src_t


def _pick_dst_tile(n_dst, n_self, n_oth, f_dst, hd_pad, cdt_bytes):
    if n_dst <= 512:
        return n_dst
    # per-dst-row VMEM cost (tiled streams double-buffered; live f32 score tiles)
    per_row = 2 * (n_self + n_oth)              # int8 adjacency, 2 buffers
    per_row += 2 * f_dst * cdt_bytes            # feat tile, 2 buffers
    per_row += 2 * hd_pad * 4                   # output tile, 2 buffers
    per_row += 3 * max(n_self, n_oth) * 4       # live (Td, Ns) f32 intermediates
    budget = 40 << 20                           # conservative across v5e/v6e/v7x
    tile = max(32, min(2048, budget // max(per_row, 1)))
    tile = (tile // 32) * 32                    # int8-tiling friendly
    return n_dst if tile >= n_dst else tile


def _vmem_limit_bytes(resident_bytes, per_step_bytes):
    cap = 128 << 20
    try:  # per-generation VMEM (v7x TensorCores only see 64 MiB)
        cap = int(getattr(pltpu.get_tpu_info(), "vmem_capacity_bytes", cap))
    except Exception:
        cap = 128 << 20
    need = int(1.5 * (resident_bytes + 2 * per_step_bytes)) + (8 << 20)
    return max(32 << 20, min(need, int(cap * 0.8), 100 << 20))


def _gat_dst_type(feat_dst, feat_oth,
                  w_node, b_node, w_self, b_self, w_oth, b_oth,
                  attn_self_src, attn_self_dst, attn_oth_src, attn_oth_dst,
                  adj_self, adj_oth, H, D, alpha=0.2, mxu_dtype=jnp.bfloat16):
    n_dst, f_dst = feat_dst.shape
    n_oth = feat_oth.shape[0]
    HD = H * D
    HD_pad = _round_up(HD, 128)
    cdt = jnp.dtype(mxu_dtype)
    cdt_bytes = cdt.itemsize

    # Hoisted, grid-invariant source-side work (sources of the self relation are
    # the destination-type nodes themselves; no duplicate feat_dst stream below).
    wh_self_heads, lg_self_t = _source_transform(feat_dst, w_self, b_self,
                                                 attn_self_src, H, D, cdt)
    wh_oth_heads, lg_oth_t = _source_transform(feat_oth, w_oth, b_oth,
                                               attn_oth_src, H, D, cdt)

    # Fold BOTH relations' dst-side attention projections into the node weights.
    wf_self, bf_self = _fold_attn(w_node, b_node, attn_self_dst, H, D)
    wf_oth, bf_oth = _fold_attn(w_node, b_node, attn_oth_dst, H, D)
    w_node_ext = jnp.concatenate([w_node, wf_self, wf_oth], axis=1).astype(cdt)
    b_node_ext = jnp.concatenate([b_node, bf_self, bf_oth]).reshape(1, -1).astype(jnp.float32)

    feat_dst_c = feat_dst.astype(cdt)
    adj_self_i8 = adj_self.astype(jnp.int8)
    adj_oth_i8 = adj_oth.astype(jnp.int8)

    tile = _pick_dst_tile(n_dst, n_dst, n_oth, f_dst, HD_pad, cdt_bytes)
    grid = (pl.cdiv(n_dst, tile),)

    resident = ((wh_self_heads.size + wh_oth_heads.size + w_node_ext.size) * cdt_bytes
                + (lg_self_t.size + lg_oth_t.size + b_node_ext.size) * 4)
    per_step = tile * (f_dst * cdt_bytes + n_dst + n_oth + HD_pad * 4)

    def whole(shape):
        if len(shape) == 2:
            return pl.BlockSpec(shape, lambda i: (0, 0))
        return pl.BlockSpec(shape, lambda i: (0, 0, 0))

    in_specs = [
        pl.BlockSpec((tile, f_dst), lambda i: (i, 0)),   # feat_dst (tiled over dst rows)
        whole(w_node_ext.shape),                         # fc[ntype] + folded dst attn cols
        whole(b_node_ext.shape),
        whole(wh_self_heads.shape),                      # hoisted Wh_src (self relation)
        whole(lg_self_t.shape),                          # hoisted src logits (self relation)
        whole(wh_oth_heads.shape),                       # hoisted Wh_src (other relation)
        whole(lg_oth_t.shape),                           # hoisted src logits (other relation)
        pl.BlockSpec((tile, n_dst), lambda i: (i, 0)),   # adjacency, self relation (int8)
        pl.BlockSpec((tile, n_oth), lambda i: (i, 0)),   # adjacency, other relation (int8)
    ]
    out_specs = pl.BlockSpec((tile, HD_pad), lambda i: (i, 0))

    out = pl.pallas_call(
        _make_dst_kernel(H, D, HD_pad, alpha, cdt),
        out_shape=jax.ShapeDtypeStruct((n_dst, HD_pad), jnp.float32),
        grid=grid,
        in_specs=in_specs,
        out_specs=out_specs,
        compiler_params=pltpu.CompilerParams(
            dimension_semantics=("parallel",),
            vmem_limit_bytes=_vmem_limit_bytes(resident, per_step)),
    )(feat_dst_c, w_node_ext, b_node_ext,
      wh_self_heads, lg_self_t, wh_oth_heads, lg_oth_t,
      adj_self_i8, adj_oth_i8)

    return out[:, :HD] if HD_pad > HD else out


def multi_hetero_gat_forward(params, feat_P, feat_A, adjs, num_heads, out_dim,
                             alpha=0.2, mxu_dtype=jnp.bfloat16):
    H = num_heads
    # destination node type P  (relations p2p and a2p)
    h_P = _gat_dst_type(
        feat_P, feat_A,
        params["W_P"], params["b_P"],
        params["W_p2p"], params["b_p2p"],
        params["W_a2p"], params["b_a2p"],
        params["p2p_src"], params["p2p_dst"],
        params["a2p_src"], params["a2p_dst"],
        adjs["p2p"], adjs["a2p"], H, out_dim["P"], alpha, mxu_dtype)
    # destination node type A  (relations a2a and p2a)
    h_A = _gat_dst_type(
        feat_A, feat_P,
        params["W_A"], params["b_A"],
        params["W_a2a"], params["b_a2a"],
        params["W_p2a"], params["b_p2a"],
        params["a2a_src"], params["a2a_dst"],
        params["p2a_src"], params["p2a_dst"],
        adjs["a2a"], adjs["p2a"], H, out_dim["A"], alpha, mxu_dtype)
    # merge == 'cat': flatten(1) of (N,H,D) is exactly the (N, H*D) layout kept
    return {"P": h_P, "A": h_A}


# ----------------------------------------------------------------------------
# Parameter init (mirrors the torch module's structure)
# ----------------------------------------------------------------------------

def init_params(key, in_dim, out_dim, num_heads):
    keys = jax.random.split(key, 20)
    params = {}
    i = 0

    def lin(name, fin, fout):
        nonlocal i
        params["W_" + name] = (jax.random.normal(keys[i], (fin, fout), jnp.float32)
                               * (1.0 / np.sqrt(fin)))
        params["b_" + name] = jax.random.normal(keys[i + 1], (fout,), jnp.float32) * 0.01
        i += 2

    H = num_heads
    lin("P", in_dim["P"], out_dim["P"] * H)
    lin("A", in_dim["A"], out_dim["A"] * H)
    lin("p2p", in_dim["P"], out_dim["P"] * H)
    lin("p2a", in_dim["P"], out_dim["A"] * H)
    lin("a2p", in_dim["A"], out_dim["P"] * H)
    lin("a2a", in_dim["A"], out_dim["A"] * H)

    gain = np.sqrt(2.0)   # xavier-normal with relu gain, shape (H, D)
    for name, d in [("p2p", out_dim["P"]), ("p2a", out_dim["A"]),
                    ("a2p", out_dim["P"]), ("a2a", out_dim["A"])]:
        std = gain * np.sqrt(2.0 / (H * d + d))
        params[name + "_src"] = jax.random.normal(keys[i], (H, d), jnp.float32) * std
        params[name + "_dst"] = jax.random.normal(keys[i + 1], (H, d), jnp.float32) * std
        i += 2
    return params


# ----------------------------------------------------------------------------
# Pure numpy reference (mirrors the torch/DGL semantics) for verification
# ----------------------------------------------------------------------------

def _relation_ref(wh_src, wh_dst, psrc, pdst, adj, H, D, alpha=0.2):
    Ns, Nd = wh_src.shape[0], wh_dst.shape[0]
    whs = wh_src.reshape(Ns, H, D)
    whd = wh_dst.reshape(Nd, H, D)
    a_src = (whs * psrc[None]).sum(-1)                 # (Ns, H)
    a_dst = (whd * pdst[None]).sum(-1)                 # (Nd, H)
    e = a_dst[:, None, :] + a_src[None, :, :]          # (Nd, Ns, H)
    e = np.where(e > 0, e, alpha * e)
    mask = adj[:, :, None] > 0
    e = np.where(mask, e, -1e30)
    m = e.max(axis=1, keepdims=True)
    p = np.exp(e - m) * mask
    s = p.sum(axis=1, keepdims=True)
    a = p / np.maximum(s, 1e-30)
    ft = np.einsum("dsh,shk->dhk", a, whs)
    return ft.reshape(Nd, H * D)


def reference_forward(params, feat_P, feat_A, adjs, H, out_dim):
    p = {k: np.asarray(v) for k, v in params.items()}
    fp, fa = np.asarray(feat_P), np.asarray(feat_A)
    Dp, Da = out_dim["P"], out_dim["A"]

    def lin(x, name):
        return x @ p["W_" + name] + p["b_" + name][None, :]

    Whp, Wha = lin(fp, "P"), lin(fa, "A")
    Whp2p, Whp2a = lin(fp, "p2p"), lin(fp, "p2a")
    Wha2p, Wha2a = lin(fa, "a2p"), lin(fa, "a2a")

    ft_p2p = _relation_ref(Whp2p, Whp, p["p2p_src"], p["p2p_dst"], np.asarray(adjs["p2p"]), H, Dp)
    ft_p2a = _relation_ref(Whp2a, Wha, p["p2a_src"], p["p2a_dst"], np.asarray(adjs["p2a"]), H, Da)
    ft_a2p = _relation_ref(Wha2p, Whp, p["a2p_src"], p["a2p_dst"], np.asarray(adjs["a2p"]), H, Dp)
    ft_a2a = _relation_ref(Wha2a, Wha, p["a2a_src"], p["a2a_dst"], np.asarray(adjs["a2a"]), H, Da)

    h_P = np.maximum(Whp + ft_p2p + ft_a2p, 0.0)
    h_A = np.maximum(Wha + ft_p2a + ft_a2a, 0.0)
    return {"P": h_P, "A": h_A}


# ----------------------------------------------------------------------------
# main
# ----------------------------------------------------------------------------

if __name__ == "__main__":
    key = jax.random.PRNGKey(0)
    k_feat_p, k_feat_a, k_adj, k_params = jax.random.split(key, 4)

    in_dim = {"P": 16, "A": 12}
    out_dim = {"P": 8, "A": 8}
    num_heads = 4
    Np, Na = 8, 6

    feat_P = jax.random.normal(k_feat_p, (Np, in_dim["P"]), jnp.float32)
    feat_A = jax.random.normal(k_feat_a, (Na, in_dim["A"]), jnp.float32)

    # dense adjacency masks adj[dst, src] in {0,1}; ensure each relation has edges
    ka = jax.random.split(k_adj, 4)
    adjs = {
        "p2p": (jax.random.uniform(ka[0], (Np, Np)) < 0.5).astype(jnp.float32),
        "p2a": (jax.random.uniform(ka[1], (Na, Np)) < 0.5).astype(jnp.float32),
        "a2p": (jax.random.uniform(ka[2], (Np, Na)) < 0.5).astype(jnp.float32),
        "a2a": (jax.random.uniform(ka[3], (Na, Na)) < 0.5).astype(jnp.float32),
    }
    adjs = {k: v.at[0, 0].set(1.0) for k, v in adjs.items()}

    params = init_params(k_params, in_dim, out_dim, num_heads)
    ref = reference_forward(params, feat_P, feat_A, adjs, num_heads, out_dim)

    # Strict-ish check: f32 MXU operands.  All matmuls still ride the MXU, so a
    # small tolerance accounts for its internal pass rounding + the EUP
    # approx-reciprocal (+1 Newton step) softmax normalization.
    fwd_f32 = jax.jit(lambda p, fp, fa, ad: multi_hetero_gat_forward(
        p, fp, fa, ad, num_heads, out_dim, mxu_dtype=jnp.float32))
    out32 = fwd_f32(params, feat_P, feat_A, adjs)
    out32 = jax.tree_util.tree_map(jax.block_until_ready, out32)
    np.testing.assert_allclose(np.asarray(out32["P"]), ref["P"], rtol=2e-2, atol=2e-2)
    np.testing.assert_allclose(np.asarray(out32["A"]), ref["A"], rtol=2e-2, atol=2e-2)

    # Recommended fast path: bf16 MXU operands, f32 accumulation and f32
    # softmax / masking math (per-generation guidance from the review).
    fwd_bf16 = jax.jit(lambda p, fp, fa, ad: multi_hetero_gat_forward(
        p, fp, fa, ad, num_heads, out_dim, mxu_dtype=jnp.bfloat16))
    out16 = fwd_bf16(params, feat_P, feat_A, adjs)
    out16 = jax.tree_util.tree_map(jax.block_until_ready, out16)
    np.testing.assert_allclose(np.asarray(out16["P"]), ref["P"], rtol=1e-1, atol=1e-1)
    np.testing.assert_allclose(np.asarray(out16["A"]), ref["A"], rtol=1e-1, atol=1e-1)

    assert out16["P"].shape == (Np, num_heads * out_dim["P"])
    assert out16["A"].shape == (Na, num_heads * out_dim["A"])

    print("KERNEL_OK")
</pallas_src>

<mosaic_0001>
module attributes {stable_mosaic.version = 11 : i64} {
  func.func @_linear_kernel(%arg0: i32, %arg1: memref<6x12xf32, #tpu.memory_space<vmem>>, %arg2: memref<12x36xf32, #tpu.memory_space<vmem>>, %arg3: memref<1x36xf32, #tpu.memory_space<vmem>>, %arg4: memref<6x36xf32, #tpu.memory_space<vmem>>) attributes {dimension_semantics = [#tpu.dimension_semantics<parallel>], iteration_bounds = array<i64: 1>, scalar_prefetch = 0 : i64, scratch_operands = 0 : i64, tpu.core_type = #tpu.core_type<tc>, window_params = [{transform_indices = @transform_0, window_bounds = array<i64: 6, 12>}, {pipeline_mode = #tpu.pipeline_mode<synchronous>, transform_indices = @transform_1, window_bounds = array<i64: 12, 36>}, {pipeline_mode = #tpu.pipeline_mode<synchronous>, transform_indices = @transform_2, window_bounds = array<i64: 1, 36>}, {transform_indices = @transform_3, window_bounds = array<i64: 6, 36>}]} {
    %c0 = arith.constant 0 : index
    %c0_0 = arith.constant 0 : index
    %0 = vector.load %arg1[%c0, %c0_0] : memref<6x12xf32, #tpu.memory_space<vmem>>, vector<6x12xf32>
    %c0_1 = arith.constant 0 : index
    %c0_2 = arith.constant 0 : index
    %1 = vector.load %arg2[%c0_1, %c0_2] : memref<12x36xf32, #tpu.memory_space<vmem>>, vector<12x36xf32>
    %cst = arith.constant dense<0.000000e+00> : vector<6x36xf32>
    %2 = tpu.matmul %0, %1, %cst {dimension_numbers = #tpu.dot_dimension_numbers<[1], [0], [0], [1], [0, 0, 1, 1], [], []>} : vector<6x12xf32>, vector<12x36xf32>, vector<6x36xf32> -> vector<6x36xf32>
    %c0_3 = arith.constant 0 : index
    %c0_4 = arith.constant 0 : index
    %3 = vector.load %arg3[%c0_3, %c0_4] : memref<1x36xf32, #tpu.memory_space<vmem>>, vector<1x36xf32>
    %4 = vector.broadcast %3 : vector<1x36xf32> to vector<6x36xf32>
    %5 = arith.addf %2, %4 : vector<6x36xf32>
    %c0_5 = arith.constant 0 : index
    %c0_6 = arith.constant 0 : index
    %6 = vector.load %arg4[%c0_5, %c0_6] : memref<6x36xf32, #tpu.memory_space<vmem>>, vector<6x36xf32>
    tpu.vector_store %arg4[%c0_5, %c0_6], %5 {strides = array<i32>} : memref<6x36xf32, #tpu.memory_space<vmem>>, vector<6x36xf32>,
    return
  }
  func.func @transform_0(%arg0: i32) -> (i32, i32) {
    %c0_i32 = arith.constant 0 : i32
    %c0_i32_0 = arith.constant 0 : i32
    return %arg0, %c0_i32 : i32, i32
  }
  func.func @transform_1(%arg0: i32) -> (i32, i32) {
    %c0_i32 = arith.constant 0 : i32
    %c0_i32_0 = arith.constant 0 : i32
    %c0_i32_1 = arith.constant 0 : i32
    return %c0_i32, %c0_i32_0 : i32, i32
  }
  func.func @transform_2(%arg0: i32) -> (i32, i32) {
    %c0_i32 = arith.constant 0 : i32
    %c0_i32_0 = arith.constant 0 : i32
    %c0_i32_1 = arith.constant 0 : i32
    return %c0_i32, %c0_i32_0 : i32, i32
  }
  func.func @transform_3(%arg0: i32) -> (i32, i32) {
    %c0_i32 = arith.constant 0 : i32
    %c0_i32_0 = arith.constant 0 : i32
    return %arg0, %c0_i32 : i32, i32
  }
}

module attributes {stable_mosaic.version = 11 : i64} {
  func.func @_linear_kernel(%arg0: i32, %arg1: memref<8x16xf32, #tpu.memory_space<vmem>>, %arg2: memref<16x36xf32, #tpu.memory_space<vmem>>, %arg3: memref<1x36xf32, #tpu.memory_space<vmem>>, %arg4: memref<8x36xf32, #tpu.memory_space<vmem>>) attributes {dimension_semantics = [#tpu.dimension_semantics<parallel>], iteration_bounds = array<i64: 1>, scalar_prefetch = 0 : i64, scratch_operands = 0 : i64, tpu.core_type = #tpu.core_type<tc>, window_params = [{transform_indices = @transform_0, window_bounds = array<i64: 8, 16>}, {pipeline_mode = #tpu.pipeline_mode<synchronous>, transform_indices = @transform_1, window_bounds = array<i64: 16, 36>}, {pipeline_mode = #tpu.pipeline_mode<synchronous>, transform_indices = @transform_2, window_bounds = array<i64: 1, 36>}, {transform_indices = @transform_3, window_bounds = array<i64: 8, 36>}]} {
    %c0 = arith.constant 0 : index
    %c0_0 = arith.constant 0 : index
    %0 = vector.load %arg1[%c0, %c0_0] : memref<8x16xf32, #tpu.memory_space<vmem>>, vector<8x16xf32>
    %c0_1 = arith.constant 0 : index
    %c0_2 = arith.constant 0 : index
    %1 = vector.load %arg2[%c0_1, %c0_2] : memref<16x36xf32, #tpu.memory_space<vmem>>, vector<16x36xf32>
    %cst = arith.constant dense<0.000000e+00> : vector<8x36xf32>
    %2 = tpu.matmul %0, %1, %cst {dimension_numbers = #tpu.dot_dimension_numbers<[1], [0], [0], [1], [0, 0, 1, 1], [], []>} : vector<8x16xf32>, vector<16x36xf32>, vector<8x36xf32> -> vector<8x36xf32>
    %c0_3 = arith.constant 0 : index
    %c0_4 = arith.constant 0 : index
    %3 = vector.load %arg3[%c0_3, %c0_4] : memref<1x36xf32, #tpu.memory_space<vmem>>, vector<1x36xf32>
    %4 = vector.broadcast %3 : vector<1x36xf32> to vector<8x36xf32>
    %5 = arith.addf %2, %4 : vector<8x36xf32>
    %c0_5 = arith.constant 0 : index
    %c0_6 = arith.constant 0 : index
    %6 = vector.load %arg4[%c0_5, %c0_6] : memref<8x36xf32, #tpu.memory_space<vmem>>, vector<8x36xf32>
    tpu.vector_store %arg4[%c0_5, %c0_6], %5 {strides = array<i32>} : memref<8x36xf32, #tpu.memory_space<vmem>>, vector<8x36xf32>,
    return
  }
  func.func @transform_0(%arg0: i32) -> (i32, i32) {
    %c0_i32 = arith.constant 0 : i32
    %c0_i32_0 = arith.constant 0 : i32
    return %arg0, %c0_i32 : i32, i32
  }
  func.func @transform_1(%arg0: i32) -> (i32, i32) {
    %c0_i32 = arith.constant 0 : i32
    %c0_i32_0 = arith.constant 0 : i32
    %c0_i32_1 = arith.constant 0 : i32
    return %c0_i32, %c0_i32_0 : i32, i32
  }
  func.func @transform_2(%arg0: i32) -> (i32, i32) {
    %c0_i32 = arith.constant 0 : i32
    %c0_i32_0 = arith.constant 0 : i32
    %c0_i32_1 = arith.constant 0 : i32
    return %c0_i32, %c0_i32_0 : i32, i32
  }
  func.func @transform_3(%arg0: i32) -> (i32, i32) {
    %c0_i32 = arith.constant 0 : i32
    %c0_i32_0 = arith.constant 0 : i32
    return %arg0, %c0_i32 : i32, i32
  }
}

module attributes {stable_mosaic.version = 11 : i64} {
  func.func @kernel(%arg0: i32, %arg1: memref<6x12xf32, #tpu.memory_space<vmem>>, %arg2: memref<12x40xf32, #tpu.memory_space<vmem>>, %arg3: memref<1x40xf32, #tpu.memory_space<vmem>>, %arg4: memref<4x6x8xf32, #tpu.memory_space<vmem>>, %arg5: memref<4x6xf32, #tpu.memory_space<vmem>>, %arg6: memref<4x8x8xf32, #tpu.memory_space<vmem>>, %arg7: memref<4x8xf32, #tpu.memory_space<vmem>>, %arg8: memref<6x6xi8, #tpu.memory_space<vmem>>, %arg9: memref<6x8xi8, #tpu.memory_space<vmem>>, %arg10: memref<6x128xf32, #tpu.memory_space<vmem>>) attributes {dimension_semantics = [#tpu.dimension_semantics<parallel>], iteration_bounds = array<i64: 1>, scalar_prefetch = 0 : i64, scratch_operands = 0 : i64, tpu.core_type = #tpu.core_type<tc>, window_params = [{transform_indices = @transform_0, window_bounds = array<i64: 6, 12>}, {pipeline_mode = #tpu.pipeline_mode<synchronous>, transform_indices = @transform_1, window_bounds = array<i64: 12, 40>}, {pipeline_mode = #tpu.pipeline_mode<synchronous>, transform_indices = @transform_2, window_bounds = array<i64: 1, 40>}, {pipeline_mode = #tpu.pipeline_mode<synchronous>, transform_indices = @transform_3, window_bounds = array<i64: 4, 6, 8>}, {pipeline_mode = #tpu.pipeline_mode<synchronous>, transform_indices = @transform_4, window_bounds = array<i64: 4, 6>}, {pipeline_mode = #tpu.pipeline_mode<synchronous>, transform_indices = @transform_5, window_bounds = array<i64: 4, 8, 8>}, {pipeline_mode = #tpu.pipeline_mode<synchronous>, transform_indices = @transform_6, window_bounds = array<i64: 4, 8>}, {transform_indices = @transform_7, window_bounds = array<i64: 6, 6>}, {transform_indices = @transform_8, window_bounds = array<i64: 6, 8>}, {transform_indices = @transform_9, window_bounds = array<i64: 6, 128>}]} {
    %c0 = arith.constant 0 : index
    %c0_0 = arith.constant 0 : index
    %0 = vector.load %arg1[%c0, %c0_0] : memref<6x12xf32, #tpu.memory_space<vmem>>, vector<6x12xf32>
    %c0_1 = arith.constant 0 : index
    %c0_2 = arith.constant 0 : index
    %1 = vector.load %arg2[%c0_1, %c0_2] : memref<12x40xf32, #tpu.memory_space<vmem>>, vector<12x40xf32>
    %cst = arith.constant dense<0.000000e+00> : vector<6x40xf32>
    %2 = tpu.matmul %0, %1, %cst {dimension_numbers = #tpu.dot_dimension_numbers<[1], [0], [0], [1], [0, 0, 1, 1], [], []>} : vector<6x12xf32>, vector<12x40xf32>, vector<6x40xf32> -> vector<6x40xf32>
    %c0_3 = arith.constant 0 : index
    %c0_4 = arith.constant 0 : index
    %3 = vector.load %arg3[%c0_3, %c0_4] : memref<1x40xf32, #tpu.memory_space<vmem>>, vector<1x40xf32>
    %4 = vector.broadcast %3 : vector<1x40xf32> to vector<6x40xf32>
    %5 = arith.addf %2, %4 : vector<6x40xf32>
    %6 = vector.extract_strided_slice %5 {offsets = [0, 0], sizes = [6, 32], strides = [1, 1]} : vector<6x40xf32> to vector<6x32xf32>
    %7 = vector.extract_strided_slice %5 {offsets = [0, 32], sizes = [6, 4], strides = [1, 1]} : vector<6x40xf32> to vector<6x4xf32>
    %8 = vector.extract_strided_slice %5 {offsets = [0, 36], sizes = [6, 4], strides = [1, 1]} : vector<6x40xf32> to vector<6x4xf32>
    %c0_5 = arith.constant 0 : index
    %c0_6 = arith.constant 0 : index
    %9 = vector.load %arg8[%c0_5, %c0_6] : memref<6x6xi8, #tpu.memory_space<vmem>>, vector<6x6xi8>
    %10 = arith.sitofp %9 : vector<6x6xi8> to vector<6x6xf32>
    %cst_7 = arith.constant 0.000000e+00 : f32
    %11 = vector.broadcast %cst_7 : f32 to vector<6x6xf32>
    %12 = arith.cmpf ogt, %10, %11 : vector<6x6xf32>
    %c0_8 = arith.constant 0 : index
    %c0_9 = arith.constant 0 : index
    %13 = vector.load %arg5[%c0_8, %c0_9] : memref<4x6xf32, #tpu.memory_space<vmem>>, vector<4x6xf32>
    %14 = vector.extract_strided_slice %7 {offsets = [0, 0], sizes = [6, 1], strides = [1, 1]} : vector<6x4xf32> to vector<6x1xf32>
    %15 = vector.extract_strided_slice %13 {offsets = [0, 0], sizes = [1, 6], strides = [1, 1]} : vector<4x6xf32> to vector<1x6xf32>
    %16 = vector.broadcast %14 : vector<6x1xf32> to vector<6x6xf32>
    %17 = vector.broadcast %15 : vector<1x6xf32> to vector<6x6xf32>
    %18 = arith.addf %16, %17 : vector<6x6xf32>
    %cst_10 = arith.constant 0.000000e+00 : f32
    %19 = vector.broadcast %cst_10 : f32 to vector<6x6xf32>
    %20 = arith.cmpf ogt, %18, %19 : vector<6x6xf32>
    %cst_11 = arith.constant 2.000000e-01 : f32
    %21 = vector.broadcast %cst_11 : f32 to vector<6x6xf32>
    %22 = arith.mulf %21, %18 : vector<6x6xf32>
    %23 = arith.select %20, %18, %22 : vector<6x6xi1>, vector<6x6xf32>
    %cst_12 = arith.constant -1.000000e+30 : f32
    %24 = vector.broadcast %cst_12 : f32 to vector<6x6xf32>
    %25 = arith.select %12, %23, %24 : vector<6x6xi1>, vector<6x6xf32>
    %cst_13 = arith.constant dense<0xFF800000> : vector<6xf32>
    %26 = vector.multi_reduction <maximumf>, %25, %cst_13 [1] : vector<6x6xf32> to vector<6xf32>
    %27 = vector.shape_cast %26 : vector<6xf32> to vector<6x1xf32>
    %28 = vector.broadcast %27 : vector<6x1xf32> to vector<6x6xf32>
    %29 = arith.subf %25, %28 : vector<6x6xf32>
    %30 = math.exp %29 : vector<6x6xf32>
    %cst_14 = arith.constant 0.000000e+00 : f32
    %31 = vector.broadcast %cst_14 : f32 to vector<6x6xf32>
    %32 = arith.select %12, %30, %31 : vector<6x6xi1>, vector<6x6xf32>
    %cst_15 = arith.constant dense<0.000000e+00> : vector<6xf32>
    %33 = vector.multi_reduction <add>, %32, %cst_15 [1] : vector<6x6xf32> to vector<6xf32>
    %34 = vector.shape_cast %33 : vector<6xf32> to vector<6x1xf32>
    %cst_16 = arith.constant 1.000000e-30 : f32
    %35 = vector.broadcast %cst_16 : f32 to vector<6x1xf32>
    %36 = arith.maximumf %34, %35 : vector<6x1xf32>
    %37 = tpu.reciprocal %36 {approx = true} : vector<6x1xf32> -> vector<6x1xf32>
    %38 = arith.mulf %36, %37 : vector<6x1xf32>
    %cst_17 = arith.constant 2.000000e+00 : f32
    %39 = vector.broadcast %cst_17 : f32 to vector<6x1xf32>
    %40 = arith.subf %39, %38 : vector<6x1xf32>
    %41 = arith.mulf %37, %40 : vector<6x1xf32>
    %42 = vector.broadcast %41 : vector<6x1xf32> to vector<6x6xf32>
    %43 = arith.mulf %32, %42 : vector<6x6xf32>
    %c0_18 = arith.constant 0 : index
    %c0_19 = arith.constant 0 : index
    %c0_20 = arith.constant 0 : index
    %44 = vector.load %arg4[%c0_18, %c0_19, %c0_20] : memref<4x6x8xf32, #tpu.memory_space<vmem>>, vector<1x6x8xf32>
    %45 = vector.shape_cast %44 : vector<1x6x8xf32> to vector<6x8xf32>
    %cst_21 = arith.constant dense<0.000000e+00> : vector<6x8xf32>
    %46 = tpu.matmul %43, %45, %cst_21 {dimension_numbers = #tpu.dot_dimension_numbers<[1], [0], [0], [1], [0, 0, 1, 1], [], []>} : vector<6x6xf32>, vector<6x8xf32>, vector<6x8xf32> -> vector<6x8xf32>
    %47 = vector.extract_strided_slice %7 {offsets = [0, 1], sizes = [6, 1], strides = [1, 1]} : vector<6x4xf32> to vector<6x1xf32>
    %48 = vector.extract_strided_slice %13 {offsets = [1, 0], sizes = [1, 6], strides = [1, 1]} : vector<4x6xf32> to vector<1x6xf32>
    %49 = vector.broadcast %47 : vector<6x1xf32> to vector<6x6xf32>
    %50 = vector.broadcast %48 : vector<1x6xf32> to vector<6x6xf32>
    %51 = arith.addf %49, %50 : vector<6x6xf32>
    %cst_22 = arith.constant 0.000000e+00 : f32
    %52 = vector.broadcast %cst_22 : f32 to vector<6x6xf32>
    %53 = arith.cmpf ogt, %51, %52 : vector<6x6xf32>
    %cst_23 = arith.constant 2.000000e-01 : f32
    %54 = vector.broadcast %cst_23 : f32 to vector<6x6xf32>
    %55 = arith.mulf %54, %51 : vector<6x6xf32>
    %56 = arith.select %53, %51, %55 : vector<6x6xi1>, vector<6x6xf32>
    %cst_24 = arith.constant -1.000000e+30 : f32
    %57 = vector.broadcast %cst_24 : f32 to vector<6x6xf32>
    %58 = arith.select %12, %56, %57 : vector<6x6xi1>, vector<6x6xf32>
    %cst_25 = arith.constant dense<0xFF800000> : vector<6xf32>
    %59 = vector.multi_reduction <maximumf>, %58, %cst_25 [1] : vector<6x6xf32> to vector<6xf32>
    %60 = vector.shape_cast %59 : vector<6xf32> to vector<6x1xf32>
    %61 = vector.broadcast %60 : vector<6x1xf32> to vector<6x6xf32>
    %62 = arith.subf %58, %61 : vector<6x6xf32>
    %63 = math.exp %62 : vector<6x6xf32>
    %cst_26 = arith.constant 0.000000e+00 : f32
    %64 = vector.broadcast %cst_26 : f32 to vector<6x6xf32>
    %65 = arith.select %12, %63, %64 : vector<6x6xi1>, vector<6x6xf32>
    %cst_27 = arith.constant dense<0.000000e+00> : vector<6xf32>
    %66 = vector.multi_reduction <add>, %65, %cst_27 [1] : vector<6x6xf32> to vector<6xf32>
    %67 = vector.shape_cast %66 : vector<6xf32> to vector<6x1xf32>
    %cst_28 = arith.constant 1.000000e-30 : f32
    %68 = vector.broadcast %cst_28 : f32 to vector<6x1xf32>
    %69 = arith.maximumf %67, %68 : vector<6x1xf32>
    %70 = tpu.reciprocal %69 {approx = true} : vector<6x1xf32> -> vector<6x1xf32>
    %71 = arith.mulf %69, %70 : vector<6x1xf32>
    %cst_29 = arith.constant 2.000000e+00 : f32
    %72 = vector.broadcast %cst_29 : f32 to vector<6x1xf32>
    %73 = arith.subf %72, %71 : vector<6x1xf32>
    %74 = arith.mulf %70, %73 : vector<6x1xf32>
    %75 = vector.broadcast %74 : vector<6x1xf32> to vector<6x6xf32>
    %76 = arith.mulf %65, %75 : vector<6x6xf32>
    %c1 = arith.constant 1 : index
    %c0_30 = arith.constant 0 : index
    %c0_31 = arith.constant 0 : index
    %77 = vector.load %arg4[%c1, %c0_30, %c0_31] : memref<4x6x8xf32, #tpu.memory_space<vmem>>, vector<1x6x8xf32>
    %78 = vector.shape_cast %77 : vector<1x6x8xf32> to vector<6x8xf32>
    %cst_32 = arith.constant dense<0.000000e+00> : vector<6x8xf32>
    %79 = tpu.matmul %76, %78, %cst_32 {dimension_numbers = #tpu.dot_dimension_numbers<[1], [0], [0], [1], [0, 0, 1, 1], [], []>} : vector<6x6xf32>, vector<6x8xf32>, vector<6x8xf32> -> vector<6x8xf32>
    %80 = vector.extract_strided_slice %7 {offsets = [0, 2], sizes = [6, 1], strides = [1, 1]} : vector<6x4xf32> to vector<6x1xf32>
    %81 = vector.extract_strided_slice %13 {offsets = [2, 0], sizes = [1, 6], strides = [1, 1]} : vector<4x6xf32> to vector<1x6xf32>
    %82 = vector.broadcast %80 : vector<6x1xf32> to vector<6x6xf32>
    %83 = vector.broadcast %81 : vector<1x6xf32> to vector<6x6xf32>
    %84 = arith.addf %82, %83 : vector<6x6xf32>
    %cst_33 = arith.constant 0.000000e+00 : f32
    %85 = vector.broadcast %cst_33 : f32 to vector<6x6xf32>
    %86 = arith.cmpf ogt, %84, %85 : vector<6x6xf32>
    %cst_34 = arith.constant 2.000000e-01 : f32
    %87 = vector.broadcast %cst_34 : f32 to vector<6x6xf32>
    %88 = arith.mulf %87, %84 : vector<6x6xf32>
    %89 = arith.select %86, %84, %88 : vector<6x6xi1>, vector<6x6xf32>
    %cst_35 = arith.constant -1.000000e+30 : f32
    %90 = vector.broadcast %cst_35 : f32 to vector<6x6xf32>
    %91 = arith.select %12, %89, %90 : vector<6x6xi1>, vector<6x6xf32>
    %cst_36 = arith.constant dense<0xFF800000> : vector<6xf32>
    %92 = vector.multi_reduction <maximumf>, %91, %cst_36 [1] : vector<6x6xf32> to vector<6xf32>
    %93 = vector.shape_cast %92 : vector<6xf32> to vector<6x1xf32>
    %94 = vector.broadcast %93 : vector<6x1xf32> to vector<6x6xf32>
    %95 = arith.subf %91, %94 : vector<6x6xf32>
    %96 = math.exp %95 : vector<6x6xf32>
    %cst_37 = arith.constant 0.000000e+00 : f32
    %97 = vector.broadcast %cst_37 : f32 to vector<6x6xf32>
    %98 = arith.select %12, %96, %97 : vector<6x6xi1>, vector<6x6xf32>
    %cst_38 = arith.constant dense<0.000000e+00> : vector<6xf32>
    %99 = vector.multi_reduction <add>, %98, %cst_38 [1] : vector<6x6xf32> to vector<6xf32>
    %100 = vector.shape_cast %99 : vector<6xf32> to vector<6x1xf32>
    %cst_39 = arith.constant 1.000000e-30 : f32
    %101 = vector.broadcast %cst_39 : f32 to vector<6x1xf32>
    %102 = arith.maximumf %100, %101 : vector<6x1xf32>
    %103 = tpu.reciprocal %102 {approx = true} : vector<6x1xf32> -> vector<6x1xf32>
    %104 = arith.mulf %102, %103 : vector<6x1xf32>
    %cst_40 = arith.constant 2.000000e+00 : f32
    %105 = vector.broadcast %cst_40 : f32 to vector<6x1xf32>
    %106 = arith.subf %105, %104 : vector<6x1xf32>
    %107 = arith.mulf %103, %106 : vector<6x1xf32>
    %108 = vector.broadcast %107 : vector<6x1xf32> to vector<6x6xf32>
    %109 = arith.mulf %98, %108 : vector<6x6xf32>
    %c2 = arith.constant 2 : index
    %c0_41 = arith.constant 0 : index
    %c0_42 = arith.constant 0 : index
    %110 = vector.load %arg4[%c2, %c0_41, %c0_42] : memref<4x6x8xf32, #tpu.memory_space<vmem>>, vector<1x6x8xf32>
    %111 = vector.shape_cast %110 : vector<1x6x8xf32> to vector<6x8xf32>
    %cst_43 = arith.constant dense<0.000000e+00> : vector<6x8xf32>
    %112 = tpu.matmul %109, %111, %cst_43 {dimension_numbers = #tpu.dot_dimension_numbers<[1], [0], [0], [1], [0, 0, 1, 1], [], []>} : vector<6x6xf32>, vector<6x8xf32>, vector<6x8xf32> -> vector<6x8xf32>
    %113 = vector.extract_strided_slice %7 {offsets = [0, 3], sizes = [6, 1], strides = [1, 1]} : vector<6x4xf32> to vector<6x1xf32>
    %114 = vector.extract_strided_slice %13 {offsets = [3, 0], sizes = [1, 6], strides = [1, 1]} : vector<4x6xf32> to vector<1x6xf32>
    %115 = vector.broadcast %113 : vector<6x1xf32> to vector<6x6xf32>
    %116 = vector.broadcast %114 : vector<1x6xf32> to vector<6x6xf32>
    %117 = arith.addf %115, %116 : vector<6x6xf32>
    %cst_44 = arith.constant 0.000000e+00 : f32
    %118 = vector.broadcast %cst_44 : f32 to vector<6x6xf32>
    %119 = arith.cmpf ogt, %117, %118 : vector<6x6xf32>
    %cst_45 = arith.constant 2.000000e-01 : f32
    %120 = vector.broadcast %cst_45 : f32 to vector<6x6xf32>
    %121 = arith.mulf %120, %117 : vector<6x6xf32>
    %122 = arith.select %119, %117, %121 : vector<6x6xi1>, vector<6x6xf32>
    %cst_46 = arith.constant -1.000000e+30 : f32
    %123 = vector.broadcast %cst_46 : f32 to vector<6x6xf32>
    %124 = arith.select %12, %122, %123 : vector<6x6xi1>, vector<6x6xf32>
    %cst_47 = arith.constant dense<0xFF800000> : vector<6xf32>
    %125 = vector.multi_reduction <maximumf>, %124, %cst_47 [1] : vector<6x6xf32> to vector<6xf32>
    %126 = vector.shape_cast %125 : vector<6xf32> to vector<6x1xf32>
    %127 = vector.broadcast %126 : vector<6x1xf32> to vector<6x6xf32>
    %128 = arith.subf %124, %127 : vector<6x6xf32>
    %129 = math.exp %128 : vector<6x6xf32>
    %cst_48 = arith.constant 0.000000e+00 : f32
    %130 = vector.broadcast %cst_48 : f32 to vector<6x6xf32>
    %131 = arith.select %12, %129, %130 : vector<6x6xi1>, vector<6x6xf32>
    %cst_49 = arith.constant dense<0.000000e+00> : vector<6xf32>
    %132 = vector.multi_reduction <add>, %131, %cst_49 [1] : vector<6x6xf32> to vector<6xf32>
    %133 = vector.shape_cast %132 : vector<6xf32> to vector<6x1xf32>
    %cst_50 = arith.constant 1.000000e-30 : f32
    %134 = vector.broadcast %cst_50 : f32 to vector<6x1xf32>
    %135 = arith.maximumf %133, %134 : vector<6x1xf32>
    %136 = tpu.reciprocal %135 {approx = true} : vector<6x1xf32> -> vector<6x1xf32>
    %137 = arith.mulf %135, %136 : vector<6x1xf32>
    %cst_51 = arith.constant 2.000000e+00 : f32
    %138 = vector.broadcast %cst_51 : f32 to vector<6x1xf32>
    %139 = arith.subf %138, %137 : vector<6x1xf32>
    %140 = arith.mulf %136, %139 : vector<6x1xf32>
    %141 = vector.broadcast %140 : vector<6x1xf32> to vector<6x6xf32>
    %142 = arith.mulf %131, %141 : vector<6x6xf32>
    %c3 = arith.constant 3 : index
    %c0_52 = arith.constant 0 : index
    %c0_53 = arith.constant 0 : index
    %143 = vector.load %arg4[%c3, %c0_52, %c0_53] : memref<4x6x8xf32, #tpu.memory_space<vmem>>, vector<1x6x8xf32>
    %144 = vector.shape_cast %143 : vector<1x6x8xf32> to vector<6x8xf32>
    %cst_54 = arith.constant dense<0.000000e+00> : vector<6x8xf32>
    %145 = tpu.matmul %142, %144, %cst_54 {dimension_numbers = #tpu.dot_dimension_numbers<[1], [0], [0], [1], [0, 0, 1, 1], [], []>} : vector<6x6xf32>, vector<6x8xf32>, vector<6x8xf32> -> vector<6x8xf32>
    %146 = tpu.concatenate %46, %79, %112, %145 in 1 : vector<6x8xf32>, vector<6x8xf32>, vector<6x8xf32>, vector<6x8xf32> -> vector<6x32xf32>
    %147 = arith.addf %6, %146 : vector<6x32xf32>
    %c0_55 = arith.constant 0 : index
    %c0_56 = arith.constant 0 : index
    %148 = vector.load %arg9[%c0_55, %c0_56] : memref<6x8xi8, #tpu.memory_space<vmem>>, vector<6x8xi8>
    %149 = arith.sitofp %148 : vector<6x8xi8> to vector<6x8xf32>
    %cst_57 = arith.constant 0.000000e+00 : f32
    %150 = vector.broadcast %cst_57 : f32 to vector<6x8xf32>
    %151 = arith.cmpf ogt, %149, %150 : vector<6x8xf32>
    %c0_58 = arith.constant 0 : index
    %c0_59 = arith.constant 0 : index
    %152 = vector.load %arg7[%c0_58, %c0_59] : memref<4x8xf32, #tpu.memory_space<vmem>>, vector<4x8xf32>
    %153 = vector.extract_strided_slice %8 {offsets = [0, 0], sizes = [6, 1], strides = [1, 1]} : vector<6x4xf32> to vector<6x1xf32>
    %154 = vector.extract_strided_slice %152 {offsets = [0, 0], sizes = [1, 8], strides = [1, 1]} : vector<4x8xf32> to vector<1x8xf32>
    %155 = vector.broadcast %153 : vector<6x1xf32> to vector<6x8xf32>
    %156 = vector.broadcast %154 : vector<1x8xf32> to vector<6x8xf32>
    %157 = arith.addf %155, %156 : vector<6x8xf32>
    %cst_60 = arith.constant 0.000000e+00 : f32
    %158 = vector.broadcast %cst_60 : f32 to vector<6x8xf32>
    %159 = arith.cmpf ogt, %157, %158 : vector<6x8xf32>
    %cst_61 = arith.constant 2.000000e-01 : f32
    %160 = vector.broadcast %cst_61 : f32 to vector<6x8xf32>
    %161 = arith.mulf %160, %157 : vector<6x8xf32>
    %162 = arith.select %159, %157, %161 : vector<6x8xi1>, vector<6x8xf32>
    %cst_62 = arith.constant -1.000000e+30 : f32
    %163 = vector.broadcast %cst_62 : f32 to vector<6x8xf32>
    %164 = arith.select %151, %162, %163 : vector<6x8xi1>, vector<6x8xf32>
    %cst_63 = arith.constant dense<0xFF800000> : vector<6xf32>
    %165 = vector.multi_reduction <maximumf>, %164, %cst_63 [1] : vector<6x8xf32> to vector<6xf32>
    %166 = vector.shape_cast %165 : vector<6xf32> to vector<6x1xf32>
    %167 = vector.broadcast %166 : vector<6x1xf32> to vector<6x8xf32>
    %168 = arith.subf %164, %167 : vector<6x8xf32>
    %169 = math.exp %168 : vector<6x8xf32>
    %cst_64 = arith.constant 0.000000e+00 : f32
    %170 = vector.broadcast %cst_64 : f32 to vector<6x8xf32>
    %171 = arith.select %151, %169, %170 : vector<6x8xi1>, vector<6x8xf32>
    %cst_65 = arith.constant dense<0.000000e+00> : vector<6xf32>
    %172 = vector.multi_reduction <add>, %171, %cst_65 [1] : vector<6x8xf32> to vector<6xf32>
    %173 = vector.shape_cast %172 : vector<6xf32> to vector<6x1xf32>
    %cst_66 = arith.constant 1.000000e-30 : f32
    %174 = vector.broadcast %cst_66 : f32 to vector<6x1xf32>
    %175 = arith.maximumf %173, %174 : vector<6x1xf32>
    %176 = tpu.reciprocal %175 {approx = true} : vector<6x1xf32> -> vector<6x1xf32>
    %177 = arith.mulf %175, %176 : vector<6x1xf32>
    %cst_67 = arith.constant 2.000000e+00 : f32
    %178 = vector.broadcast %cst_67 : f32 to vector<6x1xf32>
    %179 = arith.subf %178, %177 : vector<6x1xf32>
    %180 = arith.mulf %176, %179 : vector<6x1xf32>
    %181 = vector.broadcast %180 : vector<6x1xf32> to vector<6x8xf32>
    %182 = arith.mulf %171, %181 : vector<6x8xf32>
    %c0_68 = arith.constant 0 : index
    %c0_69 = arith.constant 0 : index
    %c0_70 = arith.constant 0 : index
    %183 = vector.load %arg6[%c0_68, %c0_69, %c0_70] : memref<4x8x8xf32, #tpu.memory_space<vmem>>, vector<1x8x8xf32>
    %184 = vector.shape_cast %183 : vector<1x8x8xf32> to vector<8x8xf32>
    %cst_71 = arith.constant dense<0.000000e+00> : vector<6x8xf32>
    %185 = tpu.matmul %182, %184, %cst_71 {dimension_numbers = #tpu.dot_dimension_numbers<[1], [0], [0], [1], [0, 0, 1, 1], [], []>} : vector<6x8xf32>, vector<8x8xf32>, vector<6x8xf32> -> vector<6x8xf32>
    %186 = vector.extract_strided_slice %8 {offsets = [0, 1], sizes = [6, 1], strides = [1, 1]} : vector<6x4xf32> to vector<6x1xf32>
    %187 = vector.extract_strided_slice %152 {offsets = [1, 0], sizes = [1, 8], strides = [1, 1]} : vector<4x8xf32> to vector<1x8xf32>
    %188 = vector.broadcast %186 : vector<6x1xf32> to vector<6x8xf32>
    %189 = vector.broadcast %187 : vector<1x8xf32> to vector<6x8xf32>
    %190 = arith.addf %188, %189 : vector<6x8xf32>
    %cst_72 = arith.constant 0.000000e+00 : f32
    %191 = vector.broadcast %cst_72 : f32 to vector<6x8xf32>
    %192 = arith.cmpf ogt, %190, %191 : vector<6x8xf32>
    %cst_73 = arith.constant 2.000000e-01 : f32
    %193 = vector.broadcast %cst_73 : f32 to vector<6x8xf32>
    %194 = arith.mulf %193, %190 : vector<6x8xf32>
    %195 = arith.select %192, %190, %194 : vector<6x8xi1>, vector<6x8xf32>
    %cst_74 = arith.constant -1.000000e+30 : f32
    %196 = vector.broadcast %cst_74 : f32 to vector<6x8xf32>
    %197 = arith.select %151, %195, %196 : vector<6x8xi1>, vector<6x8xf32>
    %cst_75 = arith.constant dense<0xFF800000> : vector<6xf32>
    %198 = vector.multi_reduction <maximumf>, %197, %cst_75 [1] : vector<6x8xf32> to vector<6xf32>
    %199 = vector.shape_cast %198 : vector<6xf32> to vector<6x1xf32>
    %200 = vector.broadcast %199 : vector<6x1xf32> to vector<6x8xf32>
    %201 = arith.subf %197, %200 : vector<6x8xf32>
    %202 = math.exp %201 : vector<6x8xf32>
    %cst_76 = arith.constant 0.000000e+00 : f32
    %203 = vector.broadcast %cst_76 : f32 to vector<6x8xf32>
    %204 = arith.select %151, %202, %203 : vector<6x8xi1>, vector<6x8xf32>
    %cst_77 = arith.constant dense<0.000000e+00> : vector<6xf32>
    %205 = vector.multi_reduction <add>, %204, %cst_77 [1] : vector<6x8xf32> to vector<6xf32>
    %206 = vector.shape_cast %205 : vector<6xf32> to vector<6x1xf32>
    %cst_78 = arith.constant 1.000000e-30 : f32
    %207 = vector.broadcast %cst_78 : f32 to vector<6x1xf32>
    %208 = arith.maximumf %206, %207 : vector<6x1xf32>
    %209 = tpu.reciprocal %208 {approx = true} : vector<6x1xf32> -> vector<6x1xf32>
    %210 = arith.mulf %208, %209 : vector<6x1xf32>
    %cst_79 = arith.constant 2.000000e+00 : f32
    %211 = vector.broadcast %cst_79 : f32 to vector<6x1xf32>
    %212 = arith.subf %211, %210 : vector<6x1xf32>
    %213 = arith.mulf %209, %212 : vector<6x1xf32>
    %214 = vector.broadcast %213 : vector<6x1xf32> to vector<6x8xf32>
    %215 = arith.mulf %204, %214 : vector<6x8xf32>
    %c1_80 = arith.constant 1 : index
    %c0_81 = arith.constant 0 : index
    %c0_82 = arith.constant 0 : index
    %216 = vector.load %arg6[%c1_80, %c0_81, %c0_82] : memref<4x8x8xf32, #tpu.memory_space<vmem>>, vector<1x8x8xf32>
    %217 = vector.shape_cast %216 : vector<1x8x8xf32> to vector<8x8xf32>
    %cst_83 = arith.constant dense<0.000000e+00> : vector<6x8xf32>
    %218 = tpu.matmul %215, %217, %cst_83 {dimension_numbers = #tpu.dot_dimension_numbers<[1], [0], [0], [1], [0, 0, 1, 1], [], []>} : vector<6x8xf32>, vector<8x8xf32>, vector<6x8xf32> -> vector<6x8xf32>
    %219 = vector.extract_strided_slice %8 {offsets = [0, 2], sizes = [6, 1], strides = [1, 1]} : vector<6x4xf32> to vector<6x1xf32>
    %220 = vector.extract_strided_slice %152 {offsets = [2, 0], sizes = [1, 8], strides = [1, 1]} : vector<4x8xf32> to vector<1x8xf32>
    %221 = vector.broadcast %219 : vector<6x1xf32> to vector<6x8xf32>
    %222 = vector.broadcast %220 : vector<1x8xf32> to vector<6x8xf32>
    %223 = arith.addf %221, %222 : vector<6x8xf32>
    %cst_84 = arith.constant 0.000000e+00 : f32
    %224 = vector.broadcast %cst_84 : f32 to vector<6x8xf32>
    %225 = arith.cmpf ogt, %223, %224 : vector<6x8xf32>
    %cst_85 = arith.constant 2.000000e-01 : f32
    %226 = vector.broadcast %cst_85 : f32 to vector<6x8xf32>
    %227 = arith.mulf %226, %223 : vector<6x8xf32>
    %228 = arith.select %225, %223, %227 : vector<6x8xi1>, vector<6x8xf32>
    %cst_86 = arith.constant -1.000000e+30 : f32
    %229 = vector.broadcast %cst_86 : f32 to vector<6x8xf32>
    %230 = arith.select %151, %228, %229 : vector<6x8xi1>, vector<6x8xf32>
    %cst_87 = arith.constant dense<0xFF800000> : vector<6xf32>
    %231 = vector.multi_reduction <maximumf>, %230, %cst_87 [1] : vector<6x8xf32> to vector<6xf32>
    %232 = vector.shape_cast %231 : vector<6xf32> to vector<6x1xf32>
    %233 = vector.broadcast %232 : vector<6x1xf32> to vector<6x8xf32>
    %234 = arith.subf %230, %233 : vector<6x8xf32>
    %235 = math.exp %234 : vector<6x8xf32>
    %cst_88 = arith.constant 0.000000e+00 : f32
    %236 = vector.broadcast %cst_88 : f32 to vector<6x8xf32>
    %237 = arith.select %151, %235, %236 : vector<6x8xi1>, vector<6x8xf32>
    %cst_89 = arith.constant dense<0.000000e+00> : vector<6xf32>
    %238 = vector.multi_reduction <add>, %237, %cst_89 [1] : vector<6x8xf32> to vector<6xf32>
    %239 = vector.shape_cast %238 : vector<6xf32> to vector<6x1xf32>
    %cst_90 = arith.constant 1.000000e-30 : f32
    %240 = vector.broadcast %cst_90 : f32 to vector<6x1xf32>
    %241 = arith.maximumf %239, %240 : vector<6x1xf32>
    %242 = tpu.reciprocal %241 {approx = true} : vector<6x1xf32> -> vector<6x1xf32>
    %243 = arith.mulf %241, %242 : vector<6x1xf32>
    %cst_91 = arith.constant 2.000000e+00 : f32
    %244 = vector.broadcast %cst_91 : f32 to vector<6x1xf32>
    %245 = arith.subf %244, %243 : vector<6x1xf32>
    %246 = arith.mulf %242, %245 : vector<6x1xf32>
    %247 = vector.broadcast %246 : vector<6x1xf32> to vector<6x8xf32>
    %248 = arith.mulf %237, %247 : vector<6x8xf32>
    %c2_92 = arith.constant 2 : index
    %c0_93 = arith.constant 0 : index
    %c0_94 = arith.constant 0 : index
    %249 = vector.load %arg6[%c2_92, %c0_93, %c0_94] : memref<4x8x8xf32, #tpu.memory_space<vmem>>, vector<1x8x8xf32>
    %250 = vector.shape_cast %249 : vector<1x8x8xf32> to vector<8x8xf32>
    %cst_95 = arith.constant dense<0.000000e+00> : vector<6x8xf32>
    %251 = tpu.matmul %248, %250, %cst_95 {dimension_numbers = #tpu.dot_dimension_numbers<[1], [0], [0], [1], [0, 0, 1, 1], [], []>} : vector<6x8xf32>, vector<8x8xf32>, vector<6x8xf32> -> vector<6x8xf32>
    %252 = vector.extract_strided_slice %8 {offsets = [0, 3], sizes = [6, 1], strides = [1, 1]} : vector<6x4xf32> to vector<6x1xf32>
    %253 = vector.extract_strided_slice %152 {offsets = [3, 0], sizes = [1, 8], strides = [1, 1]} : vector<4x8xf32> to vector<1x8xf32>
    %254 = vector.broadcast %252 : vector<6x1xf32> to vector<6x8xf32>
    %255 = vector.broadcast %253 : vector<1x8xf32> to vector<6x8xf32>
    %256 = arith.addf %254, %255 : vector<6x8xf32>
    %cst_96 = arith.constant 0.000000e+00 : f32
    %257 = vector.broadcast %cst_96 : f32 to vector<6x8xf32>
    %258 = arith.cmpf ogt, %256, %257 : vector<6x8xf32>
    %cst_97 = arith.constant 2.000000e-01 : f32
    %259 = vector.broadcast %cst_97 : f32 to vector<6x8xf32>
    %260 = arith.mulf %259, %256 : vector<6x8xf32>
    %261 = arith.select %258, %256, %260 : vector<6x8xi1>, vector<6x8xf32>
    %cst_98 = arith.constant -1.000000e+30 : f32
    %262 = vector.broadcast %cst_98 : f32 to vector<6x8xf32>
    %263 = arith.select %151, %261, %262 : vector<6x8xi1>, vector<6x8xf32>
    %cst_99 = arith.constant dense<0xFF800000> : vector<6xf32>
    %264 = vector.multi_reduction <maximumf>, %263, %cst_99 [1] : vector<6x8xf32> to vector<6xf32>
    %265 = vector.shape_cast %264 : vector<6xf32> to vector<6x1xf32>
    %266 = vector.broadcast %265 : vector<6x1xf32> to vector<6x8xf32>
    %267 = arith.subf %263, %266 : vector<6x8xf32>
    %268 = math.exp %267 : vector<6x8xf32>
    %cst_100 = arith.constant 0.000000e+00 : f32
    %269 = vector.broadcast %cst_100 : f32 to vector<6x8xf32>
    %270 = arith.select %151, %268, %269 : vector<6x8xi1>, vector<6x8xf32>
    %cst_101 = arith.constant dense<0.000000e+00> : vector<6xf32>
    %271 = vector.multi_reduction <add>, %270, %cst_101 [1] : vector<6x8xf32> to vector<6xf32>
    %272 = vector.shape_cast %271 : vector<6xf32> to vector<6x1xf32>
    %cst_102 = arith.constant 1.000000e-30 : f32
    %273 = vector.broadcast %cst_102 : f32 to vector<6x1xf32>
    %274 = arith.maximumf %272, %273 : vector<6x1xf32>
    %275 = tpu.reciprocal %274 {approx = true} : vector<6x1xf32> -> vector<6x1xf32>
    %276 = arith.mulf %274, %275 : vector<6x1xf32>
    %cst_103 = arith.constant 2.000000e+00 : f32
    %277 = vector.broadcast %cst_103 : f32 to vector<6x1xf32>
    %278 = arith.subf %277, %276 : vector<6x1xf32>
    %279 = arith.mulf %275, %278 : vector<6x1xf32>
    %280 = vector.broadcast %279 : vector<6x1xf32> to vector<6x8xf32>
    %281 = arith.mulf %270, %280 : vector<6x8xf32>
    %c3_104 = arith.constant 3 : index
    %c0_105 = arith.constant 0 : index
    %c0_106 = arith.constant 0 : index
    %282 = vector.load %arg6[%c3_104, %c0_105, %c0_106] : memref<4x8x8xf32, #tpu.memory_space<vmem>>, vector<1x8x8xf32>
    %283 = vector.shape_cast %282 : vector<1x8x8xf32> to vector<8x8xf32>
    %cst_107 = arith.constant dense<0.000000e+00> : vector<6x8xf32>
    %284 = tpu.matmul %281, %283, %cst_107 {dimension_numbers = #tpu.dot_dimension_numbers<[1], [0], [0], [1], [0, 0, 1, 1], [], []>} : vector<6x8xf32>, vector<8x8xf32>, vector<6x8xf32> -> vector<6x8xf32>
    %285 = tpu.concatenate %185, %218, %251, %284 in 1 : vector<6x8xf32>, vector<6x8xf32>, vector<6x8xf32>, vector<6x8xf32> -> vector<6x32xf32>
    %286 = arith.addf %147, %285 : vector<6x32xf32>
    %cst_108 = arith.constant 0.000000e+00 : f32
    %287 = vector.broadcast %cst_108 : f32 to vector<6x32xf32>
    %288 = arith.maximumf %286, %287 : vector<6x32xf32>
    %cst_109 = arith.constant 0.000000e+00 : f32
    %289 = vector.broadcast %cst_109 : f32 to vector<6x96xf32>
    %290 = tpu.concatenate %288, %289 in 1 : vector<6x32xf32>, vector<6x96xf32> -> vector<6x128xf32>
    %c0_110 = arith.constant 0 : index
    %c0_111 = arith.constant 0 : index
    %291 = vector.load %arg10[%c0_110, %c0_111] : memref<6x128xf32, #tpu.memory_space<vmem>>, vector<6x128xf32>
    tpu.vector_store %arg10[%c0_110, %c0_111], %290 {strides = array<i32>} : memref<6x128xf32, #tpu.memory_space<vmem>>, vector<6x128xf32>,
    return
  }
  func.func @transform_0(%arg0: i32) -> (i32, i32) {
    %c0_i32 = arith.constant 0 : i32
    %c0_i32_0 = arith.constant 0 : i32
    return %arg0, %c0_i32 : i32, i32
  }
  func.func @transform_1(%arg0: i32) -> (i32, i32) {
    %c0_i32 = arith.constant 0 : i32
    %c0_i32_0 = arith.constant 0 : i32
    %c0_i32_1 = arith.constant 0 : i32
    return %c0_i32, %c0_i32_0 : i32, i32
  }
  func.func @transform_2(%arg0: i32) -> (i32, i32) {
    %c0_i32 = arith.constant 0 : i32
    %c0_i32_0 = arith.constant 0 : i32
    %c0_i32_1 = arith.constant 0 : i32
    return %c0_i32, %c0_i32_0 : i32, i32
  }
  func.func @transform_3(%arg0: i32) -> (i32, i32, i32) {
    %c0_i32 = arith.constant 0 : i32
    %c0_i32_0 = arith.constant 0 : i32
    %c0_i32_1 = arith.constant 0 : i32
    %c0_i32_2 = arith.constant 0 : i32
    return %c0_i32, %c0_i32_0, %c0_i32_1 : i32, i32, i32
  }
  func.func @transform_4(%arg0: i32) -> (i32, i32) {
    %c0_i32 = arith.constant 0 : i32
    %c0_i32_0 = arith.constant 0 : i32
    %c0_i32_1 = arith.constant 0 : i32
    return %c0_i32, %c0_i32_0 : i32, i32
  }
  func.func @transform_5(%arg0: i32) -> (i32, i32, i32) {
    %c0_i32 = arith.constant 0 : i32
    %c0_i32_0 = arith.constant 0 : i32
    %c0_i32_1 = arith.constant 0 : i32
    %c0_i32_2 = arith.constant 0 : i32
    return %c0_i32, %c0_i32_0, %c0_i32_1 : i32, i32, i32
  }
  func.func @transform_6(%arg0: i32) -> (i32, i32) {
    %c0_i32 = arith.constant 0 : i32
    %c0_i32_0 = arith.constant 0 : i32
    %c0_i32_1 = arith.constant 0 : i32
    return %c0_i32, %c0_i32_0 : i32, i32
  }
  func.func @transform_7(%arg0: i32) -> (i32, i32) {
    %c0_i32 = arith.constant 0 : i32
    %c0_i32_0 = arith.constant 0 : i32
    return %arg0, %c0_i32 : i32, i32
  }
  func.func @transform_8(%arg0: i32) -> (i32, i32) {
    %c0_i32 = arith.constant 0 : i32
    %c0_i32_0 = arith.constant 0 : i32
    return %arg0, %c0_i32 : i32, i32
  }
  func.func @transform_9(%arg0: i32) -> (i32, i32) {
    %c0_i32 = arith.constant 0 : i32
    %c0_i32_0 = arith.constant 0 : i32
    return %arg0, %c0_i32 : i32, i32
  }
}

module attributes {stable_mosaic.version = 11 : i64} {
  func.func @kernel(%arg0: i32, %arg1: memref<8x16xf32, #tpu.memory_space<vmem>>, %arg2: memref<16x40xf32, #tpu.memory_space<vmem>>, %arg3: memref<1x40xf32, #tpu.memory_space<vmem>>, %arg4: memref<4x8x8xf32, #tpu.memory_space<vmem>>, %arg5: memref<4x8xf32, #tpu.memory_space<vmem>>, %arg6: memref<4x6x8xf32, #tpu.memory_space<vmem>>, %arg7: memref<4x6xf32, #tpu.memory_space<vmem>>, %arg8: memref<8x8xi8, #tpu.memory_space<vmem>>, %arg9: memref<8x6xi8, #tpu.memory_space<vmem>>, %arg10: memref<8x128xf32, #tpu.memory_space<vmem>>) attributes {dimension_semantics = [#tpu.dimension_semantics<parallel>], iteration_bounds = array<i64: 1>, scalar_prefetch = 0 : i64, scratch_operands = 0 : i64, tpu.core_type = #tpu.core_type<tc>, window_params = [{transform_indices = @transform_0, window_bounds = array<i64: 8, 16>}, {pipeline_mode = #tpu.pipeline_mode<synchronous>, transform_indices = @transform_1, window_bounds = array<i64: 16, 40>}, {pipeline_mode = #tpu.pipeline_mode<synchronous>, transform_indices = @transform_2, window_bounds = array<i64: 1, 40>}, {pipeline_mode = #tpu.pipeline_mode<synchronous>, transform_indices = @transform_3, window_bounds = array<i64: 4, 8, 8>}, {pipeline_mode = #tpu.pipeline_mode<synchronous>, transform_indices = @transform_4, window_bounds = array<i64: 4, 8>}, {pipeline_mode = #tpu.pipeline_mode<synchronous>, transform_indices = @transform_5, window_bounds = array<i64: 4, 6, 8>}, {pipeline_mode = #tpu.pipeline_mode<synchronous>, transform_indices = @transform_6, window_bounds = array<i64: 4, 6>}, {transform_indices = @transform_7, window_bounds = array<i64: 8, 8>}, {transform_indices = @transform_8, window_bounds = array<i64: 8, 6>}, {transform_indices = @transform_9, window_bounds = array<i64: 8, 128>}]} {
    %c0 = arith.constant 0 : index
    %c0_0 = arith.constant 0 : index
    %0 = vector.load %arg1[%c0, %c0_0] : memref<8x16xf32, #tpu.memory_space<vmem>>, vector<8x16xf32>
    %c0_1 = arith.constant 0 : index
    %c0_2 = arith.constant 0 : index
    %1 = vector.load %arg2[%c0_1, %c0_2] : memref<16x40xf32, #tpu.memory_space<vmem>>, vector<16x40xf32>
    %cst = arith.constant dense<0.000000e+00> : vector<8x40xf32>
    %2 = tpu.matmul %0, %1, %cst {dimension_numbers = #tpu.dot_dimension_numbers<[1], [0], [0], [1], [0, 0, 1, 1], [], []>} : vector<8x16xf32>, vector<16x40xf32>, vector<8x40xf32> -> vector<8x40xf32>
    %c0_3 = arith.constant 0 : index
    %c0_4 = arith.constant 0 : index
    %3 = vector.load %arg3[%c0_3, %c0_4] : memref<1x40xf32, #tpu.memory_space<vmem>>, vector<1x40xf32>
    %4 = vector.broadcast %3 : vector<1x40xf32> to vector<8x40xf32>
    %5 = arith.addf %2, %4 : vector<8x40xf32>
    %6 = vector.extract_strided_slice %5 {offsets = [0, 0], sizes = [8, 32], strides = [1, 1]} : vector<8x40xf32> to vector<8x32xf32>
    %7 = vector.extract_strided_slice %5 {offsets = [0, 32], sizes = [8, 4], strides = [1, 1]} : vector<8x40xf32> to vector<8x4xf32>
    %8 = vector.extract_strided_slice %5 {offsets = [0, 36], sizes = [8, 4], strides = [1, 1]} : vector<8x40xf32> to vector<8x4xf32>
    %c0_5 = arith.constant 0 : index
    %c0_6 = arith.constant 0 : index
    %9 = vector.load %arg8[%c0_5, %c0_6] : memref<8x8xi8, #tpu.memory_space<vmem>>, vector<8x8xi8>
    %10 = arith.sitofp %9 : vector<8x8xi8> to vector<8x8xf32>
    %cst_7 = arith.constant 0.000000e+00 : f32
    %11 = vector.broadcast %cst_7 : f32 to vector<8x8xf32>
    %12 = arith.cmpf ogt, %10, %11 : vector<8x8xf32>
    %c0_8 = arith.constant 0 : index
    %c0_9 = arith.constant 0 : index
    %13 = vector.load %arg5[%c0_8, %c0_9] : memref<4x8xf32, #tpu.memory_space<vmem>>, vector<4x8xf32>
    %14 = vector.extract_strided_slice %7 {offsets = [0, 0], sizes = [8, 1], strides = [1, 1]} : vector<8x4xf32> to vector<8x1xf32>
    %15 = vector.extract_strided_slice %13 {offsets = [0, 0], sizes = [1, 8], strides = [1, 1]} : vector<4x8xf32> to vector<1x8xf32>
    %16 = vector.broadcast %14 : vector<8x1xf32> to vector<8x8xf32>
    %17 = vector.broadcast %15 : vector<1x8xf32> to vector<8x8xf32>
    %18 = arith.addf %16, %17 : vector<8x8xf32>
    %cst_10 = arith.constant 0.000000e+00 : f32
    %19 = vector.broadcast %cst_10 : f32 to vector<8x8xf32>
    %20 = arith.cmpf ogt, %18, %19 : vector<8x8xf32>
    %cst_11 = arith.constant 2.000000e-01 : f32
    %21 = vector.broadcast %cst_11 : f32 to vector<8x8xf32>
    %22 = arith.mulf %21, %18 : vector<8x8xf32>
    %23 = arith.select %20, %18, %22 : vector<8x8xi1>, vector<8x8xf32>
    %cst_12 = arith.constant -1.000000e+30 : f32
    %24 = vector.broadcast %cst_12 : f32 to vector<8x8xf32>
    %25 = arith.select %12, %23, %24 : vector<8x8xi1>, vector<8x8xf32>
    %cst_13 = arith.constant dense<0xFF800000> : vector<8xf32>
    %26 = vector.multi_reduction <maximumf>, %25, %cst_13 [1] : vector<8x8xf32> to vector<8xf32>
    %27 = vector.shape_cast %26 : vector<8xf32> to vector<8x1xf32>
    %28 = vector.broadcast %27 : vector<8x1xf32> to vector<8x8xf32>
    %29 = arith.subf %25, %28 : vector<8x8xf32>
    %30 = math.exp %29 : vector<8x8xf32>
    %cst_14 = arith.constant 0.000000e+00 : f32
    %31 = vector.broadcast %cst_14 : f32 to vector<8x8xf32>
    %32 = arith.select %12, %30, %31 : vector<8x8xi1>, vector<8x8xf32>
    %cst_15 = arith.constant dense<0.000000e+00> : vector<8xf32>
    %33 = vector.multi_reduction <add>, %32, %cst_15 [1] : vector<8x8xf32> to vector<8xf32>
    %34 = vector.shape_cast %33 : vector<8xf32> to vector<8x1xf32>
    %cst_16 = arith.constant 1.000000e-30 : f32
    %35 = vector.broadcast %cst_16 : f32 to vector<8x1xf32>
    %36 = arith.maximumf %34, %35 : vector<8x1xf32>
    %37 = tpu.reciprocal %36 {approx = true} : vector<8x1xf32> -> vector<8x1xf32>
    %38 = arith.mulf %36, %37 : vector<8x1xf32>
    %cst_17 = arith.constant 2.000000e+00 : f32
    %39 = vector.broadcast %cst_17 : f32 to vector<8x1xf32>
    %40 = arith.subf %39, %38 : vector<8x1xf32>
    %41 = arith.mulf %37, %40 : vector<8x1xf32>
    %42 = vector.broadcast %41 : vector<8x1xf32> to vector<8x8xf32>
    %43 = arith.mulf %32, %42 : vector<8x8xf32>
    %c0_18 = arith.constant 0 : index
    %c0_19 = arith.constant 0 : index
    %c0_20 = arith.constant 0 : index
    %44 = vector.load %arg4[%c0_18, %c0_19, %c0_20] : memref<4x8x8xf32, #tpu.memory_space<vmem>>, vector<1x8x8xf32>
    %45 = vector.shape_cast %44 : vector<1x8x8xf32> to vector<8x8xf32>
    %cst_21 = arith.constant dense<0.000000e+00> : vector<8x8xf32>
    %46 = tpu.matmul %43, %45, %cst_21 {dimension_numbers = #tpu.dot_dimension_numbers<[1], [0], [0], [1], [0, 0, 1, 1], [], []>} : vector<8x8xf32>, vector<8x8xf32>, vector<8x8xf32> -> vector<8x8xf32>
    %47 = vector.extract_strided_slice %7 {offsets = [0, 1], sizes = [8, 1], strides = [1, 1]} : vector<8x4xf32> to vector<8x1xf32>
    %48 = vector.extract_strided_slice %13 {offsets = [1, 0], sizes = [1, 8], strides = [1, 1]} : vector<4x8xf32> to vector<1x8xf32>
    %49 = vector.broadcast %47 : vector<8x1xf32> to vector<8x8xf32>
    %50 = vector.broadcast %48 : vector<1x8xf32> to vector<8x8xf32>
    %51 = arith.addf %49, %50 : vector<8x8xf32>
    %cst_22 = arith.constant 0.000000e+00 : f32
    %52 = vector.broadcast %cst_22 : f32 to vector<8x8xf32>
    %53 = arith.cmpf ogt, %51, %52 : vector<8x8xf32>
    %cst_23 = arith.constant 2.000000e-01 : f32
    %54 = vector.broadcast %cst_23 : f32 to vector<8x8xf32>
    %55 = arith.mulf %54, %51 : vector<8x8xf32>
    %56 = arith.select %53, %51, %55 : vector<8x8xi1>, vector<8x8xf32>
    %cst_24 = arith.constant -1.000000e+30 : f32
    %57 = vector.broadcast %cst_24 : f32 to vector<8x8xf32>
    %58 = arith.select %12, %56, %57 : vector<8x8xi1>, vector<8x8xf32>
    %cst_25 = arith.constant dense<0xFF800000> : vector<8xf32>
    %59 = vector.multi_reduction <maximumf>, %58, %cst_25 [1] : vector<8x8xf32> to vector<8xf32>
    %60 = vector.shape_cast %59 : vector<8xf32> to vector<8x1xf32>
    %61 = vector.broadcast %60 : vector<8x1xf32> to vector<8x8xf32>
    %62 = arith.subf %58, %61 : vector<8x8xf32>
    %63 = math.exp %62 : vector<8x8xf32>
    %cst_26 = arith.constant 0.000000e+00 : f32
    %64 = vector.broadcast %cst_26 : f32 to vector<8x8xf32>
    %65 = arith.select %12, %63, %64 : vector<8x8xi1>, vector<8x8xf32>
    %cst_27 = arith.constant dense<0.000000e+00> : vector<8xf32>
    %66 = vector.multi_reduction <add>, %65, %cst_27 [1] : vector<8x8xf32> to vector<8xf32>
    %67 = vector.shape_cast %66 : vector<8xf32> to vector<8x1xf32>
    %cst_28 = arith.constant 1.000000e-30 : f32
    %68 = vector.broadcast %cst_28 : f32 to vector<8x1xf32>
    %69 = arith.maximumf %67, %68 : vector<8x1xf32>
    %70 = tpu.reciprocal %69 {approx = true} : vector<8x1xf32> -> vector<8x1xf32>
    %71 = arith.mulf %69, %70 : vector<8x1xf32>
    %cst_29 = arith.constant 2.000000e+00 : f32
    %72 = vector.broadcast %cst_29 : f32 to vector<8x1xf32>
    %73 = arith.subf %72, %71 : vector<8x1xf32>
    %74 = arith.mulf %70, %73 : vector<8x1xf32>
    %75 = vector.broadcast %74 : vector<8x1xf32> to vector<8x8xf32>
    %76 = arith.mulf %65, %75 : vector<8x8xf32>
    %c1 = arith.constant 1 : index
    %c0_30 = arith.constant 0 : index
    %c0_31 = arith.constant 0 : index
    %77 = vector.load %arg4[%c1, %c0_30, %c0_31] : memref<4x8x8xf32, #tpu.memory_space<vmem>>, vector<1x8x8xf32>
    %78 = vector.shape_cast %77 : vector<1x8x8xf32> to vector<8x8xf32>
    %cst_32 = arith.constant dense<0.000000e+00> : vector<8x8xf32>
    %79 = tpu.matmul %76, %78, %cst_32 {dimension_numbers = #tpu.dot_dimension_numbers<[1], [0], [0], [1], [0, 0, 1, 1], [], []>} : vector<8x8xf32>, vector<8x8xf32>, vector<8x8xf32> -> vector<8x8xf32>
    %80 = vector.extract_strided_slice %7 {offsets = [0, 2], sizes = [8, 1], strides = [1, 1]} : vector<8x4xf32> to vector<8x1xf32>
    %81 = vector.extract_strided_slice %13 {offsets = [2, 0], sizes = [1, 8], strides = [1, 1]} : vector<4x8xf32> to vector<1x8xf32>
    %82 = vector.broadcast %80 : vector<8x1xf32> to vector<8x8xf32>
    %83 = vector.broadcast %81 : vector<1x8xf32> to vector<8x8xf32>
    %84 = arith.addf %82, %83 : vector<8x8xf32>
    %cst_33 = arith.constant 0.000000e+00 : f32
    %85 = vector.broadcast %cst_33 : f32 to vector<8x8xf32>
    %86 = arith.cmpf ogt, %84, %85 : vector<8x8xf32>
    %cst_34 = arith.constant 2.000000e-01 : f32
    %87 = vector.broadcast %cst_34 : f32 to vector<8x8xf32>
    %88 = arith.mulf %87, %84 : vector<8x8xf32>
    %89 = arith.select %86, %84, %88 : vector<8x8xi1>, vector<8x8xf32>
    %cst_35 = arith.constant -1.000000e+30 : f32
    %90 = vector.broadcast %cst_35 : f32 to vector<8x8xf32>
    %91 = arith.select %12, %89, %90 : vector<8x8xi1>, vector<8x8xf32>
    %cst_36 = arith.constant dense<0xFF800000> : vector<8xf32>
    %92 = vector.multi_reduction <maximumf>, %91, %cst_36 [1] : vector<8x8xf32> to vector<8xf32>
    %93 = vector.shape_cast %92 : vector<8xf32> to vector<8x1xf32>
    %94 = vector.broadcast %93 : vector<8x1xf32> to vector<8x8xf32>
    %95 = arith.subf %91, %94 : vector<8x8xf32>
    %96 = math.exp %95 : vector<8x8xf32>
    %cst_37 = arith.constant 0.000000e+00 : f32
    %97 = vector.broadcast %cst_37 : f32 to vector<8x8xf32>
    %98 = arith.select %12, %96, %97 : vector<8x8xi1>, vector<8x8xf32>
    %cst_38 = arith.constant dense<0.000000e+00> : vector<8xf32>
    %99 = vector.multi_reduction <add>, %98, %cst_38 [1] : vector<8x8xf32> to vector<8xf32>
    %100 = vector.shape_cast %99 : vector<8xf32> to vector<8x1xf32>
    %cst_39 = arith.constant 1.000000e-30 : f32
    %101 = vector.broadcast %cst_39 : f32 to vector<8x1xf32>
    %102 = arith.maximumf %100, %101 : vector<8x1xf32>
    %103 = tpu.reciprocal %102 {approx = true} : vector<8x1xf32> -> vector<8x1xf32>
    %104 = arith.mulf %102, %103 : vector<8x1xf32>
    %cst_40 = arith.constant 2.000000e+00 : f32
    %105 = vector.broadcast %cst_40 : f32 to vector<8x1xf32>
    %106 = arith.subf %105, %104 : vector<8x1xf32>
    %107 = arith.mulf %103, %106 : vector<8x1xf32>
    %108 = vector.broadcast %107 : vector<8x1xf32> to vector<8x8xf32>
    %109 = arith.mulf %98, %108 : vector<8x8xf32>
    %c2 = arith.constant 2 : index
    %c0_41 = arith.constant 0 : index
    %c0_42 = arith.constant 0 : index
    %110 = vector.load %arg4[%c2, %c0_41, %c0_42] : memref<4x8x8xf32, #tpu.memory_space<vmem>>, vector<1x8x8xf32>
    %111 = vector.shape_cast %110 : vector<1x8x8xf32> to vector<8x8xf32>
    %cst_43 = arith.constant dense<0.000000e+00> : vector<8x8xf32>
    %112 = tpu.matmul %109, %111, %cst_43 {dimension_numbers = #tpu.dot_dimension_numbers<[1], [0], [0], [1], [0, 0, 1, 1], [], []>} : vector<8x8xf32>, vector<8x8xf32>, vector<8x8xf32> -> vector<8x8xf32>
    %113 = vector.extract_strided_slice %7 {offsets = [0, 3], sizes = [8, 1], strides = [1, 1]} : vector<8x4xf32> to vector<8x1xf32>
    %114 = vector.extract_strided_slice %13 {offsets = [3, 0], sizes = [1, 8], strides = [1, 1]} : vector<4x8xf32> to vector<1x8xf32>
    %115 = vector.broadcast %113 : vector<8x1xf32> to vector<8x8xf32>
    %116 = vector.broadcast %114 : vector<1x8xf32> to vector<8x8xf32>
    %117 = arith.addf %115, %116 : vector<8x8xf32>
    %cst_44 = arith.constant 0.000000e+00 : f32
    %118 = vector.broadcast %cst_44 : f32 to vector<8x8xf32>
    %119 = arith.cmpf ogt, %117, %118 : vector<8x8xf32>
    %cst_45 = arith.constant 2.000000e-01 : f32
    %120 = vector.broadcast %cst_45 : f32 to vector<8x8xf32>
    %121 = arith.mulf %120, %117 : vector<8x8xf32>
    %122 = arith.select %119, %117, %121 : vector<8x8xi1>, vector<8x8xf32>
    %cst_46 = arith.constant -1.000000e+30 : f32
    %123 = vector.broadcast %cst_46 : f32 to vector<8x8xf32>
    %124 = arith.select %12, %122, %123 : vector<8x8xi1>, vector<8x8xf32>
    %cst_47 = arith.constant dense<0xFF800000> : vector<8xf32>
    %125 = vector.multi_reduction <maximumf>, %124, %cst_47 [1] : vector<8x8xf32> to vector<8xf32>
    %126 = vector.shape_cast %125 : vector<8xf32> to vector<8x1xf32>
    %127 = vector.broadcast %126 : vector<8x1xf32> to vector<8x8xf32>
    %128 = arith.subf %124, %127 : vector<8x8xf32>
    %129 = math.exp %128 : vector<8x8xf32>
    %cst_48 = arith.constant 0.000000e+00 : f32
    %130 = vector.broadcast %cst_48 : f32 to vector<8x8xf32>
    %131 = arith.select %12, %129, %130 : vector<8x8xi1>, vector<8x8xf32>
    %cst_49 = arith.constant dense<0.000000e+00> : vector<8xf32>
    %132 = vector.multi_reduction <add>, %131, %cst_49 [1] : vector<8x8xf32> to vector<8xf32>
    %133 = vector.shape_cast %132 : vector<8xf32> to vector<8x1xf32>
    %cst_50 = arith.constant 1.000000e-30 : f32
    %134 = vector.broadcast %cst_50 : f32 to vector<8x1xf32>
    %135 = arith.maximumf %133, %134 : vector<8x1xf32>
    %136 = tpu.reciprocal %135 {approx = true} : vector<8x1xf32> -> vector<8x1xf32>
    %137 = arith.mulf %135, %136 : vector<8x1xf32>
    %cst_51 = arith.constant 2.000000e+00 : f32
    %138 = vector.broadcast %cst_51 : f32 to vector<8x1xf32>
    %139 = arith.subf %138, %137 : vector<8x1xf32>
    %140 = arith.mulf %136, %139 : vector<8x1xf32>
    %141 = vector.broadcast %140 : vector<8x1xf32> to vector<8x8xf32>
    %142 = arith.mulf %131, %141 : vector<8x8xf32>
    %c3 = arith.constant 3 : index
    %c0_52 = arith.constant 0 : index
    %c0_53 = arith.constant 0 : index
    %143 = vector.load %arg4[%c3, %c0_52, %c0_53] : memref<4x8x8xf32, #tpu.memory_space<vmem>>, vector<1x8x8xf32>
    %144 = vector.shape_cast %143 : vector<1x8x8xf32> to vector<8x8xf32>
    %cst_54 = arith.constant dense<0.000000e+00> : vector<8x8xf32>
    %145 = tpu.matmul %142, %144, %cst_54 {dimension_numbers = #tpu.dot_dimension_numbers<[1], [0], [0], [1], [0, 0, 1, 1], [], []>} : vector<8x8xf32>, vector<8x8xf32>, vector<8x8xf32> -> vector<8x8xf32>
    %146 = tpu.concatenate %46, %79, %112, %145 in 1 : vector<8x8xf32>, vector<8x8xf32>, vector<8x8xf32>, vector<8x8xf32> -> vector<8x32xf32>
    %147 = arith.addf %6, %146 : vector<8x32xf32>
    %c0_55 = arith.constant 0 : index
    %c0_56 = arith.constant 0 : index
    %148 = vector.load %arg9[%c0_55, %c0_56] : memref<8x6xi8, #tpu.memory_space<vmem>>, vector<8x6xi8>
    %149 = arith.sitofp %148 : vector<8x6xi8> to vector<8x6xf32>
    %cst_57 = arith.constant 0.000000e+00 : f32
    %150 = vector.broadcast %cst_57 : f32 to vector<8x6xf32>
    %151 = arith.cmpf ogt, %149, %150 : vector<8x6xf32>
    %c0_58 = arith.constant 0 : index
    %c0_59 = arith.constant 0 : index
    %152 = vector.load %arg7[%c0_58, %c0_59] : memref<4x6xf32, #tpu.memory_space<vmem>>, vector<4x6xf32>
    %153 = vector.extract_strided_slice %8 {offsets = [0, 0], sizes = [8, 1], strides = [1, 1]} : vector<8x4xf32> to vector<8x1xf32>
    %154 = vector.extract_strided_slice %152 {offsets = [0, 0], sizes = [1, 6], strides = [1, 1]} : vector<4x6xf32> to vector<1x6xf32>
    %155 = vector.broadcast %153 : vector<8x1xf32> to vector<8x6xf32>
    %156 = vector.broadcast %154 : vector<1x6xf32> to vector<8x6xf32>
    %157 = arith.addf %155, %156 : vector<8x6xf32>
    %cst_60 = arith.constant 0.000000e+00 : f32
    %158 = vector.broadcast %cst_60 : f32 to vector<8x6xf32>
    %159 = arith.cmpf ogt, %157, %158 : vector<8x6xf32>
    %cst_61 = arith.constant 2.000000e-01 : f32
    %160 = vector.broadcast %cst_61 : f32 to vector<8x6xf32>
    %161 = arith.mulf %160, %157 : vector<8x6xf32>
    %162 = arith.select %159, %157, %161 : vector<8x6xi1>, vector<8x6xf32>
    %cst_62 = arith.constant -1.000000e+30 : f32
    %163 = vector.broadcast %cst_62 : f32 to vector<8x6xf32>
    %164 = arith.select %151, %162, %163 : vector<8x6xi1>, vector<8x6xf32>
    %cst_63 = arith.constant dense<0xFF800000> : vector<8xf32>
    %165 = vector.multi_reduction <maximumf>, %164, %cst_63 [1] : vector<8x6xf32> to vector<8xf32>
    %166 = vector.shape_cast %165 : vector<8xf32> to vector<8x1xf32>
    %167 = vector.broadcast %166 : vector<8x1xf32> to vector<8x6xf32>
    %168 = arith.subf %164, %167 : vector<8x6xf32>
    %169 = math.exp %168 : vector<8x6xf32>
    %cst_64 = arith.constant 0.000000e+00 : f32
    %170 = vector.broadcast %cst_64 : f32 to vector<8x6xf32>
    %171 = arith.select %151, %169, %170 : vector<8x6xi1>, vector<8x6xf32>
    %cst_65 = arith.constant dense<0.000000e+00> : vector<8xf32>
    %172 = vector.multi_reduction <add>, %171, %cst_65 [1] : vector<8x6xf32> to vector<8xf32>
    %173 = vector.shape_cast %172 : vector<8xf32> to vector<8x1xf32>
    %cst_66 = arith.constant 1.000000e-30 : f32
    %174 = vector.broadcast %cst_66 : f32 to vector<8x1xf32>
    %175 = arith.maximumf %173, %174 : vector<8x1xf32>
    %176 = tpu.reciprocal %175 {approx = true} : vector<8x1xf32> -> vector<8x1xf32>
    %177 = arith.mulf %175, %176 : vector<8x1xf32>
    %cst_67 = arith.constant 2.000000e+00 : f32
    %178 = vector.broadcast %cst_67 : f32 to vector<8x1xf32>
    %179 = arith.subf %178, %177 : vector<8x1xf32>
    %180 = arith.mulf %176, %179 : vector<8x1xf32>
    %181 = vector.broadcast %180 : vector<8x1xf32> to vector<8x6xf32>
    %182 = arith.mulf %171, %181 : vector<8x6xf32>
    %c0_68 = arith.constant 0 : index
    %c0_69 = arith.constant 0 : index
    %c0_70 = arith.constant 0 : index
    %183 = vector.load %arg6[%c0_68, %c0_69, %c0_70] : memref<4x6x8xf32, #tpu.memory_space<vmem>>, vector<1x6x8xf32>
    %184 = vector.shape_cast %183 : vector<1x6x8xf32> to vector<6x8xf32>
    %cst_71 = arith.constant dense<0.000000e+00> : vector<8x8xf32>
    %185 = tpu.matmul %182, %184, %cst_71 {dimension_numbers = #tpu.dot_dimension_numbers<[1], [0], [0], [1], [0, 0, 1, 1], [], []>} : vector<8x6xf32>, vector<6x8xf32>, vector<8x8xf32> -> vector<8x8xf32>
    %186 = vector.extract_strided_slice %8 {offsets = [0, 1], sizes = [8, 1], strides = [1, 1]} : vector<8x4xf32> to vector<8x1xf32>
    %187 = vector.extract_strided_slice %152 {offsets = [1, 0], sizes = [1, 6], strides = [1, 1]} : vector<4x6xf32> to vector<1x6xf32>
    %188 = vector.broadcast %186 : vector<8x1xf32> to vector<8x6xf32>
    %189 = vector.broadcast %187 : vector<1x6xf32> to vector<8x6xf32>
    %190 = arith.addf %188, %189 : vector<8x6xf32>
    %cst_72 = arith.constant 0.000000e+00 : f32
    %191 = vector.broadcast %cst_72 : f32 to vector<8x6xf32>
    %192 = arith.cmpf ogt, %190, %191 : vector<8x6xf32>
    %cst_73 = arith.constant 2.000000e-01 : f32
    %193 = vector.broadcast %cst_73 : f32 to vector<8x6xf32>
    %194 = arith.mulf %193, %190 : vector<8x6xf32>
    %195 = arith.select %192, %190, %194 : vector<8x6xi1>, vector<8x6xf32>
    %cst_74 = arith.constant -1.000000e+30 : f32
    %196 = vector.broadcast %cst_74 : f32 to vector<8x6xf32>
    %197 = arith.select %151, %195, %196 : vector<8x6xi1>, vector<8x6xf32>
    %cst_75 = arith.constant dense<0xFF800000> : vector<8xf32>
    %198 = vector.multi_reduction <maximumf>, %197, %cst_75 [1] : vector<8x6xf32> to vector<8xf32>
    %199 = vector.shape_cast %198 : vector<8xf32> to vector<8x1xf32>
    %200 = vector.broadcast %199 : vector<8x1xf32> to vector<8x6xf32>
    %201 = arith.subf %197, %200 : vector<8x6xf32>
    %202 = math.exp %201 : vector<8x6xf32>
    %cst_76 = arith.constant 0.000000e+00 : f32
    %203 = vector.broadcast %cst_76 : f32 to vector<8x6xf32>
    %204 = arith.select %151, %202, %203 : vector<8x6xi1>, vector<8x6xf32>
    %cst_77 = arith.constant dense<0.000000e+00> : vector<8xf32>
    %205 = vector.multi_reduction <add>, %204, %cst_77 [1] : vector<8x6xf32> to vector<8xf32>
    %206 = vector.shape_cast %205 : vector<8xf32> to vector<8x1xf32>
    %cst_78 = arith.constant 1.000000e-30 : f32
    %207 = vector.broadcast %cst_78 : f32 to vector<8x1xf32>
    %208 = arith.maximumf %206, %207 : vector<8x1xf32>
    %209 = tpu.reciprocal %208 {approx = true} : vector<8x1xf32> -> vector<8x1xf32>
    %210 = arith.mulf %208, %209 : vector<8x1xf32>
    %cst_79 = arith.constant 2.000000e+00 : f32
    %211 = vector.broadcast %cst_79 : f32 to vector<8x1xf32>
    %212 = arith.subf %211, %210 : vector<8x1xf32>
    %213 = arith.mulf %209, %212 : vector<8x1xf32>
    %214 = vector.broadcast %213 : vector<8x1xf32> to vector<8x6xf32>
    %215 = arith.mulf %204, %214 : vector<8x6xf32>
    %c1_80 = arith.constant 1 : index
    %c0_81 = arith.constant 0 : index
    %c0_82 = arith.constant 0 : index
    %216 = vector.load %arg6[%c1_80, %c0_81, %c0_82] : memref<4x6x8xf32, #tpu.memory_space<vmem>>, vector<1x6x8xf32>
    %217 = vector.shape_cast %216 : vector<1x6x8xf32> to vector<6x8xf32>
    %cst_83 = arith.constant dense<0.000000e+00> : vector<8x8xf32>
    %218 = tpu.matmul %215, %217, %cst_83 {dimension_numbers = #tpu.dot_dimension_numbers<[1], [0], [0], [1], [0, 0, 1, 1], [], []>} : vector<8x6xf32>, vector<6x8xf32>, vector<8x8xf32> -> vector<8x8xf32>
    %219 = vector.extract_strided_slice %8 {offsets = [0, 2], sizes = [8, 1], strides = [1, 1]} : vector<8x4xf32> to vector<8x1xf32>
    %220 = vector.extract_strided_slice %152 {offsets = [2, 0], sizes = [1, 6], strides = [1, 1]} : vector<4x6xf32> to vector<1x6xf32>
    %221 = vector.broadcast %219 : vector<8x1xf32> to vector<8x6xf32>
    %222 = vector.broadcast %220 : vector<1x6xf32> to vector<8x6xf32>
    %223 = arith.addf %221, %222 : vector<8x6xf32>
    %cst_84 = arith.constant 0.000000e+00 : f32
    %224 = vector.broadcast %cst_84 : f32 to vector<8x6xf32>
    %225 = arith.cmpf ogt, %223, %224 : vector<8x6xf32>
    %cst_85 = arith.constant 2.000000e-01 : f32
    %226 = vector.broadcast %cst_85 : f32 to vector<8x6xf32>
    %227 = arith.mulf %226, %223 : vector<8x6xf32>
    %228 = arith.select %225, %223, %227 : vector<8x6xi1>, vector<8x6xf32>
    %cst_86 = arith.constant -1.000000e+30 : f32
    %229 = vector.broadcast %cst_86 : f32 to vector<8x6xf32>
    %230 = arith.select %151, %228, %229 : vector<8x6xi1>, vector<8x6xf32>
    %cst_87 = arith.constant dense<0xFF800000> : vector<8xf32>
    %231 = vector.multi_reduction <maximumf>, %230, %cst_87 [1] : vector<8x6xf32> to vector<8xf32>
    %232 = vector.shape_cast %231 : vector<8xf32> to vector<8x1xf32>
    %233 = vector.broadcast %232 : vector<8x1xf32> to vector<8x6xf32>
    %234 = arith.subf %230, %233 : vector<8x6xf32>
    %235 = math.exp %234 : vector<8x6xf32>
    %cst_88 = arith.constant 0.000000e+00 : f32
    %236 = vector.broadcast %cst_88 : f32 to vector<8x6xf32>
    %237 = arith.select %151, %235, %236 : vector<8x6xi1>, vector<8x6xf32>
    %cst_89 = arith.constant dense<0.000000e+00> : vector<8xf32>
    %238 = vector.multi_reduction <add>, %237, %cst_89 [1] : vector<8x6xf32> to vector<8xf32>
    %239 = vector.shape_cast %238 : vector<8xf32> to vector<8x1xf32>
    %cst_90 = arith.constant 1.000000e-30 : f32
    %240 = vector.broadcast %cst_90 : f32 to vector<8x1xf32>
    %241 = arith.maximumf %239, %240 : vector<8x1xf32>
    %242 = tpu.reciprocal %241 {approx = true} : vector<8x1xf32> -> vector<8x1xf32>
    %243 = arith.mulf %241, %242 : vector<8x1xf32>
    %cst_91 = arith.constant 2.000000e+00 : f32
    %244 = vector.broadcast %cst_91 : f32 to vector<8x1xf32>
    %245 = arith.subf %244, %243 : vector<8x1xf32>
    %246 = arith.mulf %242, %245 : vector<8x1xf32>
    %247 = vector.broadcast %246 : vector<8x1xf32> to vector<8x6xf32>
    %248 = arith.mulf %237, %247 : vector<8x6xf32>
    %c2_92 = arith.constant 2 : index
    %c0_93 = arith.constant 0 : index
    %c0_94 = arith.constant 0 : index
    %249 = vector.load %arg6[%c2_92, %c0_93, %c0_94] : memref<4x6x8xf32, #tpu.memory_space<vmem>>, vector<1x6x8xf32>
    %250 = vector.shape_cast %249 : vector<1x6x8xf32> to vector<6x8xf32>
    %cst_95 = arith.constant dense<0.000000e+00> : vector<8x8xf32>
    %251 = tpu.matmul %248, %250, %cst_95 {dimension_numbers = #tpu.dot_dimension_numbers<[1], [0], [0], [1], [0, 0, 1, 1], [], []>} : vector<8x6xf32>, vector<6x8xf32>, vector<8x8xf32> -> vector<8x8xf32>
    %252 = vector.extract_strided_slice %8 {offsets = [0, 3], sizes = [8, 1], strides = [1, 1]} : vector<8x4xf32> to vector<8x1xf32>
    %253 = vector.extract_strided_slice %152 {offsets = [3, 0], sizes = [1, 6], strides = [1, 1]} : vector<4x6xf32> to vector<1x6xf32>
    %254 = vector.broadcast %252 : vector<8x1xf32> to vector<8x6xf32>
    %255 = vector.broadcast %253 : vector<1x6xf32> to vector<8x6xf32>
    %256 = arith.addf %254, %255 : vector<8x6xf32>
    %cst_96 = arith.constant 0.000000e+00 : f32
    %257 = vector.broadcast %cst_96 : f32 to vector<8x6xf32>
    %258 = arith.cmpf ogt, %256, %257 : vector<8x6xf32>
    %cst_97 = arith.constant 2.000000e-01 : f32
    %259 = vector.broadcast %cst_97 : f32 to vector<8x6xf32>
    %260 = arith.mulf %259, %256 : vector<8x6xf32>
    %261 = arith.select %258, %256, %260 : vector<8x6xi1>, vector<8x6xf32>
    %cst_98 = arith.constant -1.000000e+30 : f32
    %262 = vector.broadcast %cst_98 : f32 to vector<8x6xf32>
    %263 = arith.select %151, %261, %262 : vector<8x6xi1>, vector<8x6xf32>
    %cst_99 = arith.constant dense<0xFF800000> : vector<8xf32>
    %264 = vector.multi_reduction <maximumf>, %263, %cst_99 [1] : vector<8x6xf32> to vector<8xf32>
    %265 = vector.shape_cast %264 : vector<8xf32> to vector<8x1xf32>
    %266 = vector.broadcast %265 : vector<8x1xf32> to vector<8x6xf32>
    %267 = arith.subf %263, %266 : vector<8x6xf32>
    %268 = math.exp %267 : vector<8x6xf32>
    %cst_100 = arith.constant 0.000000e+00 : f32
    %269 = vector.broadcast %cst_100 : f32 to vector<8x6xf32>
    %270 = arith.select %151, %268, %269 : vector<8x6xi1>, vector<8x6xf32>
    %cst_101 = arith.constant dense<0.000000e+00> : vector<8xf32>
    %271 = vector.multi_reduction <add>, %270, %cst_101 [1] : vector<8x6xf32> to vector<8xf32>
    %272 = vector.shape_cast %271 : vector<8xf32> to vector<8x1xf32>
    %cst_102 = arith.constant 1.000000e-30 : f32
    %273 = vector.broadcast %cst_102 : f32 to vector<8x1xf32>
    %274 = arith.maximumf %272, %273 : vector<8x1xf32>
    %275 = tpu.reciprocal %274 {approx = true} : vector<8x1xf32> -> vector<8x1xf32>
    %276 = arith.mulf %274, %275 : vector<8x1xf32>
    %cst_103 = arith.constant 2.000000e+00 : f32
    %277 = vector.broadcast %cst_103 : f32 to vector<8x1xf32>
    %278 = arith.subf %277, %276 : vector<8x1xf32>
    %279 = arith.mulf %275, %278 : vector<8x1xf32>
    %280 = vector.broadcast %279 : vector<8x1xf32> to vector<8x6xf32>
    %281 = arith.mulf %270, %280 : vector<8x6xf32>
    %c3_104 = arith.constant 3 : index
    %c0_105 = arith.constant 0 : index
    %c0_106 = arith.constant 0 : index
    %282 = vector.load %arg6[%c3_104, %c0_105, %c0_106] : memref<4x6x8xf32, #tpu.memory_space<vmem>>, vector<1x6x8xf32>
    %283 = vector.shape_cast %282 : vector<1x6x8xf32> to vector<6x8xf32>
    %cst_107 = arith.constant dense<0.000000e+00> : vector<8x8xf32>
    %284 = tpu.matmul %281, %283, %cst_107 {dimension_numbers = #tpu.dot_dimension_numbers<[1], [0], [0], [1], [0, 0, 1, 1], [], []>} : vector<8x6xf32>, vector<6x8xf32>, vector<8x8xf32> -> vector<8x8xf32>
    %285 = tpu.concatenate %185, %218, %251, %284 in 1 : vector<8x8xf32>, vector<8x8xf32>, vector<8x8xf32>, vector<8x8xf32> -> vector<8x32xf32>
    %286 = arith.addf %147, %285 : vector<8x32xf32>
    %cst_108 = arith.constant 0.000000e+00 : f32
    %287 = vector.broadcast %cst_108 : f32 to vector<8x32xf32>
    %288 = arith.maximumf %286, %287 : vector<8x32xf32>
    %cst_109 = arith.constant 0.000000e+00 : f32
    %289 = vector.broadcast %cst_109 : f32 to vector<8x96xf32>
    %290 = tpu.concatenate %288, %289 in 1 : vector<8x32xf32>, vector<8x96xf32> -> vector<8x128xf32>
    %c0_110 = arith.constant 0 : index
    %c0_111 = arith.constant 0 : index
    %291 = vector.load %arg10[%c0_110, %c0_111] : memref<8x128xf32, #tpu.memory_space<vmem>>, vector<8x128xf32>
    tpu.vector_store %arg10[%c0_110, %c0_111], %290 {strides = array<i32>} : memref<8x128xf32, #tpu.memory_space<vmem>>, vector<8x128xf32>,
    return
  }
  func.func @transform_0(%arg0: i32) -> (i32, i32) {
    %c0_i32 = arith.constant 0 : i32
    %c0_i32_0 = arith.constant 0 : i32
    return %arg0, %c0_i32 : i32, i32
  }
  func.func @transform_1(%arg0: i32) -> (i32, i32) {
    %c0_i32 = arith.constant 0 : i32
    %c0_i32_0 = arith.constant 0 : i32
    %c0_i32_1 = arith.constant 0 : i32
    return %c0_i32, %c0_i32_0 : i32, i32
  }
  func.func @transform_2(%arg0: i32) -> (i32, i32) {
    %c0_i32 = arith.constant 0 : i32
    %c0_i32_0 = arith.constant 0 : i32
    %c0_i32_1 = arith.constant 0 : i32
    return %c0_i32, %c0_i32_0 : i32, i32
  }
  func.func @transform_3(%arg0: i32) -> (i32, i32, i32) {
    %c0_i32 = arith.constant 0 : i32
    %c0_i32_0 = arith.constant 0 : i32
    %c0_i32_1 = arith.constant 0 : i32
    %c0_i32_2 = arith.constant 0 : i32
    return %c0_i32, %c0_i32_0, %c0_i32_1 : i32, i32, i32
  }
  func.func @transform_4(%arg0: i32) -> (i32, i32) {
    %c0_i32 = arith.constant 0 : i32
    %c0_i32_0 = arith.constant 0 : i32
    %c0_i32_1 = arith.constant 0 : i32
    return %c0_i32, %c0_i32_0 : i32, i32
  }
  func.func @transform_5(%arg0: i32) -> (i32, i32, i32) {
    %c0_i32 = arith.constant 0 : i32
    %c0_i32_0 = arith.constant 0 : i32
    %c0_i32_1 = arith.constant 0 : i32
    %c0_i32_2 = arith.constant 0 : i32
    return %c0_i32, %c0_i32_0, %c0_i32_1 : i32, i32, i32
  }
  func.func @transform_6(%arg0: i32) -> (i32, i32) {
    %c0_i32 = arith.constant 0 : i32
    %c0_i32_0 = arith.constant 0 : i32
    %c0_i32_1 = arith.constant 0 : i32
    return %c0_i32, %c0_i32_0 : i32, i32
  }
  func.func @transform_7(%arg0: i32) -> (i32, i32) {
    %c0_i32 = arith.constant 0 : i32
    %c0_i32_0 = arith.constant 0 : i32
    return %arg0, %c0_i32 : i32, i32
  }
  func.func @transform_8(%arg0: i32) -> (i32, i32) {
    %c0_i32 = arith.constant 0 : i32
    %c0_i32_0 = arith.constant 0 : i32
    return %arg0, %c0_i32 : i32, i32
  }
  func.func @transform_9(%arg0: i32) -> (i32, i32) {
    %c0_i32 = arith.constant 0 : i32
    %c0_i32_0 = arith.constant 0 : i32
    return %arg0, %c0_i32 : i32, i32
  }
}

</mosaic_0001>

<llo_original>
// kernel: _lambda_.9
$region0: #{_lambda_.9}
  #allocation0 [shape = 'u32[]', space=smem, size = 0x4, offset = 0x4, fixed_abs, tag = 'smem constant byte address 0x4 - core index']
  #allocation1 [shape = 'u32[144,128]{1,0:T(1,128)}', space=vmem, size = 0x12000, scoped, tag = 'internal scratch']
  %s0 = inlined_call_operand.vmem [shape: f32[6,12], index: 0, kind: input, shape index: {}]
  %s1 = inlined_call_operand.vmem [shape: f32[12,36], index: 1, kind: input, shape index: {}]
  %s2 = inlined_call_operand.vmem [shape: f32[1,36], index: 2, kind: input, shape index: {}]
  %s3 = inlined_call_operand.vmem [shape: f32[6,36], index: 3, kind: output, shape index: {}]
  %s4 = sld [smem:[#allocation0]]
  $region22: #{_lambda_.9} parent=0
    _
  %s6 = ssub.s32 1, %s4
  %s7 = scalar_select 0, %s6, %s4
  // Predicated region
  $region2: #{_lambda_.9} parent=0 // pred_check
    _
  $region3: #{_lambda_.9} parent=0 // pred_check_branch
    %9 = sbr.rel (0) target = $region5
  $region4: #{_lambda_.9} parent=0 // pred_region
    _
  $region5: #{_lambda_.9} parent=0 // pred_fallthru
    _
  // Predicated region
  $region6: #{_lambda_.9} parent=0 // pred_check
    _
  $region7: #{_lambda_.9} parent=0 // pred_check_branch
    %11 = sbr.rel (0) target = $region9
  $region8: #{_lambda_.9} parent=0 // pred_region
    _
  $region9: #{_lambda_.9} parent=0 // pred_fallthru
    _
  // Predicated region
  $region10: #{_lambda_.9} parent=0 // pred_check
    _
  $region11: #{_lambda_.9} parent=0 // pred_check_branch
    %13 = sbr.rel (0) target = $region13
  $region12: #{_lambda_.9} parent=0 // pred_region
    _
  $region13: #{_lambda_.9} parent=0 // pred_fallthru
    _
  %v14 = vld [vmem:[%s0] sm:$0x3f]
  %v15 = vld [vmem:[%s1] sm:$0xff]
  %v16 = vld [vmem:[%s1 + $0x8] sm:$0xf]
  %v17 = vld [vmem:[%s2] sm:$0x1]
  %v19 = vlaneseq
  %v20 = vshrl.u32 %v19, 7
  %v21 = vsub.s32 0, %v20
  %v22 = vrot.slane %v17, %v21
  %vm24 = vcmask 97280
  %v26 = vsel %vm24, %v14, 0
  %vm28 = vcmask 1043456
  %v30 = vsel %vm28, %v16, 0
  %32 = vmatprep.subr.mxu0 0.0
  %33 = vmatpush1.msra.mxu0 0.0
  %34 = vmatprep.subr.mxu0 0.0
  %35 = vmatpush1.msra.mxu0 0.0
  %36 = vmatprep.subr.mxu0 0.0
  %37 = vmatpush1.msra.mxu0 0.0
  %38 = vmatprep.subr.mxu0 0.0
  %39 = vmatpush1.msra.mxu0 0.0
  %40 = vmatprep.subr.mxu0 0.0
  %41 = vmatpush1.msra.mxu0 0.0
  %42 = vmatprep.subr.mxu0 0.0
  %43 = vmatpush1.msra.mxu0 0.0
  %44 = vmatprep.subr.mxu0 0.0
  %45 = vmatpush1.msra.mxu0 0.0
  %46 = vmatprep.subr.mxu0 0.0
  %47 = vmatpush1.msra.mxu0 0.0
  %48 = vmatprep.subr.mxu0 0.0
  %49 = vmatpush1.msra.mxu0 0.0
  %50 = vmatprep.subr.mxu0 0.0
  %51 = vmatpush1.msra.mxu0 0.0
  %52 = vmatprep.subr.mxu0 0.0
  %53 = vmatpush1.msra.mxu0 0.0
  %54 = vmatprep.subr.mxu0 0.0
  %55 = vmatpush1.msra.mxu0 0.0
  %56 = vmatprep.subr.mxu0 0.0
  %57 = vmatpush1.msra.mxu0 0.0
  %58 = vmatprep.subr.mxu0 0.0
  %59 = vmatpush1.msra.mxu0 0.0
  %60 = vmatprep.subr.mxu0 0.0
  %61 = vmatpush1.msra.mxu0 %v30
  %62 = vmatprep.subr.mxu0 0.0
  %63 = vmatpush1.msra.mxu0 %v15
  %64 = vmatprep.subr.mxu0 0.0
  %65 = vmatpush2.msra.mxu0 0.0
  %66 = vmatprep.subr.mxu0 0.0
  %67 = vmatpush2.msra.mxu0 0.0
  %68 = vmatprep.subr.mxu0 0.0
  %69 = vmatpush2.msra.mxu0 0.0
  %70 = vmatprep.subr.mxu0 0.0
  %71 = vmatpush2.msra.mxu0 0.0
  %72 = vmatprep.subr.mxu0 0.0
  %73 = vmatpush2.msra.mxu0 0.0
  %74 = vmatprep.subr.mxu0 0.0
  %75 = vmatpush2.msra.mxu0 0.0
  %76 = vmatprep.subr.mxu0 0.0
  %77 = vmatpush2.msra.mxu0 0.0
  %78 = vmatprep.subr.mxu0 0.0
  %79 = vmatpush2.msra.mxu0 0.0
  %80 = vmatprep.subr.mxu0 0.0
  %81 = vmatpush2.msra.mxu0 0.0
  %82 = vmatprep.subr.mxu0 0.0
  %83 = vmatpush2.msra.mxu0 0.0
  %84 = vmatprep.subr.mxu0 0.0
  %85 = vmatpush2.msra.mxu0 0.0
  %86 = vmatprep.subr.mxu0 0.0
  %87 = vmatpush2.msra.mxu0 0.0
  %88 = vmatprep.subr.mxu0 0.0
  %89 = vmatpush2.msra.mxu0 0.0
  %90 = vmatprep.subr.mxu0 0.0
  %91 = vmatpush2.msra.mxu0 0.0
  %92 = vmatprep.subr.mxu0 0.0
  %93 = vmatpush2.msra.mxu0 0.0
  %94 = vmatprep.subr.mxu0 0.0
  %95 = vmatpush2.msra.mxu0 0.0
  %96 = vmatprep.mubr.f32.mxu0 0.0
  %97 = vmatmul.mubr.f32.gmra.mxu0 %v26
  %v98 = vpop.f32.mrf.mxu0
  %v99 = vadd.f32 %v22, %v98
  %v100 = vpop.f32.mrf.mxu0
  %101 = vdwg.mxu0
  %vm102 = vcmask 291840
  %103 = vst.msk [vmem:[%s3] sm:$0x3f] %vm102, %v99
  // Predicated region
  $region14: #{_lambda_.9} parent=0 // pred_check
    _
  $region15: #{_lambda_.9} parent=0 // pred_check_branch
    %105 = sbr.rel (0) target = $region17
  $region16: #{_lambda_.9} parent=0 // pred_region
    _
  $region17: #{_lambda_.9} parent=0 // pred_fallthru
    _
  // Predicated region
  $region18: #{_lambda_.9} parent=0 // pred_check
    _
  $region19: #{_lambda_.9} parent=0 // pred_check_branch
    %107 = sbr.rel (0) target = $region21
  $region20: #{_lambda_.9} parent=0 // pred_region
    _
  $region21: #{_lambda_.9} parent=0 // pred_fallthru
    _

// kernel: _lambda_.10
$region0: #{_lambda_.10}
  #allocation0 [shape = 'u32[]', space=smem, size = 0x4, offset = 0x4, fixed_abs, tag = 'smem constant byte address 0x4 - core index']
  #allocation1 [shape = 'u32[144,128]{1,0:T(1,128)}', space=vmem, size = 0x12000, scoped, tag = 'internal scratch']
  %s0 = inlined_call_operand.vmem [shape: f32[8,16], index: 0, kind: input, shape index: {}]
  %s1 = inlined_call_operand.vmem [shape: f32[16,36], index: 1, kind: input, shape index: {}]
  %s2 = inlined_call_operand.vmem [shape: f32[1,36], index: 2, kind: input, shape index: {}]
  %s3 = inlined_call_operand.vmem [shape: f32[8,36], index: 3, kind: output, shape index: {}]
  %s4 = sld [smem:[#allocation0]]
  $region22: #{_lambda_.10} parent=0
    _
  %s6 = ssub.s32 1, %s4
  %s7 = scalar_select 0, %s6, %s4
  // Predicated region
  $region2: #{_lambda_.10} parent=0 // pred_check
    _
  $region3: #{_lambda_.10} parent=0 // pred_check_branch
    %9 = sbr.rel (0) target = $region5
  $region4: #{_lambda_.10} parent=0 // pred_region
    _
  $region5: #{_lambda_.10} parent=0 // pred_fallthru
    _
  // Predicated region
  $region6: #{_lambda_.10} parent=0 // pred_check
    _
  $region7: #{_lambda_.10} parent=0 // pred_check_branch
    %11 = sbr.rel (0) target = $region9
  $region8: #{_lambda_.10} parent=0 // pred_region
    _
  $region9: #{_lambda_.10} parent=0 // pred_fallthru
    _
  // Predicated region
  $region10: #{_lambda_.10} parent=0 // pred_check
    _
  $region11: #{_lambda_.10} parent=0 // pred_check_branch
    %13 = sbr.rel (0) target = $region13
  $region12: #{_lambda_.10} parent=0 // pred_region
    _
  $region13: #{_lambda_.10} parent=0 // pred_fallthru
    _
  %v14 = vld [vmem:[%s0] sm:$0xff]
  %v15 = vld [vmem:[%s1] sm:$0xff]
  %v16 = vld [vmem:[%s1 + $0x8] sm:$0xff]
  %v17 = vld [vmem:[%s2] sm:$0x1]
  %v19 = vlaneseq
  %v20 = vshrl.u32 %v19, 7
  %v21 = vsub.s32 0, %v20
  %v22 = vrot.slane %v17, %v21
  %vm24 = vcmask 130048
  %v26 = vsel %vm24, %v14, 0
  %28 = vmatprep.subr.mxu0 0.0
  %29 = vmatpush1.msra.mxu0 0.0
  %30 = vmatprep.subr.mxu0 0.0
  %31 = vmatpush1.msra.mxu0 0.0
  %32 = vmatprep.subr.mxu0 0.0
  %33 = vmatpush1.msra.mxu0 0.0
  %34 = vmatprep.subr.mxu0 0.0
  %35 = vmatpush1.msra.mxu0 0.0
  %36 = vmatprep.subr.mxu0 0.0
  %37 = vmatpush1.msra.mxu0 0.0
  %38 = vmatprep.subr.mxu0 0.0
  %39 = vmatpush1.msra.mxu0 0.0
  %40 = vmatprep.subr.mxu0 0.0
  %41 = vmatpush1.msra.mxu0 0.0
  %42 = vmatprep.subr.mxu0 0.0
  %43 = vmatpush1.msra.mxu0 0.0
  %44 = vmatprep.subr.mxu0 0.0
  %45 = vmatpush1.msra.mxu0 0.0
  %46 = vmatprep.subr.mxu0 0.0
  %47 = vmatpush1.msra.mxu0 0.0
  %48 = vmatprep.subr.mxu0 0.0
  %49 = vmatpush1.msra.mxu0 0.0
  %50 = vmatprep.subr.mxu0 0.0
  %51 = vmatpush1.msra.mxu0 0.0
  %52 = vmatprep.subr.mxu0 0.0
  %53 = vmatpush1.msra.mxu0 0.0
  %54 = vmatprep.subr.mxu0 0.0
  %55 = vmatpush1.msra.mxu0 0.0
  %56 = vmatprep.subr.mxu0 0.0
  %57 = vmatpush1.msra.mxu0 %v16
  %58 = vmatprep.subr.mxu0 0.0
  %59 = vmatpush1.msra.mxu0 %v15
  %60 = vmatprep.subr.mxu0 0.0
  %61 = vmatpush2.msra.mxu0 0.0
  %62 = vmatprep.subr.mxu0 0.0
  %63 = vmatpush2.msra.mxu0 0.0
  %64 = vmatprep.subr.mxu0 0.0
  %65 = vmatpush2.msra.mxu0 0.0
  %66 = vmatprep.subr.mxu0 0.0
  %67 = vmatpush2.msra.mxu0 0.0
  %68 = vmatprep.subr.mxu0 0.0
  %69 = vmatpush2.msra.mxu0 0.0
  %70 = vmatprep.subr.mxu0 0.0
  %71 = vmatpush2.msra.mxu0 0.0
  %72 = vmatprep.subr.mxu0 0.0
  %73 = vmatpush2.msra.mxu0 0.0
  %74 = vmatprep.subr.mxu0 0.0
  %75 = vmatpush2.msra.mxu0 0.0
  %76 = vmatprep.subr.mxu0 0.0
  %77 = vmatpush2.msra.mxu0 0.0
  %78 = vmatprep.subr.mxu0 0.0
  %79 = vmatpush2.msra.mxu0 0.0
  %80 = vmatprep.subr.mxu0 0.0
  %81 = vmatpush2.msra.mxu0 0.0
  %82 = vmatprep.subr.mxu0 0.0
  %83 = vmatpush2.msra.mxu0 0.0
  %84 = vmatprep.subr.mxu0 0.0
  %85 = vmatpush2.msra.mxu0 0.0
  %86 = vmatprep.subr.mxu0 0.0
  %87 = vmatpush2.msra.mxu0 0.0
  %88 = vmatprep.subr.mxu0 0.0
  %89 = vmatpush2.msra.mxu0 0.0
  %90 = vmatprep.subr.mxu0 0.0
  %91 = vmatpush2.msra.mxu0 0.0
  %92 = vmatprep.mubr.f32.mxu0 0.0
  %93 = vmatmul.mubr.f32.gmra.mxu0 %v26
  %v94 = vpop.f32.mrf.mxu0
  %v95 = vadd.f32 %v22, %v94
  %v96 = vpop.f32.mrf.mxu0
  %97 = vdwg.mxu0
  %vm98 = vcmask 293888
  %99 = vst.msk [vmem:[%s3] sm:$0xff] %vm98, %v95
  // Predicated region
  $region14: #{_lambda_.10} parent=0 // pred_check
    _
  $region15: #{_lambda_.10} parent=0 // pred_check_branch
    %101 = sbr.rel (0) target = $region17
  $region16: #{_lambda_.10} parent=0 // pred_region
    _
  $region17: #{_lambda_.10} parent=0 // pred_fallthru
    _
  // Predicated region
  $region18: #{_lambda_.10} parent=0 // pred_check
    _
  $region19: #{_lambda_.10} parent=0 // pred_check_branch
    %103 = sbr.rel (0) target = $region21
  $region20: #{_lambda_.10} parent=0 // pred_region
    _
  $region21: #{_lambda_.10} parent=0 // pred_fallthru
    _

// kernel: _lambda_.11
$region0: #{_lambda_.11}
  #allocation0 [shape = 'u32[]', space=smem, size = 0x4, offset = 0x4, fixed_abs, tag = 'smem constant byte address 0x4 - core index']
  #allocation1 [shape = 'u32[144,128]{1,0:T(1,128)}', space=vmem, size = 0x12000, scoped, tag = 'internal scratch']
  %s0 = inlined_call_operand.vmem [shape: f32[6,12], index: 0, kind: input, shape index: {}]
  %s1 = inlined_call_operand.vmem [shape: f32[12,40], index: 1, kind: input, shape index: {}]
  %s2 = inlined_call_operand.vmem [shape: f32[1,40], index: 2, kind: input, shape index: {}]
  %s3 = inlined_call_operand.vmem [shape: f32[4,6,8], index: 3, kind: input, shape index: {}]
  %s4 = inlined_call_operand.vmem [shape: f32[4,6], index: 4, kind: input, shape index: {}]
  %s5 = inlined_call_operand.vmem [shape: f32[4,8,8], index: 5, kind: input, shape index: {}]
  %s6 = inlined_call_operand.vmem [shape: f32[4,8], index: 6, kind: input, shape index: {}]
  %s7 = inlined_call_operand.vmem [shape: s8[6,6], index: 7, kind: input, shape index: {}]
  %s8 = inlined_call_operand.vmem [shape: s8[6,8], index: 8, kind: input, shape index: {}]
  %s9 = inlined_call_operand.hbm [shape: f32[6,128], index: 9, kind: output, shape index: {}]
  %s10 = sld [smem:[#allocation0]]
  $region46: #{_lambda_.11} parent=0
    _
  %s12 = ssub.s32 1, %s10
  %s13 = scalar_select 0, %s12, %s10
  $region1: #{_lambda_.11} parent=0
    #allocation2 [shape = 'u8[4096]{0}', space=vmem, size = 0x1000, scoped, tag = 'output window, operand 0, single buffered']
    #allocation3 [shape = 's32[1]{0}', space=sflag, size = 0x4, scoped, tag = 'scoped memory for _lambda_.11']
    %14 = vsyncpa [#allocation3], 0
    // Predicated region
    $region2: #{_lambda_.11} parent=1 // pred_check
      _
    $region3: #{_lambda_.11} parent=1 // pred_check_branch
      %16 = sbr.rel (0) target = $region5
    $region4: #{_lambda_.11} parent=1 // pred_region
      _
    $region5: #{_lambda_.11} parent=1 // pred_fallthru
      _
    // Predicated region
    $region6: #{_lambda_.11} parent=1 // pred_check
      _
    $region7: #{_lambda_.11} parent=1 // pred_check_branch
      %18 = sbr.rel (0) target = $region9
    $region8: #{_lambda_.11} parent=1 // pred_region
      _
    $region9: #{_lambda_.11} parent=1 // pred_fallthru
      _
    // Predicated region
    $region10: #{_lambda_.11} parent=1 // pred_check
      _
    $region11: #{_lambda_.11} parent=1 // pred_check_branch
      %20 = sbr.rel (0) target = $region13
    $region12: #{_lambda_.11} parent=1 // pred_region
      _
    $region13: #{_lambda_.11} parent=1 // pred_fallthru
      _
    // Predicated region
    $region14: #{_lambda_.11} parent=1 // pred_check
      _
    $region15: #{_lambda_.11} parent=1 // pred_check_branch
      %22 = sbr.rel (0) target = $region17
    $region16: #{_lambda_.11} parent=1 // pred_region
      _
    $region17: #{_lambda_.11} parent=1 // pred_fallthru
      _
    // Predicated region
    $region18: #{_lambda_.11} parent=1 // pred_check
      _
    $region19: #{_lambda_.11} parent=1 // pred_check_branch
      %24 = sbr.rel (0) target = $region21
    $region20: #{_lambda_.11} parent=1 // pred_region
      _
    $region21: #{_lambda_.11} parent=1 // pred_fallthru
      _
    // Predicated region
    $region22: #{_lambda_.11} parent=1 // pred_check
      _
    $region23: #{_lambda_.11} parent=1 // pred_check_branch
      %26 = sbr.rel (0) target = $region25
    $region24: #{_lambda_.11} parent=1 // pred_region
      _
    $region25: #{_lambda_.11} parent=1 // pred_fallthru
      _
    // Predicated region
    $region26: #{_lambda_.11} parent=1 // pred_check
      _
    $region27: #{_lambda_.11} parent=1 // pred_check_branch
      %28 = sbr.rel (0) target = $region29
    $region28: #{_lambda_.11} parent=1 // pred_region
      _
    $region29: #{_lambda_.11} parent=1 // pred_fallthru
      _
    // Predicated region
    $region30: #{_lambda_.11} parent=1 // pred_check
      _
    $region31: #{_lambda_.11} parent=1 // pred_check_branch
      %30 = sbr.rel (0) target = $region33
    $region32: #{_lambda_.11} parent=1 // pred_region
      _
    $region33: #{_lambda_.11} parent=1 // pred_fallthru
      _
    // Predicated region
    $region34: #{_lambda_.11} parent=1 // pred_check
      _
    $region35: #{_lambda_.11} parent=1 // pred_check_branch
      %32 = sbr.rel (0) target = $region37
    $region36: #{_lambda_.11} parent=1 // pred_region
      _
    $region37: #{_lambda_.11} parent=1 // pred_fallthru
      _
    %v33 = vld [vmem:[%s0] sm:$0x3f]
    %v34 = vld [vmem:[%s1] sm:$0xff]
    %v35 = vld [vmem:[%s1 + $0x8] sm:$0xf]
    %v36 = vld [vmem:[%s2] sm:$0x1]
    %v38 = vlaneseq
    %v39 = vshrl.u32 %v38, 7
    %v40 = vsub.s32 0, %v39
    %v41 = vrot.slane %v36, %v40
    %vm43 = vcmask 97280
    %v45 = vsel %vm43, %v33, 0
    %vm47 = vcmask 1043456
    %v49 = vsel %vm47, %v35, 0
    %51 = vmatprep.subr.mxu0 0.0
    %52 = vmatpush1.msra.mxu0 0.0
    %53 = vmatprep.subr.mxu0 0.0
    %54 = vmatpush1.msra.mxu0 0.0
    %55 = vmatprep.subr.mxu0 0.0
    %56 = vmatpush1.msra.mxu0 0.0
    %57 = vmatprep.subr.mxu0 0.0
    %58 = vmatpush1.msra.mxu0 0.0
    %59 = vmatprep.subr.mxu0 0.0
    %60 = vmatpush1.msra.mxu0 0.0
    %61 = vmatprep.subr.mxu0 0.0
    %62 = vmatpush1.msra.mxu0 0.0
    %63 = vmatprep.subr.mxu0 0.0
    %64 = vmatpush1.msra.mxu0 0.0
    %65 = vmatprep.subr.mxu0 0.0
    %66 = vmatpush1.msra.mxu0 0.0
    %67 = vmatprep.subr.mxu0 0.0
    %68 = vmatpush1.msra.mxu0 0.0
    %69 = vmatprep.subr.mxu0 0.0
    %70 = vmatpush1.msra.mxu0 0.0
    %71 = vmatprep.subr.mxu0 0.0
    %72 = vmatpush1.msra.mxu0 0.0
    %73 = vmatprep.subr.mxu0 0.0
    %74 = vmatpush1.msra.mxu0 0.0
    %75 = vmatprep.subr.mxu0 0.0
    %76 = vmatpush1.msra.mxu0 0.0
    %77 = vmatprep.subr.mxu0 0.0
    %78 = vmatpush1.msra.mxu0 0.0
    %79 = vmatprep.subr.mxu0 0.0
    %80 = vmatpush1.msra.mxu0 %v49
    %81 = vmatprep.subr.mxu0 0.0
    %82 = vmatpush1.msra.mxu0 %v34
    %83 = vmatprep.subr.mxu0 0.0
    %84 = vmatpush2.msra.mxu0 0.0
    %85 = vmatprep.subr.mxu0 0.0
    %86 = vmatpush2.msra.mxu0 0.0
    %87 = vmatprep.subr.mxu0 0.0
    %88 = vmatpush2.msra.mxu0 0.0
    %89 = vmatprep.subr.mxu0 0.0
    %90 = vmatpush2.msra.mxu0 0.0
    %91 = vmatprep.subr.mxu0 0.0
    %92 = vmatpush2.msra.mxu0 0.0
    %93 = vmatprep.subr.mxu0 0.0
    %94 = vmatpush2.msra.mxu0 0.0
    %95 = vmatprep.subr.mxu0 0.0
    %96 = vmatpush2.msra.mxu0 0.0
    %97 = vmatprep.subr.mxu0 0.0
    %98 = vmatpush2.msra.mxu0 0.0
    %99 = vmatprep.subr.mxu0 0.0
    %100 = vmatpush2.msra.mxu0 0.0
    %101 = vmatprep.subr.mxu0 0.0
    %102 = vmatpush2.msra.mxu0 0.0
    %103 = vmatprep.subr.mxu0 0.0
    %104 = vmatpush2.msra.mxu0 0.0
    %105 = vmatprep.subr.mxu0 0.0
    %106 = vmatpush2.msra.mxu0 0.0
    %107 = vmatprep.subr.mxu0 0.0
    %108 = vmatpush2.msra.mxu0 0.0
    %109 = vmatprep.subr.mxu0 0.0
    %110 = vmatpush2.msra.mxu0 0.0
    %111 = vmatprep.subr.mxu0 0.0
    %112 = vmatpush2.msra.mxu0 0.0
    %113 = vmatprep.subr.mxu0 0.0
    %114 = vmatpush2.msra.mxu0 0.0
    %115 = vmatprep.mubr.f32.mxu0 0.0
    %116 = vmatmul.mubr.f32.gmra.mxu0 %v45
    %v117 = vpop.f32.mrf.mxu0
    %v118 = vadd.f32 %v41, %v117
    %v119 = vpop.f32.mrf.mxu0
    %120 = vdwg.mxu0
    %v121 = vld [vmem:[%s7] sm:$0x3]
    %v122 = vunpack.c.0.s8 %v121
    %v123 = vcvt.s32.f32 %v122
    %vm124 = vcmp.gt.f32.partialorder %v123, 0.0
    %v125 = vld [vmem:[%s4] sm:$0xf]
    %127 = vset.pattern.permute.xlu0 32
    %128 = vperm.xlu0 %127, %v118
    %v129 = vpop.permute.xlu0 %128
    %v131 = vlaneseq
    %v132 = vshrl.u32 %v131, 7
    %v133 = vsub.s32 0, %v132
    %v134 = vrot.slane %v125, %v133
    %v135 = vadd.f32 %v129, %v134
    %vm136 = vcmp.gt.f32.partialorder %v135, 0.0
    %v137 = vmul.f32 %v135, 0.2
    %v138 = vsel %vm136, %v135, %v137
    %v139 = vsel %vm124, %v138, -1e+30
    %vm140 = vcmask 46080
    %v141 = vsel %vm140, %v139, -inf
    %142 = vmax.xlane.f32.xlu0 %v141
    %v143 = vpop.xlane.xlu0 %142
    %v144 = vsub.f32 %v139, %v143
    %v145 = vmul.f32 %v144, 1.442695
    %v146 = vpow.pop %v145
    %v147 = vsel %vm124, %v146, 0.0
    %v148 = vsel %vm140, %v147, 0.0
    %149 = vadd.xlane.f32.xlu0 %v148
    %v150 = vpop.xlane.xlu0 %149
    %v151 = vmax.f32 %v150, 1e-30
    %v152 = vrcp.pop %v151
    %v153 = vmul.f32 %v151, %v152
    %v154 = vsub.f32 2.0, %v153
    %v155 = vmul.f32 %v152, %v154
    %v156 = vmul.f32 %v147, %v155
    %v157 = vld [vmem:[%s3] sm:$0x3f]
    %vm158 = vcmask 48128
    %v160 = vsel %vm158, %v156, 0
    %vm162 = vcmask 1045504
    %v164 = vsel %vm162, %v157, 0
    %166 = vmatprep.subr.mxu0 0.0
    %167 = vmatpush1.msra.mxu0 0.0
    %168 = vmatprep.subr.mxu0 0.0
    %169 = vmatpush1.msra.mxu0 0.0
    %170 = vmatprep.subr.mxu0 0.0
    %171 = vmatpush1.msra.mxu0 0.0
    %172 = vmatprep.subr.mxu0 0.0
    %173 = vmatpush1.msra.mxu0 0.0
    %174 = vmatprep.subr.mxu0 0.0
    %175 = vmatpush1.msra.mxu0 0.0
    %176 = vmatprep.subr.mxu0 0.0
    %177 = vmatpush1.msra.mxu0 0.0
    %178 = vmatprep.subr.mxu0 0.0
    %179 = vmatpush1.msra.mxu0 0.0
    %180 = vmatprep.subr.mxu0 0.0
    %181 = vmatpush1.msra.mxu0 0.0
    %182 = vmatprep.subr.mxu0 0.0
    %183 = vmatpush1.msra.mxu0 0.0
    %184 = vmatprep.subr.mxu0 0.0
    %185 = vmatpush1.msra.mxu0 0.0
    %186 = vmatprep.subr.mxu0 0.0
    %187 = vmatpush1.msra.mxu0 0.0
    %188 = vmatprep.subr.mxu0 0.0
    %189 = vmatpush1.msra.mxu0 0.0
    %190 = vmatprep.subr.mxu0 0.0
    %191 = vmatpush1.msra.mxu0 0.0
    %192 = vmatprep.subr.mxu0 0.0
    %193 = vmatpush1.msra.mxu0 0.0
    %194 = vmatprep.subr.mxu0 0.0
    %195 = vmatpush1.msra.mxu0 0.0
    %196 = vmatprep.subr.mxu0 0.0
    %197 = vmatpush1.msra.mxu0 %v164
    %198 = vmatprep.subr.mxu0 0.0
    %199 = vmatpush2.msra.mxu0 0.0
    %200 = vmatprep.subr.mxu0 0.0
    %201 = vmatpush2.msra.mxu0 0.0
    %202 = vmatprep.subr.mxu0 0.0
    %203 = vmatpush2.msra.mxu0 0.0
    %204 = vmatprep.subr.mxu0 0.0
    %205 = vmatpush2.msra.mxu0 0.0
    %206 = vmatprep.subr.mxu0 0.0
    %207 = vmatpush2.msra.mxu0 0.0
    %208 = vmatprep.subr.mxu0 0.0
    %209 = vmatpush2.msra.mxu0 0.0
    %210 = vmatprep.subr.mxu0 0.0
    %211 = vmatpush2.msra.mxu0 0.0
    %212 = vmatprep.subr.mxu0 0.0
    %213 = vmatpush2.msra.mxu0 0.0
    %214 = vmatprep.subr.mxu0 0.0
    %215 = vmatpush2.msra.mxu0 0.0
    %216 = vmatprep.subr.mxu0 0.0
    %217 = vmatpush2.msra.mxu0 0.0
    %218 = vmatprep.subr.mxu0 0.0
    %219 = vmatpush2.msra.mxu0 0.0
    %220 = vmatprep.subr.mxu0 0.0
    %221 = vmatpush2.msra.mxu0 0.0
    %222 = vmatprep.subr.mxu0 0.0
    %223 = vmatpush2.msra.mxu0 0.0
    %224 = vmatprep.subr.mxu0 0.0
    %225 = vmatpush2.msra.mxu0 0.0
    %226 = vmatprep.subr.mxu0 0.0
    %227 = vmatpush2.msra.mxu0 0.0
    %228 = vmatprep.subr.mxu0 0.0
    %229 = vmatpush2.msra.mxu0 0.0
    %230 = vmatprep.mubr.f32.mxu0 0.0
    %231 = vmatmul.mubr.f32.gmra.mxu0 %v160
    %v232 = vpop.f32.mrf.mxu0
    %v233 = vadd.f32 0.0, %v232
    %v234 = vpop.f32.mrf.mxu0
    %235 = vdwg.mxu0
    %236 = vset.pattern.permute.xlu0 33
    %237 = vperm.xlu0 %236, %v118
    %v238 = vpop.permute.xlu0 %237
    %v240 = vlaneseq
    %v241 = vshrl.u32 %v240, 7
    %v242 = vsub.s32 1, %v241
    %v243 = vrot.slane %v125, %v242
    %v244 = vadd.f32 %v238, %v243
    %vm245 = vcmp.gt.f32.partialorder %v244, 0.0
    %v246 = vmul.f32 %v244, 0.2
    %v247 = vsel %vm245, %v244, %v246
    %v248 = vsel %vm124, %v247, -1e+30
    %v249 = vsel %vm140, %v248, -inf
    %250 = vmax.xlane.f32.xlu0 %v249
    %v251 = vpop.xlane.xlu0 %250
    %v252 = vsub.f32 %v248, %v251
    %v253 = vmul.f32 %v252, 1.442695
    %v254 = vpow.pop %v253
    %v255 = vsel %vm124, %v254, 0.0
    %v256 = vsel %vm140, %v255, 0.0
    %257 = vadd.xlane.f32.xlu0 %v256
    %v258 = vpop.xlane.xlu0 %257
    %v259 = vmax.f32 %v258, 1e-30
    %v260 = vrcp.pop %v259
    %v261 = vmul.f32 %v259, %v260
    %v262 = vsub.f32 2.0, %v261
    %v263 = vmul.f32 %v260, %v262
    %v264 = vmul.f32 %v255, %v263
    %s265 = scalar_lea.vmem %s3, 8
    %v266 = vld [vmem:[%s265] sm:$0x3f]
    %v268 = vsel %vm158, %v264, 0
    %v271 = vsel %vm162, %v266, 0
    %273 = vmatprep.subr.mxu0 0.0
    %274 = vmatpush1.msra.mxu0 0.0
    %275 = vmatprep.subr.mxu0 0.0
    %276 = vmatpush1.msra.mxu0 0.0
    %277 = vmatprep.subr.mxu0 0.0
    %278 = vmatpush1.msra.mxu0 0.0
    %279 = vmatprep.subr.mxu0 0.0
    %280 = vmatpush1.msra.mxu0 0.0
    %281 = vmatprep.subr.mxu0 0.0
    %282 = vmatpush1.msra.mxu0 0.0
    %283 = vmatprep.subr.mxu0 0.0
    %284 = vmatpush1.msra.mxu0 0.0
    %285 = vmatprep.subr.mxu0 0.0
    %286 = vmatpush1.msra.mxu0 0.0
    %287 = vmatprep.subr.mxu0 0.0
    %288 = vmatpush1.msra.mxu0 0.0
    %289 = vmatprep.subr.mxu0 0.0
    %290 = vmatpush1.msra.mxu0 0.0
    %291 = vmatprep.subr.mxu0 0.0
    %292 = vmatpush1.msra.mxu0 0.0
    %293 = vmatprep.subr.mxu0 0.0
    %294 = vmatpush1.msra.mxu0 0.0
    %295 = vmatprep.subr.mxu0 0.0
    %296 = vmatpush1.msra.mxu0 0.0
    %297 = vmatprep.subr.mxu0 0.0
    %298 = vmatpush1.msra.mxu0 0.0
    %299 = vmatprep.subr.mxu0 0.0
    %300 = vmatpush1.msra.mxu0 0.0
    %301 = vmatprep.subr.mxu0 0.0
    %302 = vmatpush1.msra.mxu0 0.0
    %303 = vmatprep.subr.mxu0 0.0
    %304 = vmatpush1.msra.mxu0 %v271
    %305 = vmatprep.subr.mxu0 0.0
    %306 = vmatpush2.msra.mxu0 0.0
    %307 = vmatprep.subr.mxu0 0.0
    %308 = vmatpush2.msra.mxu0 0.0
    %309 = vmatprep.subr.mxu0 0.0
    %310 = vmatpush2.msra.mxu0 0.0
    %311 = vmatprep.subr.mxu0 0.0
    %312 = vmatpush2.msra.mxu0 0.0
    %313 = vmatprep.subr.mxu0 0.0
    %314 = vmatpush2.msra.mxu0 0.0
    %315 = vmatprep.subr.mxu0 0.0
    %316 = vmatpush2.msra.mxu0 0.0
    %317 = vmatprep.subr.mxu0 0.0
    %318 = vmatpush2.msra.mxu0 0.0
    %319 = vmatprep.subr.mxu0 0.0
    %320 = vmatpush2.msra.mxu0 0.0
    %321 = vmatprep.subr.mxu0 0.0
    %322 = vmatpush2.msra.mxu0 0.0
    %323 = vmatprep.subr.mxu0 0.0
    %324 = vmatpush2.msra.mxu0 0.0
    %325 = vmatprep.subr.mxu0 0.0
    %326 = vmatpush2.msra.mxu0 0.0
    %327 = vmatprep.subr.mxu0 0.0
    %328 = vmatpush2.msra.mxu0 0.0
    %329 = vmatprep.subr.mxu0 0.0
    %330 = vmatpush2.msra.mxu0 0.0
    %331 = vmatprep.subr.mxu0 0.0
    %332 = vmatpush2.msra.mxu0 0.0
    %333 = vmatprep.subr.mxu0 0.0
    %334 = vmatpush2.msra.mxu0 0.0
    %335 = vmatprep.subr.mxu0 0.0
    %336 = vmatpush2.msra.mxu0 0.0
    %337 = vmatprep.mubr.f32.mxu0 0.0
    %338 = vmatmul.mubr.f32.gmra.mxu0 %v268
    %v339 = vpop.f32.mrf.mxu0
    %v340 = vadd.f32 0.0, %v339
    %v341 = vpop.f32.mrf.mxu0
    %342 = vdwg.mxu0
    %343 = vset.pattern.permute.xlu0 34
    %344 = vperm.xlu0 %343, %v118
    %v345 = vpop.permute.xlu0 %344
    %v347 = vlaneseq
    %v348 = vshrl.u32 %v347, 7
    %v349 = vsub.s32 2, %v348
    %v350 = vrot.slane %v125, %v349
    %v351 = vadd.f32 %v345, %v350
    %vm352 = vcmp.gt.f32.partialorder %v351, 0.0
    %v353 = vmul.f32 %v351, 0.2
    %v354 = vsel %vm352, %v351, %v353
    %v355 = vsel %vm124, %v354, -1e+30
    %v356 = vsel %vm140, %v355, -inf
    %357 = vmax.xlane.f32.xlu0 %v356
    %v358 = vpop.xlane.xlu0 %357
    %v359 = vsub.f32 %v355, %v358
    %v360 = vmul.f32 %v359, 1.442695
    %v361 = vpow.pop %v360
    %v362 = vsel %vm124, %v361, 0.0
    %v363 = vsel %vm140, %v362, 0.0
    %364 = vadd.xlane.f32.xlu0 %v363
    %v365 = vpop.xlane.xlu0 %364
    %v366 = vmax.f32 %v365, 1e-30
    %v367 = vrcp.pop %v366
    %v368 = vmul.f32 %v366, %v367
    %v369 = vsub.f32 2.0, %v368
    %v370 = vmul.f32 %v367, %v369
    %v371 = vmul.f32 %v362, %v370
    %s372 = scalar_lea.vmem %s3, 16
    %v373 = vld [vmem:[%s372] sm:$0x3f]
    %v375 = vsel %vm158, %v371, 0
    %v378 = vsel %vm162, %v373, 0
    %380 = vmatprep.subr.mxu0 0.0
    %381 = vmatpush1.msra.mxu0 0.0
    %382 = vmatprep.subr.mxu0 0.0
    %383 = vmatpush1.msra.mxu0 0.0
    %384 = vmatprep.subr.mxu0 0.0
    %385 = vmatpush1.msra.mxu0 0.0
    %386 = vmatprep.subr.mxu0 0.0
    %387 = vmatpush1.msra.mxu0 0.0
    %388 = vmatprep.subr.mxu0 0.0
    %389 = vmatpush1.msra.mxu0 0.0
    %390 = vmatprep.subr.mxu0 0.0
    %391 = vmatpush1.msra.mxu0 0.0
    %392 = vmatprep.subr.mxu0 0.0
    %393 = vmatpush1.msra.mxu0 0.0
    %394 = vmatprep.subr.mxu0 0.0
    %395 = vmatpush1.msra.mxu0 0.0
    %396 = vmatprep.subr.mxu0 0.0
    %397 = vmatpush1.msra.mxu0 0.0
    %398 = vmatprep.subr.mxu0 0.0
    %399 = vmatpush1.msra.mxu0 0.0
    %400 = vmatprep.subr.mxu0 0.0
    %401 = vmatpush1.msra.mxu0 0.0
    %402 = vmatprep.subr.mxu0 0.0
    %403 = vmatpush1.msra.mxu0 0.0
    %404 = vmatprep.subr.mxu0 0.0
    %405 = vmatpush1.msra.mxu0 0.0
    %406 = vmatprep.subr.mxu0 0.0
    %407 = vmatpush1.msra.mxu0 0.0
    %408 = vmatprep.subr.mxu0 0.0
    %409 = vmatpush1.msra.mxu0 0.0
    %410 = vmatprep.subr.mxu0 0.0
    %411 = vmatpush1.msra.mxu0 %v378
    %412 = vmatprep.subr.mxu0 0.0
    %413 = vmatpush2.msra.mxu0 0.0
    %414 = vmatprep.subr.mxu0 0.0
    %415 = vmatpush2.msra.mxu0 0.0
    %416 = vmatprep.subr.mxu0 0.0
    %417 = vmatpush2.msra.mxu0 0.0
    %418 = vmatprep.subr.mxu0 0.0
    %419 = vmatpush2.msra.mxu0 0.0
    %420 = vmatprep.subr.mxu0 0.0
    %421 = vmatpush2.msra.mxu0 0.0
    %422 = vmatprep.subr.mxu0 0.0
    %423 = vmatpush2.msra.mxu0 0.0
    %424 = vmatprep.subr.mxu0 0.0
    %425 = vmatpush2.msra.mxu0 0.0
    %426 = vmatprep.subr.mxu0 0.0
    %427 = vmatpush2.msra.mxu0 0.0
    %428 = vmatprep.subr.mxu0 0.0
    %429 = vmatpush2.msra.mxu0 0.0
    %430 = vmatprep.subr.mxu0 0.0
    %431 = vmatpush2.msra.mxu0 0.0
    %432 = vmatprep.subr.mxu0 0.0
    %433 = vmatpush2.msra.mxu0 0.0
    %434 = vmatprep.subr.mxu0 0.0
    %435 = vmatpush2.msra.mxu0 0.0
    %436 = vmatprep.subr.mxu0 0.0
    %437 = vmatpush2.msra.mxu0 0.0
    %438 = vmatprep.subr.mxu0 0.0
    %439 = vmatpush2.msra.mxu0 0.0
    %440 = vmatprep.subr.mxu0 0.0
    %441 = vmatpush2.msra.mxu0 0.0
    %442 = vmatprep.subr.mxu0 0.0
    %443 = vmatpush2.msra.mxu0 0.0
    %444 = vmatprep.mubr.f32.mxu0 0.0
    %445 = vmatmul.mubr.f32.gmra.mxu0 %v375
    %v446 = vpop.f32.mrf.mxu0
    %v447 = vadd.f32 0.0, %v446
    %v448 = vpop.f32.mrf.mxu0
    %449 = vdwg.mxu0
    %450 = vset.pattern.permute.xlu0 35
    %451 = vperm.xlu0 %450, %v118
    %v452 = vpop.permute.xlu0 %451
    %v454 = vlaneseq
    %v455 = vshrl.u32 %v454, 7
    %v456 = vsub.s32 3, %v455
    %v457 = vrot.slane %v125, %v456
    %v458 = vadd.f32 %v452, %v457
    %vm459 = vcmp.gt.f32.partialorder %v458, 0.0
    %v460 = vmul.f32 %v458, 0.2
    %v461 = vsel %vm459, %v458, %v460
    %v462 = vsel %vm124, %v461, -1e+30
    %v463 = vsel %vm140, %v462, -inf
    %464 = vmax.xlane.f32.xlu0 %v463
    %v465 = vpop.xlane.xlu0 %464
    %v466 = vsub.f32 %v462, %v465
    %v467 = vmul.f32 %v466, 1.442695
    %v468 = vpow.pop %v467
    %v469 = vsel %vm124, %v468, 0.0
    %v470 = vsel %vm140, %v469, 0.0
    %471 = vadd.xlane.f32.xlu0 %v470
    %v472 = vpop.xlane.xlu0 %471
    %v473 = vmax.f32 %v472, 1e-30
    %v474 = vrcp.pop %v473
    %v475 = vmul.f32 %v473, %v474
    %v476 = vsub.f32 2.0, %v475
    %v477 = vmul.f32 %v474, %v476
    %v478 = vmul.f32 %v469, %v477
    %s479 = scalar_lea.vmem %s3, 24
    %v480 = vld [vmem:[%s479] sm:$0x3f]
    %v482 = vsel %vm158, %v478, 0
    %v485 = vsel %vm162, %v480, 0
    %487 = vmatprep.subr.mxu0 0.0
    %488 = vmatpush1.msra.mxu0 0.0
    %489 = vmatprep.subr.mxu0 0.0
    %490 = vmatpush1.msra.mxu0 0.0
    %491 = vmatprep.subr.mxu0 0.0
    %492 = vmatpush1.msra.mxu0 0.0
    %493 = vmatprep.subr.mxu0 0.0
    %494 = vmatpush1.msra.mxu0 0.0
    %495 = vmatprep.subr.mxu0 0.0
    %496 = vmatpush1.msra.mxu0 0.0
    %497 = vmatprep.subr.mxu0 0.0
    %498 = vmatpush1.msra.mxu0 0.0
    %499 = vmatprep.subr.mxu0 0.0
    %500 = vmatpush1.msra.mxu0 0.0
    %501 = vmatprep.subr.mxu0 0.0
    %502 = vmatpush1.msra.mxu0 0.0
    %503 = vmatprep.subr.mxu0 0.0
    %504 = vmatpush1.msra.mxu0 0.0
    %505 = vmatprep.subr.mxu0 0.0
    %506 = vmatpush1.msra.mxu0 0.0
    %507 = vmatprep.subr.mxu0 0.0
    %508 = vmatpush1.msra.mxu0 0.0
    %509 = vmatprep.subr.mxu0 0.0
    %510 = vmatpush1.msra.mxu0 0.0
    %511 = vmatprep.subr.mxu0 0.0
    %512 = vmatpush1.msra.mxu0 0.0
    %513 = vmatprep.subr.mxu0 0.0
    %514 = vmatpush1.msra.mxu0 0.0
    %515 = vmatprep.subr.mxu0 0.0
    %516 = vmatpush1.msra.mxu0 0.0
    %517 = vmatprep.subr.mxu0 0.0
    %518 = vmatpush1.msra.mxu0 %v485
    %519 = vmatprep.subr.mxu0 0.0
    %520 = vmatpush2.msra.mxu0 0.0
    %521 = vmatprep.subr.mxu0 0.0
    %522 = vmatpush2.msra.mxu0 0.0
    %523 = vmatprep.subr.mxu0 0.0
    %524 = vmatpush2.msra.mxu0 0.0
    %525 = vmatprep.subr.mxu0 0.0
    %526 = vmatpush2.msra.mxu0 0.0
    %527 = vmatprep.subr.mxu0 0.0
    %528 = vmatpush2.msra.mxu0 0.0
    %529 = vmatprep.subr.mxu0 0.0
    %530 = vmatpush2.msra.mxu0 0.0
    %531 = vmatprep.subr.mxu0 0.0
    %532 = vmatpush2.msra.mxu0 0.0
    %533 = vmatprep.subr.mxu0 0.0
    %534 = vmatpush2.msra.mxu0 0.0
    %535 = vmatprep.subr.mxu0 0.0
    %536 = vmatpush2.msra.mxu0 0.0
    %537 = vmatprep.subr.mxu0 0.0
    %538 = vmatpush2.msra.mxu0 0.0
    %539 = vmatprep.subr.mxu0 0.0
    %540 = vmatpush2.msra.mxu0 0.0
    %541 = vmatprep.subr.mxu0 0.0
    %542 = vmatpush2.msra.mxu0 0.0
    %543 = vmatprep.subr.mxu0 0.0
    %544 = vmatpush2.msra.mxu0 0.0
    %545 = vmatprep.subr.mxu0 0.0
    %546 = vmatpush2.msra.mxu0 0.0
    %547 = vmatprep.subr.mxu0 0.0
    %548 = vmatpush2.msra.mxu0 0.0
    %549 = vmatprep.subr.mxu0 0.0
    %550 = vmatpush2.msra.mxu0 0.0
    %551 = vmatprep.mubr.f32.mxu0 0.0
    %552 = vmatmul.mubr.f32.gmra.mxu0 %v482
    %v553 = vpop.f32.mrf.mxu0
    %v554 = vadd.f32 0.0, %v553
    %v555 = vpop.f32.mrf.mxu0
    %556 = vdwg.mxu0
    %558 = vrot.lane.b32.xlu0 %v340, 8
    %v559 = vpop.permute.xlu0 %558
    %562 = vrot.lane.b32.xlu0 %v447, 16
    %v563 = vpop.permute.xlu0 %562
    %566 = vrot.lane.b32.xlu0 %v554, 24
    %v567 = vpop.permute.xlu0 %566
    %vm569 = vcmask 64512
    %v570 = vsel %vm569, %v233, %v559
    %vm571 = vcmask 130048
    %v572 = vsel %vm571, %v570, %v563
    %vm573 = vcmask 195584
    %v574 = vsel %vm573, %v572, %v567
    %v575 = vadd.f32 %v118, %v574
    %v576 = vld [vmem:[%s8] sm:$0x3]
    %v577 = vunpack.c.0.s8 %v576
    %v578 = vcvt.s32.f32 %v577
    %vm579 = vcmp.gt.f32.partialorder %v578, 0.0
    %v580 = vld [vmem:[%s6] sm:$0xf]
    %581 = vset.pattern.permute.xlu0 36
    %582 = vperm.xlu0 %581, %v118
    %v583 = vpop.permute.xlu0 %582
    %v585 = vlaneseq
    %v586 = vshrl.u32 %v585, 7
    %v587 = vsub.s32 0, %v586
    %v588 = vrot.slane %v580, %v587
    %v589 = vadd.f32 %v583, %v588
    %vm590 = vcmp.gt.f32.partialorder %v589, 0.0
    %v591 = vmul.f32 %v589, 0.2
    %v592 = vsel %vm590, %v589, %v591
    %v593 = vsel %vm579, %v592, -1e+30
    %vm594 = vcmask 62464
    %v595 = vsel %vm594, %v593, -inf
    %596 = vmax.xlane.f32.xlu0 %v595
    %v597 = vpop.xlane.xlu0 %596
    %v598 = vsub.f32 %v593, %v597
    %v599 = vmul.f32 %v598, 1.442695
    %v600 = vpow.pop %v599
    %v601 = vsel %vm579, %v600, 0.0
    %v602 = vsel %vm594, %v601, 0.0
    %603 = vadd.xlane.f32.xlu0 %v602
    %v604 = vpop.xlane.xlu0 %603
    %v605 = vmax.f32 %v604, 1e-30
    %v606 = vrcp.pop %v605
    %v607 = vmul.f32 %v605, %v606
    %v608 = vsub.f32 2.0, %v607
    %v609 = vmul.f32 %v606, %v608
    %v610 = vmul.f32 %v601, %v609
    %v611 = vld [vmem:[%s5] sm:$0xff]
    %v613 = vsel %vm569, %v610, 0
    %615 = vmatprep.subr.mxu0 0.0
    %616 = vmatpush1.msra.mxu0 0.0
    %617 = vmatprep.subr.mxu0 0.0
    %618 = vmatpush1.msra.mxu0 0.0
    %619 = vmatprep.subr.mxu0 0.0
    %620 = vmatpush1.msra.mxu0 0.0
    %621 = vmatprep.subr.mxu0 0.0
    %622 = vmatpush1.msra.mxu0 0.0
    %623 = vmatprep.subr.mxu0 0.0
    %624 = vmatpush1.msra.mxu0 0.0
    %625 = vmatprep.subr.mxu0 0.0
    %626 = vmatpush1.msra.mxu0 0.0
    %627 = vmatprep.subr.mxu0 0.0
    %628 = vmatpush1.msra.mxu0 0.0
    %629 = vmatprep.subr.mxu0 0.0
    %630 = vmatpush1.msra.mxu0 0.0
    %631 = vmatprep.subr.mxu0 0.0
    %632 = vmatpush1.msra.mxu0 0.0
    %633 = vmatprep.subr.mxu0 0.0
    %634 = vmatpush1.msra.mxu0 0.0
    %635 = vmatprep.subr.mxu0 0.0
    %636 = vmatpush1.msra.mxu0 0.0
    %637 = vmatprep.subr.mxu0 0.0
    %638 = vmatpush1.msra.mxu0 0.0
    %639 = vmatprep.subr.mxu0 0.0
    %640 = vmatpush1.msra.mxu0 0.0
    %641 = vmatprep.subr.mxu0 0.0
    %642 = vmatpush1.msra.mxu0 0.0
    %643 = vmatprep.subr.mxu0 0.0
    %644 = vmatpush1.msra.mxu0 0.0
    %645 = vmatprep.subr.mxu0 0.0
    %646 = vmatpush1.msra.mxu0 %v611
    %647 = vmatprep.subr.mxu0 0.0
    %648 = vmatpush2.msra.mxu0 0.0
    %649 = vmatprep.subr.mxu0 0.0
    %650 = vmatpush2.msra.mxu0 0.0
    %651 = vmatprep.subr.mxu0 0.0
    %652 = vmatpush2.msra.mxu0 0.0
    %653 = vmatprep.subr.mxu0 0.0
    %654 = vmatpush2.msra.mxu0 0.0
    %655 = vmatprep.subr.mxu0 0.0
    %656 = vmatpush2.msra.mxu0 0.0
    %657 = vmatprep.subr.mxu0 0.0
    %658 = vmatpush2.msra.mxu0 0.0
    %659 = vmatprep.subr.mxu0 0.0
    %660 = vmatpush2.msra.mxu0 0.0
    %661 = vmatprep.subr.mxu0 0.0
    %662 = vmatpush2.msra.mxu0 0.0
    %663 = vmatprep.subr.mxu0 0.0
    %664 = vmatpush2.msra.mxu0 0.0
    %665 = vmatprep.subr.mxu0 0.0
    %666 = vmatpush2.msra.mxu0 0.0
    %667 = vmatprep.subr.mxu0 0.0
    %668 = vmatpush2.msra.mxu0 0.0
    %669 = vmatprep.subr.mxu0 0.0
    %670 = vmatpush2.msra.mxu0 0.0
    %671 = vmatprep.subr.mxu0 0.0
    %672 = vmatpush2.msra.mxu0 0.0
    %673 = vmatprep.subr.mxu0 0.0
    %674 = vmatpush2.msra.mxu0 0.0
    %675 = vmatprep.subr.mxu0 0.0
    %676 = vmatpush2.msra.mxu0 0.0
    %677 = vmatprep.subr.mxu0 0.0
    %678 = vmatpush2.msra.mxu0 0.0
    %679 = vmatprep.mubr.f32.mxu0 0.0
    %680 = vmatmul.mubr.f32.gmra.mxu0 %v613
    %v681 = vpop.f32.mrf.mxu0
    %v682 = vadd.f32 0.0, %v681
    %v683 = vpop.f32.mrf.mxu0
    %684 = vdwg.mxu0
    %685 = vset.pattern.permute.xlu0 37
    %686 = vperm.xlu0 %685, %v118
    %v687 = vpop.permute.xlu0 %686
    %v689 = vlaneseq
    %v690 = vshrl.u32 %v689, 7
    %v691 = vsub.s32 1, %v690
    %v692 = vrot.slane %v580, %v691
    %v693 = vadd.f32 %v687, %v692
    %vm694 = vcmp.gt.f32.partialorder %v693, 0.0
    %v695 = vmul.f32 %v693, 0.2
    %v696 = vsel %vm694, %v693, %v695
    %v697 = vsel %vm579, %v696, -1e+30
    %v698 = vsel %vm594, %v697, -inf
    %699 = vmax.xlane.f32.xlu0 %v698
    %v700 = vpop.xlane.xlu0 %699
    %v701 = vsub.f32 %v697, %v700
    %v702 = vmul.f32 %v701, 1.442695
    %v703 = vpow.pop %v702
    %v704 = vsel %vm579, %v703, 0.0
    %v705 = vsel %vm594, %v704, 0.0
    %706 = vadd.xlane.f32.xlu0 %v705
    %v707 = vpop.xlane.xlu0 %706
    %v708 = vmax.f32 %v707, 1e-30
    %v709 = vrcp.pop %v708
    %v710 = vmul.f32 %v708, %v709
    %v711 = vsub.f32 2.0, %v710
    %v712 = vmul.f32 %v709, %v711
    %v713 = vmul.f32 %v704, %v712
    %s714 = scalar_lea.vmem %s5, 8
    %v715 = vld [vmem:[%s714] sm:$0xff]
    %v717 = vsel %vm569, %v713, 0
    %719 = vmatprep.subr.mxu0 0.0
    %720 = vmatpush1.msra.mxu0 0.0
    %721 = vmatprep.subr.mxu0 0.0
    %722 = vmatpush1.msra.mxu0 0.0
    %723 = vmatprep.subr.mxu0 0.0
    %724 = vmatpush1.msra.mxu0 0.0
    %725 = vmatprep.subr.mxu0 0.0
    %726 = vmatpush1.msra.mxu0 0.0
    %727 = vmatprep.subr.mxu0 0.0
    %728 = vmatpush1.msra.mxu0 0.0
    %729 = vmatprep.subr.mxu0 0.0
    %730 = vmatpush1.msra.mxu0 0.0
    %731 = vmatprep.subr.mxu0 0.0
    %732 = vmatpush1.msra.mxu0 0.0
    %733 = vmatprep.subr.mxu0 0.0
    %734 = vmatpush1.msra.mxu0 0.0
    %735 = vmatprep.subr.mxu0 0.0
    %736 = vmatpush1.msra.mxu0 0.0
    %737 = vmatprep.subr.mxu0 0.0
    %738 = vmatpush1.msra.mxu0 0.0
    %739 = vmatprep.subr.mxu0 0.0
    %740 = vmatpush1.msra.mxu0 0.0
    %741 = vmatprep.subr.mxu0 0.0
    %742 = vmatpush1.msra.mxu0 0.0
    %743 = vmatprep.subr.mxu0 0.0
    %744 = vmatpush1.msra.mxu0 0.0
    %745 = vmatprep.subr.mxu0 0.0
    %746 = vmatpush1.msra.mxu0 0.0
    %747 = vmatprep.subr.mxu0 0.0
    %748 = vmatpush1.msra.mxu0 0.0
    %749 = vmatprep.subr.mxu0 0.0
    %750 = vmatpush1.msra.mxu0 %v715
    %751 = vmatprep.subr.mxu0 0.0
    %752 = vmatpush2.msra.mxu0 0.0
    %753 = vmatprep.subr.mxu0 0.0
    %754 = vmatpush2.msra.mxu0 0.0
    %755 = vmatprep.subr.mxu0 0.0
    %756 = vmatpush2.msra.mxu0 0.0
    %757 = vmatprep.subr.mxu0 0.0
    %758 = vmatpush2.msra.mxu0 0.0
    %759 = vmatprep.subr.mxu0 0.0
    %760 = vmatpush2.msra.mxu0 0.0
    %761 = vmatprep.subr.mxu0 0.0
    %762 = vmatpush2.msra.mxu0 0.0
    %763 = vmatprep.subr.mxu0 0.0
    %764 = vmatpush2.msra.mxu0 0.0
    %765 = vmatprep.subr.mxu0 0.0
    %766 = vmatpush2.msra.mxu0 0.0
    %767 = vmatprep.subr.mxu0 0.0
    %768 = vmatpush2.msra.mxu0 0.0
    %769 = vmatprep.subr.mxu0 0.0
    %770 = vmatpush2.msra.mxu0 0.0
    %771 = vmatprep.subr.mxu0 0.0
    %772 = vmatpush2.msra.mxu0 0.0
    %773 = vmatprep.subr.mxu0 0.0
    %774 = vmatpush2.msra.mxu0 0.0
    %775 = vmatprep.subr.mxu0 0.0
    %776 = vmatpush2.msra.mxu0 0.0
    %777 = vmatprep.subr.mxu0 0.0
    %778 = vmatpush2.msra.mxu0 0.0
    %779 = vmatprep.subr.mxu0 0.0
    %780 = vmatpush2.msra.mxu0 0.0
    %781 = vmatprep.subr.mxu0 0.0
    %782 = vmatpush2.msra.mxu0 0.0
    %783 = vmatprep.mubr.f32.mxu0 0.0
    %784 = vmatmul.mubr.f32.gmra.mxu0 %v717
    %v785 = vpop.f32.mrf.mxu0
    %v786 = vadd.f32 0.0, %v785
    %v787 = vpop.f32.mrf.mxu0
    %788 = vdwg.mxu0
    %789 = vset.pattern.permute.xlu0 38
    %790 = vperm.xlu0 %789, %v118
    %v791 = vpop.permute.xlu0 %790
    %v793 = vlaneseq
    %v794 = vshrl.u32 %v793, 7
    %v795 = vsub.s32 2, %v794
    %v796 = vrot.slane %v580, %v795
    %v797 = vadd.f32 %v791, %v796
    %vm798 = vcmp.gt.f32.partialorder %v797, 0.0
    %v799 = vmul.f32 %v797, 0.2
    %v800 = vsel %vm798, %v797, %v799
    %v801 = vsel %vm579, %v800, -1e+30
    %v802 = vsel %vm594, %v801, -inf
    %803 = vmax.xlane.f32.xlu0 %v802
    %v804 = vpop.xlane.xlu0 %803
    %v805 = vsub.f32 %v801, %v804
    %v806 = vmul.f32 %v805, 1.442695
    %v807 = vpow.pop %v806
    %v808 = vsel %vm579, %v807, 0.0
    %v809 = vsel %vm594, %v808, 0.0
    %810 = vadd.xlane.f32.xlu0 %v809
    %v811 = vpop.xlane.xlu0 %810
    %v812 = vmax.f32 %v811, 1e-30
    %v813 = vrcp.pop %v812
    %v814 = vmul.f32 %v812, %v813
    %v815 = vsub.f32 2.0, %v814
    %v816 = vmul.f32 %v813, %v815
    %v817 = vmul.f32 %v808, %v816
    %s818 = scalar_lea.vmem %s5, 16
    %v819 = vld [vmem:[%s818] sm:$0xff]
    %v821 = vsel %vm569, %v817, 0
    %823 = vmatprep.subr.mxu0 0.0
    %824 = vmatpush1.msra.mxu0 0.0
    %825 = vmatprep.subr.mxu0 0.0
    %826 = vmatpush1.msra.mxu0 0.0
    %827 = vmatprep.subr.mxu0 0.0
    %828 = vmatpush1.msra.mxu0 0.0
    %829 = vmatprep.subr.mxu0 0.0
    %830 = vmatpush1.msra.mxu0 0.0
    %831 = vmatprep.subr.mxu0 0.0
    %832 = vmatpush1.msra.mxu0 0.0
    %833 = vmatprep.subr.mxu0 0.0
    %834 = vmatpush1.msra.mxu0 0.0
    %835 = vmatprep.subr.mxu0 0.0
    %836 = vmatpush1.msra.mxu0 0.0
    %837 = vmatprep.subr.mxu0 0.0
    %838 = vmatpush1.msra.mxu0 0.0
    %839 = vmatprep.subr.mxu0 0.0
    %840 = vmatpush1.msra.mxu0 0.0
    %841 = vmatprep.subr.mxu0 0.0
    %842 = vmatpush1.msra.mxu0 0.0
    %843 = vmatprep.subr.mxu0 0.0
    %844 = vmatpush1.msra.mxu0 0.0
    %845 = vmatprep.subr.mxu0 0.0
    %846 = vmatpush1.msra.mxu0 0.0
    %847 = vmatprep.subr.mxu0 0.0
    %848 = vmatpush1.msra.mxu0 0.0
    %849 = vmatprep.subr.mxu0 0.0
    %850 = vmatpush1.msra.mxu0 0.0
    %851 = vmatprep.subr.mxu0 0.0
    %852 = vmatpush1.msra.mxu0 0.0
    %853 = vmatprep.subr.mxu0 0.0
    %854 = vmatpush1.msra.mxu0 %v819
    %855 = vmatprep.subr.mxu0 0.0
    %856 = vmatpush2.msra.mxu0 0.0
    %857 = vmatprep.subr.mxu0 0.0
    %858 = vmatpush2.msra.mxu0 0.0
    %859 = vmatprep.subr.mxu0 0.0
    %860 = vmatpush2.msra.mxu0 0.0
    %861 = vmatprep.subr.mxu0 0.0
    %862 = vmatpush2.msra.mxu0 0.0
    %863 = vmatprep.subr.mxu0 0.0
    %864 = vmatpush2.msra.mxu0 0.0
    %865 = vmatprep.subr.mxu0 0.0
    %866 = vmatpush2.msra.mxu0 0.0
    %867 = vmatprep.subr.mxu0 0.0
    %868 = vmatpush2.msra.mxu0 0.0
    %869 = vmatprep.subr.mxu0 0.0
    %870 = vmatpush2.msra.mxu0 0.0
    %871 = vmatprep.subr.mxu0 0.0
    %872 = vmatpush2.msra.mxu0 0.0
    %873 = vmatprep.subr.mxu0 0.0
    %874 = vmatpush2.msra.mxu0 0.0
    %875 = vmatprep.subr.mxu0 0.0
    %876 = vmatpush2.msra.mxu0 0.0
    %877 = vmatprep.subr.mxu0 0.0
    %878 = vmatpush2.msra.mxu0 0.0
    %879 = vmatprep.subr.mxu0 0.0
    %880 = vmatpush2.msra.mxu0 0.0
    %881 = vmatprep.subr.mxu0 0.0
    %882 = vmatpush2.msra.mxu0 0.0
    %883 = vmatprep.subr.mxu0 0.0
    %884 = vmatpush2.msra.mxu0 0.0
    %885 = vmatprep.subr.mxu0 0.0
    %886 = vmatpush2.msra.mxu0 0.0
    %887 = vmatprep.mubr.f32.mxu0 0.0
    %888 = vmatmul.mubr.f32.gmra.mxu0 %v821
    %v889 = vpop.f32.mrf.mxu0
    %v890 = vadd.f32 0.0, %v889
    %v891 = vpop.f32.mrf.mxu0
    %892 = vdwg.mxu0
    %893 = vset.pattern.permute.xlu0 39
    %894 = vperm.xlu0 %893, %v118
    %v895 = vpop.permute.xlu0 %894
    %v897 = vlaneseq
    %v898 = vshrl.u32 %v897, 7
    %v899 = vsub.s32 3, %v898
    %v900 = vrot.slane %v580, %v899
    %v901 = vadd.f32 %v895, %v900
    %vm902 = vcmp.gt.f32.partialorder %v901, 0.0
    %v903 = vmul.f32 %v901, 0.2
    %v904 = vsel %vm902, %v901, %v903
    %v905 = vsel %vm579, %v904, -1e+30
    %v906 = vsel %vm594, %v905, -inf
    %907 = vmax.xlane.f32.xlu0 %v906
    %v908 = vpop.xlane.xlu0 %907
    %v909 = vsub.f32 %v905, %v908
    %v910 = vmul.f32 %v909, 1.442695
    %v911 = vpow.pop %v910
    %v912 = vsel %vm579, %v911, 0.0
    %v913 = vsel %vm594, %v912, 0.0
    %914 = vadd.xlane.f32.xlu0 %v913
    %v915 = vpop.xlane.xlu0 %914
    %v916 = vmax.f32 %v915, 1e-30
    %v917 = vrcp.pop %v916
    %v918 = vmul.f32 %v916, %v917
    %v919 = vsub.f32 2.0, %v918
    %v920 = vmul.f32 %v917, %v919
    %v921 = vmul.f32 %v912, %v920
    %s922 = scalar_lea.vmem %s5, 24
    %v923 = vld [vmem:[%s922] sm:$0xff]
    %v925 = vsel %vm569, %v921, 0
    %927 = vmatprep.subr.mxu0 0.0
    %928 = vmatpush1.msra.mxu0 0.0
    %929 = vmatprep.subr.mxu0 0.0
    %930 = vmatpush1.msra.mxu0 0.0
    %931 = vmatprep.subr.mxu0 0.0
    %932 = vmatpush1.msra.mxu0 0.0
    %933 = vmatprep.subr.mxu0 0.0
    %934 = vmatpush1.msra.mxu0 0.0
    %935 = vmatprep.subr.mxu0 0.0
    %936 = vmatpush1.msra.mxu0 0.0
    %937 = vmatprep.subr.mxu0 0.0
    %938 = vmatpush1.msra.mxu0 0.0
    %939 = vmatprep.subr.mxu0 0.0
    %940 = vmatpush1.msra.mxu0 0.0
    %941 = vmatprep.subr.mxu0 0.0
    %942 = vmatpush1.msra.mxu0 0.0
    %943 = vmatprep.subr.mxu0 0.0
    %944 = vmatpush1.msra.mxu0 0.0
    %945 = vmatprep.subr.mxu0 0.0
    %946 = vmatpush1.msra.mxu0 0.0
    %947 = vmatprep.subr.mxu0 0.0
    %948 = vmatpush1.msra.mxu0 0.0
    %949 = vmatprep.subr.mxu0 0.0
    %950 = vmatpush1.msra.mxu0 0.0
    %951 = vmatprep.subr.mxu0 0.0
    %952 = vmatpush1.msra.mxu0 0.0
    %953 = vmatprep.subr.mxu0 0.0
    %954 = vmatpush1.msra.mxu0 0.0
    %955 = vmatprep.subr.mxu0 0.0
    %956 = vmatpush1.msra.mxu0 0.0
    %957 = vmatprep.subr.mxu0 0.0
    %958 = vmatpush1.msra.mxu0 %v923
    %959 = vmatprep.subr.mxu0 0.0
    %960 = vmatpush2.msra.mxu0 0.0
    %961 = vmatprep.subr.mxu0 0.0
    %962 = vmatpush2.msra.mxu0 0.0
    %963 = vmatprep.subr.mxu0 0.0
    %964 = vmatpush2.msra.mxu0 0.0
    %965 = vmatprep.subr.mxu0 0.0
    %966 = vmatpush2.msra.mxu0 0.0
    %967 = vmatprep.subr.mxu0 0.0
    %968 = vmatpush2.msra.mxu0 0.0
    %969 = vmatprep.subr.mxu0 0.0
    %970 = vmatpush2.msra.mxu0 0.0
    %971 = vmatprep.subr.mxu0 0.0
    %972 = vmatpush2.msra.mxu0 0.0
    %973 = vmatprep.subr.mxu0 0.0
    %974 = vmatpush2.msra.mxu0 0.0
    %975 = vmatprep.subr.mxu0 0.0
    %976 = vmatpush2.msra.mxu0 0.0
    %977 = vmatprep.subr.mxu0 0.0
    %978 = vmatpush2.msra.mxu0 0.0
    %979 = vmatprep.subr.mxu0 0.0
    %980 = vmatpush2.msra.mxu0 0.0
    %981 = vmatprep.subr.mxu0 0.0
    %982 = vmatpush2.msra.mxu0 0.0
    %983 = vmatprep.subr.mxu0 0.0
    %984 = vmatpush2.msra.mxu0 0.0
    %985 = vmatprep.subr.mxu0 0.0
    %986 = vmatpush2.msra.mxu0 0.0
    %987 = vmatprep.subr.mxu0 0.0
    %988 = vmatpush2.msra.mxu0 0.0
    %989 = vmatprep.subr.mxu0 0.0
    %990 = vmatpush2.msra.mxu0 0.0
    %991 = vmatprep.mubr.f32.mxu0 0.0
    %992 = vmatmul.mubr.f32.gmra.mxu0 %v925
    %v993 = vpop.f32.mrf.mxu0
    %v994 = vadd.f32 0.0, %v993
    %v995 = vpop.f32.mrf.mxu0
    %996 = vdwg.mxu0
    %998 = vrot.lane.b32.xlu0 %v786, 8
    %v999 = vpop.permute.xlu0 %998
    %1002 = vrot.lane.b32.xlu0 %v890, 16
    %v1003 = vpop.permute.xlu0 %1002
    %1006 = vrot.lane.b32.xlu0 %v994, 24
    %v1007 = vpop.permute.xlu0 %1006
    %v1009 = vsel %vm569, %v682, %v999
    %v1010 = vsel %vm571, %v1009, %v1003
    %v1011 = vsel %vm573, %v1010, %v1007
    %v1012 = vadd.f32 %v575, %v1011
    %v1013 = vmax.f32 %v1012, 0.0
    %vm1014 = vcmask 261120
    %v1015 = vsel %vm1014, %v1013, 0.0
    %1016 = vst [vmem:[#allocation2] sm:$0x3f] %v1015
    // Predicated region
    $region38: #{_lambda_.11} parent=1 // pred_check
      _
    $region39: #{_lambda_.11} parent=1 // pred_check_branch
      %1018 = sbr.rel (0) target = $region41
    $region40: #{_lambda_.11} parent=1 // pred_region
      %s1020 = ssub.s32 128, 128
      %1021 = vsyncadd [#allocation3], %s1020
      %s1023 = sshll.u32 [#allocation2], 4
      %s1024 = int_to_ptr.vmem [resolvable:$true] %s1023
      %1026 = dma.vmem_to_hbm [thread:$0]  %s1024, 128, %s9, [#allocation3]
    $region41: #{_lambda_.11} parent=1 // pred_fallthru
      _
    // Predicated region
    $region42: #{_lambda_.11} parent=1 // pred_check
      _
    $region43: #{_lambda_.11} parent=1 // pred_check_branch
      %1028 = sbr.rel (0) target = $region45
    $region44: #{_lambda_.11} parent=1 // pred_region
      %1029 = dma.done [#allocation3], 128
    $region45: #{_lambda_.11} parent=1 // pred_fallthru
      _
    %1030 = vsyncpa [#allocation3], 1

// kernel: _lambda_.8
$region0: #{_lambda_.8}
  #allocation0 [shape = 'u32[]', space=smem, size = 0x4, offset = 0x4, fixed_abs, tag = 'smem constant byte address 0x4 - core index']
  #allocation1 [shape = 'u32[144,128]{1,0:T(1,128)}', space=vmem, size = 0x12000, scoped, tag = 'internal scratch']
  %s0 = inlined_call_operand.vmem [shape: f32[8,16], index: 0, kind: input, shape index: {}]
  %s1 = inlined_call_operand.vmem [shape: f32[16,40], index: 1, kind: input, shape index: {}]
  %s2 = inlined_call_operand.vmem [shape: f32[1,40], index: 2, kind: input, shape index: {}]
  %s3 = inlined_call_operand.vmem [shape: f32[4,8,8], index: 3, kind: input, shape index: {}]
  %s4 = inlined_call_operand.vmem [shape: f32[4,8], index: 4, kind: input, shape index: {}]
  %s5 = inlined_call_operand.vmem [shape: f32[4,6,8], index: 5, kind: input, shape index: {}]
  %s6 = inlined_call_operand.vmem [shape: f32[4,6], index: 6, kind: input, shape index: {}]
  %s7 = inlined_call_operand.vmem [shape: s8[8,8], index: 7, kind: input, shape index: {}]
  %s8 = inlined_call_operand.vmem [shape: s8[8,6], index: 8, kind: input, shape index: {}]
  %s9 = inlined_call_operand.hbm [shape: f32[8,128], index: 9, kind: output, shape index: {}]
  %s10 = sld [smem:[#allocation0]]
  $region46: #{_lambda_.8} parent=0
    _
  %s12 = ssub.s32 1, %s10
  %s13 = scalar_select 0, %s12, %s10
  $region1: #{_lambda_.8} parent=0
    #allocation2 [shape = 'u8[4096]{0}', space=vmem, size = 0x1000, scoped, tag = 'output window, operand 0, single buffered']
    #allocation3 [shape = 's32[1]{0}', space=sflag, size = 0x4, scoped, tag = 'scoped memory for _lambda_.8']
    %14 = vsyncpa [#allocation3], 0
    // Predicated region
    $region2: #{_lambda_.8} parent=1 // pred_check
      _
    $region3: #{_lambda_.8} parent=1 // pred_check_branch
      %16 = sbr.rel (0) target = $region5
    $region4: #{_lambda_.8} parent=1 // pred_region
      _
    $region5: #{_lambda_.8} parent=1 // pred_fallthru
      _
    // Predicated region
    $region6: #{_lambda_.8} parent=1 // pred_check
      _
    $region7: #{_lambda_.8} parent=1 // pred_check_branch
      %18 = sbr.rel (0) target = $region9
    $region8: #{_lambda_.8} parent=1 // pred_region
      _
    $region9: #{_lambda_.8} parent=1 // pred_fallthru
      _
    // Predicated region
    $region10: #{_lambda_.8} parent=1 // pred_check
      _
    $region11: #{_lambda_.8} parent=1 // pred_check_branch
      %20 = sbr.rel (0) target = $region13
    $region12: #{_lambda_.8} parent=1 // pred_region
      _
    $region13: #{_lambda_.8} parent=1 // pred_fallthru
      _
    // Predicated region
    $region14: #{_lambda_.8} parent=1 // pred_check
      _
    $region15: #{_lambda_.8} parent=1 // pred_check_branch
      %22 = sbr.rel (0) target = $region17
    $region16: #{_lambda_.8} parent=1 // pred_region
      _
    $region17: #{_lambda_.8} parent=1 // pred_fallthru
      _
    // Predicated region
    $region18: #{_lambda_.8} parent=1 // pred_check
      _
    $region19: #{_lambda_.8} parent=1 // pred_check_branch
      %24 = sbr.rel (0) target = $region21
    $region20: #{_lambda_.8} parent=1 // pred_region
      _
    $region21: #{_lambda_.8} parent=1 // pred_fallthru
      _
    // Predicated region
    $region22: #{_lambda_.8} parent=1 // pred_check
      _
    $region23: #{_lambda_.8} parent=1 // pred_check_branch
      %26 = sbr.rel (0) target = $region25
    $region24: #{_lambda_.8} parent=1 // pred_region
      _
    $region25: #{_lambda_.8} parent=1 // pred_fallthru
      _
    // Predicated region
    $region26: #{_lambda_.8} parent=1 // pred_check
      _
    $region27: #{_lambda_.8} parent=1 // pred_check_branch
      %28 = sbr.rel (0) target = $region29
    $region28: #{_lambda_.8} parent=1 // pred_region
      _
    $region29: #{_lambda_.8} parent=1 // pred_fallthru
      _
    // Predicated region
    $region30: #{_lambda_.8} parent=1 // pred_check
      _
    $region31: #{_lambda_.8} parent=1 // pred_check_branch
      %30 = sbr.rel (0) target = $region33
    $region32: #{_lambda_.8} parent=1 // pred_region
      _
    $region33: #{_lambda_.8} parent=1 // pred_fallthru
      _
    // Predicated region
    $region34: #{_lambda_.8} parent=1 // pred_check
      _
    $region35: #{_lambda_.8} parent=1 // pred_check_branch
      %32 = sbr.rel (0) target = $region37
    $region36: #{_lambda_.8} parent=1 // pred_region
      _
    $region37: #{_lambda_.8} parent=1 // pred_fallthru
      _
    %v33 = vld [vmem:[%s0] sm:$0xff]
    %v34 = vld [vmem:[%s1] sm:$0xff]
    %v35 = vld [vmem:[%s1 + $0x8] sm:$0xff]
    %v36 = vld [vmem:[%s2] sm:$0x1]
    %v38 = vlaneseq
    %v39 = vshrl.u32 %v38, 7
    %v40 = vsub.s32 0, %v39
    %v41 = vrot.slane %v36, %v40
    %vm43 = vcmask 130048
    %v45 = vsel %vm43, %v33, 0
    %47 = vmatprep.subr.mxu0 0.0
    %48 = vmatpush1.msra.mxu0 0.0
    %49 = vmatprep.subr.mxu0 0.0
    %50 = vmatpush1.msra.mxu0 0.0
    %51 = vmatprep.subr.mxu0 0.0
    %52 = vmatpush1.msra.mxu0 0.0
    %53 = vmatprep.subr.mxu0 0.0
    %54 = vmatpush1.msra.mxu0 0.0
    %55 = vmatprep.subr.mxu0 0.0
    %56 = vmatpush1.msra.mxu0 0.0
    %57 = vmatprep.subr.mxu0 0.0
    %58 = vmatpush1.msra.mxu0 0.0
    %59 = vmatprep.subr.mxu0 0.0
    %60 = vmatpush1.msra.mxu0 0.0
    %61 = vmatprep.subr.mxu0 0.0
    %62 = vmatpush1.msra.mxu0 0.0
    %63 = vmatprep.subr.mxu0 0.0
    %64 = vmatpush1.msra.mxu0 0.0
    %65 = vmatprep.subr.mxu0 0.0
    %66 = vmatpush1.msra.mxu0 0.0
    %67 = vmatprep.subr.mxu0 0.0
    %68 = vmatpush1.msra.mxu0 0.0
    %69 = vmatprep.subr.mxu0 0.0
    %70 = vmatpush1.msra.mxu0 0.0
    %71 = vmatprep.subr.mxu0 0.0
    %72 = vmatpush1.msra.mxu0 0.0
    %73 = vmatprep.subr.mxu0 0.0
    %74 = vmatpush1.msra.mxu0 0.0
    %75 = vmatprep.subr.mxu0 0.0
    %76 = vmatpush1.msra.mxu0 %v35
    %77 = vmatprep.subr.mxu0 0.0
    %78 = vmatpush1.msra.mxu0 %v34
    %79 = vmatprep.subr.mxu0 0.0
    %80 = vmatpush2.msra.mxu0 0.0
    %81 = vmatprep.subr.mxu0 0.0
    %82 = vmatpush2.msra.mxu0 0.0
    %83 = vmatprep.subr.mxu0 0.0
    %84 = vmatpush2.msra.mxu0 0.0
    %85 = vmatprep.subr.mxu0 0.0
    %86 = vmatpush2.msra.mxu0 0.0
    %87 = vmatprep.subr.mxu0 0.0
    %88 = vmatpush2.msra.mxu0 0.0
    %89 = vmatprep.subr.mxu0 0.0
    %90 = vmatpush2.msra.mxu0 0.0
    %91 = vmatprep.subr.mxu0 0.0
    %92 = vmatpush2.msra.mxu0 0.0
    %93 = vmatprep.subr.mxu0 0.0
    %94 = vmatpush2.msra.mxu0 0.0
    %95 = vmatprep.subr.mxu0 0.0
    %96 = vmatpush2.msra.mxu0 0.0
    %97 = vmatprep.subr.mxu0 0.0
    %98 = vmatpush2.msra.mxu0 0.0
    %99 = vmatprep.subr.mxu0 0.0
    %100 = vmatpush2.msra.mxu0 0.0
    %101 = vmatprep.subr.mxu0 0.0
    %102 = vmatpush2.msra.mxu0 0.0
    %103 = vmatprep.subr.mxu0 0.0
    %104 = vmatpush2.msra.mxu0 0.0
    %105 = vmatprep.subr.mxu0 0.0
    %106 = vmatpush2.msra.mxu0 0.0
    %107 = vmatprep.subr.mxu0 0.0
    %108 = vmatpush2.msra.mxu0 0.0
    %109 = vmatprep.subr.mxu0 0.0
    %110 = vmatpush2.msra.mxu0 0.0
    %111 = vmatprep.mubr.f32.mxu0 0.0
    %112 = vmatmul.mubr.f32.gmra.mxu0 %v45
    %v113 = vpop.f32.mrf.mxu0
    %v114 = vadd.f32 %v41, %v113
    %v115 = vpop.f32.mrf.mxu0
    %116 = vdwg.mxu0
    %v117 = vld [vmem:[%s7] sm:$0x3]
    %v118 = vunpack.c.0.s8 %v117
    %v119 = vcvt.s32.f32 %v118
    %vm120 = vcmp.gt.f32.partialorder %v119, 0.0
    %v121 = vld [vmem:[%s4] sm:$0xf]
    %123 = vset.pattern.permute.xlu0 32
    %124 = vperm.xlu0 %123, %v114
    %v125 = vpop.permute.xlu0 %124
    %v127 = vlaneseq
    %v128 = vshrl.u32 %v127, 7
    %v129 = vsub.s32 0, %v128
    %v130 = vrot.slane %v121, %v129
    %v131 = vadd.f32 %v125, %v130
    %vm132 = vcmp.gt.f32.partialorder %v131, 0.0
    %v133 = vmul.f32 %v131, 0.2
    %v134 = vsel %vm132, %v131, %v133
    %v135 = vsel %vm120, %v134, -1e+30
    %vm136 = vcmask 64512
    %v137 = vsel %vm136, %v135, -inf
    %138 = vmax.xlane.f32.xlu0 %v137
    %v139 = vpop.xlane.xlu0 %138
    %v140 = vsub.f32 %v135, %v139
    %v141 = vmul.f32 %v140, 1.442695
    %v142 = vpow.pop %v141
    %v143 = vsel %vm120, %v142, 0.0
    %v144 = vsel %vm136, %v143, 0.0
    %145 = vadd.xlane.f32.xlu0 %v144
    %v146 = vpop.xlane.xlu0 %145
    %v147 = vmax.f32 %v146, 1e-30
    %v148 = vrcp.pop %v147
    %v149 = vmul.f32 %v147, %v148
    %v150 = vsub.f32 2.0, %v149
    %v151 = vmul.f32 %v148, %v150
    %v152 = vmul.f32 %v143, %v151
    %v153 = vld [vmem:[%s3] sm:$0xff]
    %v155 = vsel %vm136, %v152, 0
    %157 = vmatprep.subr.mxu0 0.0
    %158 = vmatpush1.msra.mxu0 0.0
    %159 = vmatprep.subr.mxu0 0.0
    %160 = vmatpush1.msra.mxu0 0.0
    %161 = vmatprep.subr.mxu0 0.0
    %162 = vmatpush1.msra.mxu0 0.0
    %163 = vmatprep.subr.mxu0 0.0
    %164 = vmatpush1.msra.mxu0 0.0
    %165 = vmatprep.subr.mxu0 0.0
    %166 = vmatpush1.msra.mxu0 0.0
    %167 = vmatprep.subr.mxu0 0.0
    %168 = vmatpush1.msra.mxu0 0.0
    %169 = vmatprep.subr.mxu0 0.0
    %170 = vmatpush1.msra.mxu0 0.0
    %171 = vmatprep.subr.mxu0 0.0
    %172 = vmatpush1.msra.mxu0 0.0
    %173 = vmatprep.subr.mxu0 0.0
    %174 = vmatpush1.msra.mxu0 0.0
    %175 = vmatprep.subr.mxu0 0.0
    %176 = vmatpush1.msra.mxu0 0.0
    %177 = vmatprep.subr.mxu0 0.0
    %178 = vmatpush1.msra.mxu0 0.0
    %179 = vmatprep.subr.mxu0 0.0
    %180 = vmatpush1.msra.mxu0 0.0
    %181 = vmatprep.subr.mxu0 0.0
    %182 = vmatpush1.msra.mxu0 0.0
    %183 = vmatprep.subr.mxu0 0.0
    %184 = vmatpush1.msra.mxu0 0.0
    %185 = vmatprep.subr.mxu0 0.0
    %186 = vmatpush1.msra.mxu0 0.0
    %187 = vmatprep.subr.mxu0 0.0
    %188 = vmatpush1.msra.mxu0 %v153
    %189 = vmatprep.subr.mxu0 0.0
    %190 = vmatpush2.msra.mxu0 0.0
    %191 = vmatprep.subr.mxu0 0.0
    %192 = vmatpush2.msra.mxu0 0.0
    %193 = vmatprep.subr.mxu0 0.0
    %194 = vmatpush2.msra.mxu0 0.0
    %195 = vmatprep.subr.mxu0 0.0
    %196 = vmatpush2.msra.mxu0 0.0
    %197 = vmatprep.subr.mxu0 0.0
    %198 = vmatpush2.msra.mxu0 0.0
    %199 = vmatprep.subr.mxu0 0.0
    %200 = vmatpush2.msra.mxu0 0.0
    %201 = vmatprep.subr.mxu0 0.0
    %202 = vmatpush2.msra.mxu0 0.0
    %203 = vmatprep.subr.mxu0 0.0
    %204 = vmatpush2.msra.mxu0 0.0
    %205 = vmatprep.subr.mxu0 0.0
    %206 = vmatpush2.msra.mxu0 0.0
    %207 = vmatprep.subr.mxu0 0.0
    %208 = vmatpush2.msra.mxu0 0.0
    %209 = vmatprep.subr.mxu0 0.0
    %210 = vmatpush2.msra.mxu0 0.0
    %211 = vmatprep.subr.mxu0 0.0
    %212 = vmatpush2.msra.mxu0 0.0
    %213 = vmatprep.subr.mxu0 0.0
    %214 = vmatpush2.msra.mxu0 0.0
    %215 = vmatprep.subr.mxu0 0.0
    %216 = vmatpush2.msra.mxu0 0.0
    %217 = vmatprep.subr.mxu0 0.0
    %218 = vmatpush2.msra.mxu0 0.0
    %219 = vmatprep.subr.mxu0 0.0
    %220 = vmatpush2.msra.mxu0 0.0
    %221 = vmatprep.mubr.f32.mxu0 0.0
    %222 = vmatmul.mubr.f32.gmra.mxu0 %v155
    %v223 = vpop.f32.mrf.mxu0
    %v224 = vadd.f32 0.0, %v223
    %v225 = vpop.f32.mrf.mxu0
    %226 = vdwg.mxu0
    %227 = vset.pattern.permute.xlu0 33
    %228 = vperm.xlu0 %227, %v114
    %v229 = vpop.permute.xlu0 %228
    %v231 = vlaneseq
    %v232 = vshrl.u32 %v231, 7
    %v233 = vsub.s32 1, %v232
    %v234 = vrot.slane %v121, %v233
    %v235 = vadd.f32 %v229, %v234
    %vm236 = vcmp.gt.f32.partialorder %v235, 0.0
    %v237 = vmul.f32 %v235, 0.2
    %v238 = vsel %vm236, %v235, %v237
    %v239 = vsel %vm120, %v238, -1e+30
    %v240 = vsel %vm136, %v239, -inf
    %241 = vmax.xlane.f32.xlu0 %v240
    %v242 = vpop.xlane.xlu0 %241
    %v243 = vsub.f32 %v239, %v242
    %v244 = vmul.f32 %v243, 1.442695
    %v245 = vpow.pop %v244
    %v246 = vsel %vm120, %v245, 0.0
    %v247 = vsel %vm136, %v246, 0.0
    %248 = vadd.xlane.f32.xlu0 %v247
    %v249 = vpop.xlane.xlu0 %248
    %v250 = vmax.f32 %v249, 1e-30
    %v251 = vrcp.pop %v250
    %v252 = vmul.f32 %v250, %v251
    %v253 = vsub.f32 2.0, %v252
    %v254 = vmul.f32 %v251, %v253
    %v255 = vmul.f32 %v246, %v254
    %s256 = scalar_lea.vmem %s3, 8
    %v257 = vld [vmem:[%s256] sm:$0xff]
    %v259 = vsel %vm136, %v255, 0
    %261 = vmatprep.subr.mxu0 0.0
    %262 = vmatpush1.msra.mxu0 0.0
    %263 = vmatprep.subr.mxu0 0.0
    %264 = vmatpush1.msra.mxu0 0.0
    %265 = vmatprep.subr.mxu0 0.0
    %266 = vmatpush1.msra.mxu0 0.0
    %267 = vmatprep.subr.mxu0 0.0
    %268 = vmatpush1.msra.mxu0 0.0
    %269 = vmatprep.subr.mxu0 0.0
    %270 = vmatpush1.msra.mxu0 0.0
    %271 = vmatprep.subr.mxu0 0.0
    %272 = vmatpush1.msra.mxu0 0.0
    %273 = vmatprep.subr.mxu0 0.0
    %274 = vmatpush1.msra.mxu0 0.0
    %275 = vmatprep.subr.mxu0 0.0
    %276 = vmatpush1.msra.mxu0 0.0
    %277 = vmatprep.subr.mxu0 0.0
    %278 = vmatpush1.msra.mxu0 0.0
    %279 = vmatprep.subr.mxu0 0.0
    %280 = vmatpush1.msra.mxu0 0.0
    %281 = vmatprep.subr.mxu0 0.0
    %282 = vmatpush1.msra.mxu0 0.0
    %283 = vmatprep.subr.mxu0 0.0
    %284 = vmatpush1.msra.mxu0 0.0
    %285 = vmatprep.subr.mxu0 0.0
    %286 = vmatpush1.msra.mxu0 0.0
    %287 = vmatprep.subr.mxu0 0.0
    %288 = vmatpush1.msra.mxu0 0.0
    %289 = vmatprep.subr.mxu0 0.0
    %290 = vmatpush1.msra.mxu0 0.0
    %291 = vmatprep.subr.mxu0 0.0
    %292 = vmatpush1.msra.mxu0 %v257
    %293 = vmatprep.subr.mxu0 0.0
    %294 = vmatpush2.msra.mxu0 0.0
    %295 = vmatprep.subr.mxu0 0.0
    %296 = vmatpush2.msra.mxu0 0.0
    %297 = vmatprep.subr.mxu0 0.0
    %298 = vmatpush2.msra.mxu0 0.0
    %299 = vmatprep.subr.mxu0 0.0
    %300 = vmatpush2.msra.mxu0 0.0
    %301 = vmatprep.subr.mxu0 0.0
    %302 = vmatpush2.msra.mxu0 0.0
    %303 = vmatprep.subr.mxu0 0.0
    %304 = vmatpush2.msra.mxu0 0.0
    %305 = vmatprep.subr.mxu0 0.0
    %306 = vmatpush2.msra.mxu0 0.0
    %307 = vmatprep.subr.mxu0 0.0
    %308 = vmatpush2.msra.mxu0 0.0
    %309 = vmatprep.subr.mxu0 0.0
    %310 = vmatpush2.msra.mxu0 0.0
    %311 = vmatprep.subr.mxu0 0.0
    %312 = vmatpush2.msra.mxu0 0.0
    %313 = vmatprep.subr.mxu0 0.0
    %314 = vmatpush2.msra.mxu0 0.0
    %315 = vmatprep.subr.mxu0 0.0
    %316 = vmatpush2.msra.mxu0 0.0
    %317 = vmatprep.subr.mxu0 0.0
    %318 = vmatpush2.msra.mxu0 0.0
    %319 = vmatprep.subr.mxu0 0.0
    %320 = vmatpush2.msra.mxu0 0.0
    %321 = vmatprep.subr.mxu0 0.0
    %322 = vmatpush2.msra.mxu0 0.0
    %323 = vmatprep.subr.mxu0 0.0
    %324 = vmatpush2.msra.mxu0 0.0
    %325 = vmatprep.mubr.f32.mxu0 0.0
    %326 = vmatmul.mubr.f32.gmra.mxu0 %v259
    %v327 = vpop.f32.mrf.mxu0
    %v328 = vadd.f32 0.0, %v327
    %v329 = vpop.f32.mrf.mxu0
    %330 = vdwg.mxu0
    %331 = vset.pattern.permute.xlu0 34
    %332 = vperm.xlu0 %331, %v114
    %v333 = vpop.permute.xlu0 %332
    %v335 = vlaneseq
    %v336 = vshrl.u32 %v335, 7
    %v337 = vsub.s32 2, %v336
    %v338 = vrot.slane %v121, %v337
    %v339 = vadd.f32 %v333, %v338
    %vm340 = vcmp.gt.f32.partialorder %v339, 0.0
    %v341 = vmul.f32 %v339, 0.2
    %v342 = vsel %vm340, %v339, %v341
    %v343 = vsel %vm120, %v342, -1e+30
    %v344 = vsel %vm136, %v343, -inf
    %345 = vmax.xlane.f32.xlu0 %v344
    %v346 = vpop.xlane.xlu0 %345
    %v347 = vsub.f32 %v343, %v346
    %v348 = vmul.f32 %v347, 1.442695
    %v349 = vpow.pop %v348
    %v350 = vsel %vm120, %v349, 0.0
    %v351 = vsel %vm136, %v350, 0.0
    %352 = vadd.xlane.f32.xlu0 %v351
    %v353 = vpop.xlane.xlu0 %352
    %v354 = vmax.f32 %v353, 1e-30
    %v355 = vrcp.pop %v354
    %v356 = vmul.f32 %v354, %v355
    %v357 = vsub.f32 2.0, %v356
    %v358 = vmul.f32 %v355, %v357
    %v359 = vmul.f32 %v350, %v358
    %s360 = scalar_lea.vmem %s3, 16
    %v361 = vld [vmem:[%s360] sm:$0xff]
    %v363 = vsel %vm136, %v359, 0
    %365 = vmatprep.subr.mxu0 0.0
    %366 = vmatpush1.msra.mxu0 0.0
    %367 = vmatprep.subr.mxu0 0.0
    %368 = vmatpush1.msra.mxu0 0.0
    %369 = vmatprep.subr.mxu0 0.0
    %370 = vmatpush1.msra.mxu0 0.0
    %371 = vmatprep.subr.mxu0 0.0
    %372 = vmatpush1.msra.mxu0 0.0
    %373 = vmatprep.subr.mxu0 0.0
    %374 = vmatpush1.msra.mxu0 0.0
    %375 = vmatprep.subr.mxu0 0.0
    %376 = vmatpush1.msra.mxu0 0.0
    %377 = vmatprep.subr.mxu0 0.0
    %378 = vmatpush1.msra.mxu0 0.0
    %379 = vmatprep.subr.mxu0 0.0
    %380 = vmatpush1.msra.mxu0 0.0
    %381 = vmatprep.subr.mxu0 0.0
    %382 = vmatpush1.msra.mxu0 0.0
    %383 = vmatprep.subr.mxu0 0.0
    %384 = vmatpush1.msra.mxu0 0.0
    %385 = vmatprep.subr.mxu0 0.0
    %386 = vmatpush1.msra.mxu0 0.0
    %387 = vmatprep.subr.mxu0 0.0
    %388 = vmatpush1.msra.mxu0 0.0
    %389 = vmatprep.subr.mxu0 0.0
    %390 = vmatpush1.msra.mxu0 0.0
    %391 = vmatprep.subr.mxu0 0.0
    %392 = vmatpush1.msra.mxu0 0.0
    %393 = vmatprep.subr.mxu0 0.0
    %394 = vmatpush1.msra.mxu0 0.0
    %395 = vmatprep.subr.mxu0 0.0
    %396 = vmatpush1.msra.mxu0 %v361
    %397 = vmatprep.subr.mxu0 0.0
    %398 = vmatpush2.msra.mxu0 0.0
    %399 = vmatprep.subr.mxu0 0.0
    %400 = vmatpush2.msra.mxu0 0.0
    %401 = vmatprep.subr.mxu0 0.0
    %402 = vmatpush2.msra.mxu0 0.0
    %403 = vmatprep.subr.mxu0 0.0
    %404 = vmatpush2.msra.mxu0 0.0
    %405 = vmatprep.subr.mxu0 0.0
    %406 = vmatpush2.msra.mxu0 0.0
    %407 = vmatprep.subr.mxu0 0.0
    %408 = vmatpush2.msra.mxu0 0.0
    %409 = vmatprep.subr.mxu0 0.0
    %410 = vmatpush2.msra.mxu0 0.0
    %411 = vmatprep.subr.mxu0 0.0
    %412 = vmatpush2.msra.mxu0 0.0
    %413 = vmatprep.subr.mxu0 0.0
    %414 = vmatpush2.msra.mxu0 0.0
    %415 = vmatprep.subr.mxu0 0.0
    %416 = vmatpush2.msra.mxu0 0.0
    %417 = vmatprep.subr.mxu0 0.0
    %418 = vmatpush2.msra.mxu0 0.0
    %419 = vmatprep.subr.mxu0 0.0
    %420 = vmatpush2.msra.mxu0 0.0
    %421 = vmatprep.subr.mxu0 0.0
    %422 = vmatpush2.msra.mxu0 0.0
    %423 = vmatprep.subr.mxu0 0.0
    %424 = vmatpush2.msra.mxu0 0.0
    %425 = vmatprep.subr.mxu0 0.0
    %426 = vmatpush2.msra.mxu0 0.0
    %427 = vmatprep.subr.mxu0 0.0
    %428 = vmatpush2.msra.mxu0 0.0
    %429 = vmatprep.mubr.f32.mxu0 0.0
    %430 = vmatmul.mubr.f32.gmra.mxu0 %v363
    %v431 = vpop.f32.mrf.mxu0
    %v432 = vadd.f32 0.0, %v431
    %v433 = vpop.f32.mrf.mxu0
    %434 = vdwg.mxu0
    %435 = vset.pattern.permute.xlu0 35
    %436 = vperm.xlu0 %435, %v114
    %v437 = vpop.permute.xlu0 %436
    %v439 = vlaneseq
    %v440 = vshrl.u32 %v439, 7
    %v441 = vsub.s32 3, %v440
    %v442 = vrot.slane %v121, %v441
    %v443 = vadd.f32 %v437, %v442
    %vm444 = vcmp.gt.f32.partialorder %v443, 0.0
    %v445 = vmul.f32 %v443, 0.2
    %v446 = vsel %vm444, %v443, %v445
    %v447 = vsel %vm120, %v446, -1e+30
    %v448 = vsel %vm136, %v447, -inf
    %449 = vmax.xlane.f32.xlu0 %v448
    %v450 = vpop.xlane.xlu0 %449
    %v451 = vsub.f32 %v447, %v450
    %v452 = vmul.f32 %v451, 1.442695
    %v453 = vpow.pop %v452
    %v454 = vsel %vm120, %v453, 0.0
    %v455 = vsel %vm136, %v454, 0.0
    %456 = vadd.xlane.f32.xlu0 %v455
    %v457 = vpop.xlane.xlu0 %456
    %v458 = vmax.f32 %v457, 1e-30
    %v459 = vrcp.pop %v458
    %v460 = vmul.f32 %v458, %v459
    %v461 = vsub.f32 2.0, %v460
    %v462 = vmul.f32 %v459, %v461
    %v463 = vmul.f32 %v454, %v462
    %s464 = scalar_lea.vmem %s3, 24
    %v465 = vld [vmem:[%s464] sm:$0xff]
    %v467 = vsel %vm136, %v463, 0
    %469 = vmatprep.subr.mxu0 0.0
    %470 = vmatpush1.msra.mxu0 0.0
    %471 = vmatprep.subr.mxu0 0.0
    %472 = vmatpush1.msra.mxu0 0.0
    %473 = vmatprep.subr.mxu0 0.0
    %474 = vmatpush1.msra.mxu0 0.0
    %475 = vmatprep.subr.mxu0 0.0
    %476 = vmatpush1.msra.mxu0 0.0
    %477 = vmatprep.subr.mxu0 0.0
    %478 = vmatpush1.msra.mxu0 0.0
    %479 = vmatprep.subr.mxu0 0.0
    %480 = vmatpush1.msra.mxu0 0.0
    %481 = vmatprep.subr.mxu0 0.0
    %482 = vmatpush1.msra.mxu0 0.0
    %483 = vmatprep.subr.mxu0 0.0
    %484 = vmatpush1.msra.mxu0 0.0
    %485 = vmatprep.subr.mxu0 0.0
    %486 = vmatpush1.msra.mxu0 0.0
    %487 = vmatprep.subr.mxu0 0.0
    %488 = vmatpush1.msra.mxu0 0.0
    %489 = vmatprep.subr.mxu0 0.0
    %490 = vmatpush1.msra.mxu0 0.0
    %491 = vmatprep.subr.mxu0 0.0
    %492 = vmatpush1.msra.mxu0 0.0
    %493 = vmatprep.subr.mxu0 0.0
    %494 = vmatpush1.msra.mxu0 0.0
    %495 = vmatprep.subr.mxu0 0.0
    %496 = vmatpush1.msra.mxu0 0.0
    %497 = vmatprep.subr.mxu0 0.0
    %498 = vmatpush1.msra.mxu0 0.0
    %499 = vmatprep.subr.mxu0 0.0
    %500 = vmatpush1.msra.mxu0 %v465
    %501 = vmatprep.subr.mxu0 0.0
    %502 = vmatpush2.msra.mxu0 0.0
    %503 = vmatprep.subr.mxu0 0.0
    %504 = vmatpush2.msra.mxu0 0.0
    %505 = vmatprep.subr.mxu0 0.0
    %506 = vmatpush2.msra.mxu0 0.0
    %507 = vmatprep.subr.mxu0 0.0
    %508 = vmatpush2.msra.mxu0 0.0
    %509 = vmatprep.subr.mxu0 0.0
    %510 = vmatpush2.msra.mxu0 0.0
    %511 = vmatprep.subr.mxu0 0.0
    %512 = vmatpush2.msra.mxu0 0.0
    %513 = vmatprep.subr.mxu0 0.0
    %514 = vmatpush2.msra.mxu0 0.0
    %515 = vmatprep.subr.mxu0 0.0
    %516 = vmatpush2.msra.mxu0 0.0
    %517 = vmatprep.subr.mxu0 0.0
    %518 = vmatpush2.msra.mxu0 0.0
    %519 = vmatprep.subr.mxu0 0.0
    %520 = vmatpush2.msra.mxu0 0.0
    %521 = vmatprep.subr.mxu0 0.0
    %522 = vmatpush2.msra.mxu0 0.0
    %523 = vmatprep.subr.mxu0 0.0
    %524 = vmatpush2.msra.mxu0 0.0
    %525 = vmatprep.subr.mxu0 0.0
    %526 = vmatpush2.msra.mxu0 0.0
    %527 = vmatprep.subr.mxu0 0.0
    %528 = vmatpush2.msra.mxu0 0.0
    %529 = vmatprep.subr.mxu0 0.0
    %530 = vmatpush2.msra.mxu0 0.0
    %531 = vmatprep.subr.mxu0 0.0
    %532 = vmatpush2.msra.mxu0 0.0
    %533 = vmatprep.mubr.f32.mxu0 0.0
    %534 = vmatmul.mubr.f32.gmra.mxu0 %v467
    %v535 = vpop.f32.mrf.mxu0
    %v536 = vadd.f32 0.0, %v535
    %v537 = vpop.f32.mrf.mxu0
    %538 = vdwg.mxu0
    %540 = vrot.lane.b32.xlu0 %v328, 8
    %v541 = vpop.permute.xlu0 %540
    %544 = vrot.lane.b32.xlu0 %v432, 16
    %v545 = vpop.permute.xlu0 %544
    %548 = vrot.lane.b32.xlu0 %v536, 24
    %v549 = vpop.permute.xlu0 %548
    %v551 = vsel %vm136, %v224, %v541
    %v552 = vsel %vm43, %v551, %v545
    %vm553 = vcmask 195584
    %v554 = vsel %vm553, %v552, %v549
    %v555 = vadd.f32 %v114, %v554
    %v556 = vld [vmem:[%s8] sm:$0x3]
    %v557 = vunpack.c.0.s8 %v556
    %v558 = vcvt.s32.f32 %v557
    %vm559 = vcmp.gt.f32.partialorder %v558, 0.0
    %v560 = vld [vmem:[%s6] sm:$0xf]
    %561 = vset.pattern.permute.xlu0 36
    %562 = vperm.xlu0 %561, %v114
    %v563 = vpop.permute.xlu0 %562
    %v565 = vlaneseq
    %v566 = vshrl.u32 %v565, 7
    %v567 = vsub.s32 0, %v566
    %v568 = vrot.slane %v560, %v567
    %v569 = vadd.f32 %v563, %v568
    %vm570 = vcmp.gt.f32.partialorder %v569, 0.0
    %v571 = vmul.f32 %v569, 0.2
    %v572 = vsel %vm570, %v569, %v571
    %v573 = vsel %vm559, %v572, -1e+30
    %vm574 = vcmask 48128
    %v575 = vsel %vm574, %v573, -inf
    %576 = vmax.xlane.f32.xlu0 %v575
    %v577 = vpop.xlane.xlu0 %576
    %v578 = vsub.f32 %v573, %v577
    %v579 = vmul.f32 %v578, 1.442695
    %v580 = vpow.pop %v579
    %v581 = vsel %vm559, %v580, 0.0
    %v582 = vsel %vm574, %v581, 0.0
    %583 = vadd.xlane.f32.xlu0 %v582
    %v584 = vpop.xlane.xlu0 %583
    %v585 = vmax.f32 %v584, 1e-30
    %v586 = vrcp.pop %v585
    %v587 = vmul.f32 %v585, %v586
    %v588 = vsub.f32 2.0, %v587
    %v589 = vmul.f32 %v586, %v588
    %v590 = vmul.f32 %v581, %v589
    %v591 = vld [vmem:[%s5] sm:$0x3f]
    %v593 = vsel %vm574, %v590, 0
    %vm595 = vcmask 1045504
    %v597 = vsel %vm595, %v591, 0
    %599 = vmatprep.subr.mxu0 0.0
    %600 = vmatpush1.msra.mxu0 0.0
    %601 = vmatprep.subr.mxu0 0.0
    %602 = vmatpush1.msra.mxu0 0.0
    %603 = vmatprep.subr.mxu0 0.0
    %604 = vmatpush1.msra.mxu0 0.0
    %605 = vmatprep.subr.mxu0 0.0
    %606 = vmatpush1.msra.mxu0 0.0
    %607 = vmatprep.subr.mxu0 0.0
    %608 = vmatpush1.msra.mxu0 0.0
    %609 = vmatprep.subr.mxu0 0.0
    %610 = vmatpush1.msra.mxu0 0.0
    %611 = vmatprep.subr.mxu0 0.0
    %612 = vmatpush1.msra.mxu0 0.0
    %613 = vmatprep.subr.mxu0 0.0
    %614 = vmatpush1.msra.mxu0 0.0
    %615 = vmatprep.subr.mxu0 0.0
    %616 = vmatpush1.msra.mxu0 0.0
    %617 = vmatprep.subr.mxu0 0.0
    %618 = vmatpush1.msra.mxu0 0.0
    %619 = vmatprep.subr.mxu0 0.0
    %620 = vmatpush1.msra.mxu0 0.0
    %621 = vmatprep.subr.mxu0 0.0
    %622 = vmatpush1.msra.mxu0 0.0
    %623 = vmatprep.subr.mxu0 0.0
    %624 = vmatpush1.msra.mxu0 0.0
    %625 = vmatprep.subr.mxu0 0.0
    %626 = vmatpush1.msra.mxu0 0.0
    %627 = vmatprep.subr.mxu0 0.0
    %628 = vmatpush1.msra.mxu0 0.0
    %629 = vmatprep.subr.mxu0 0.0
    %630 = vmatpush1.msra.mxu0 %v597
    %631 = vmatprep.subr.mxu0 0.0
    %632 = vmatpush2.msra.mxu0 0.0
    %633 = vmatprep.subr.mxu0 0.0
    %634 = vmatpush2.msra.mxu0 0.0
    %635 = vmatprep.subr.mxu0 0.0
    %636 = vmatpush2.msra.mxu0 0.0
    %637 = vmatprep.subr.mxu0 0.0
    %638 = vmatpush2.msra.mxu0 0.0
    %639 = vmatprep.subr.mxu0 0.0
    %640 = vmatpush2.msra.mxu0 0.0
    %641 = vmatprep.subr.mxu0 0.0
    %642 = vmatpush2.msra.mxu0 0.0
    %643 = vmatprep.subr.mxu0 0.0
    %644 = vmatpush2.msra.mxu0 0.0
    %645 = vmatprep.subr.mxu0 0.0
    %646 = vmatpush2.msra.mxu0 0.0
    %647 = vmatprep.subr.mxu0 0.0
    %648 = vmatpush2.msra.mxu0 0.0
    %649 = vmatprep.subr.mxu0 0.0
    %650 = vmatpush2.msra.mxu0 0.0
    %651 = vmatprep.subr.mxu0 0.0
    %652 = vmatpush2.msra.mxu0 0.0
    %653 = vmatprep.subr.mxu0 0.0
    %654 = vmatpush2.msra.mxu0 0.0
    %655 = vmatprep.subr.mxu0 0.0
    %656 = vmatpush2.msra.mxu0 0.0
    %657 = vmatprep.subr.mxu0 0.0
    %658 = vmatpush2.msra.mxu0 0.0
    %659 = vmatprep.subr.mxu0 0.0
    %660 = vmatpush2.msra.mxu0 0.0
    %661 = vmatprep.subr.mxu0 0.0
    %662 = vmatpush2.msra.mxu0 0.0
    %663 = vmatprep.mubr.f32.mxu0 0.0
    %664 = vmatmul.mubr.f32.gmra.mxu0 %v593
    %v665 = vpop.f32.mrf.mxu0
    %v666 = vadd.f32 0.0, %v665
    %v667 = vpop.f32.mrf.mxu0
    %668 = vdwg.mxu0
    %669 = vset.pattern.permute.xlu0 37
    %670 = vperm.xlu0 %669, %v114
    %v671 = vpop.permute.xlu0 %670
    %v673 = vlaneseq
    %v674 = vshrl.u32 %v673, 7
    %v675 = vsub.s32 1, %v674
    %v676 = vrot.slane %v560, %v675
    %v677 = vadd.f32 %v671, %v676
    %vm678 = vcmp.gt.f32.partialorder %v677, 0.0
    %v679 = vmul.f32 %v677, 0.2
    %v680 = vsel %vm678, %v677, %v679
    %v681 = vsel %vm559, %v680, -1e+30
    %v682 = vsel %vm574, %v681, -inf
    %683 = vmax.xlane.f32.xlu0 %v682
    %v684 = vpop.xlane.xlu0 %683
    %v685 = vsub.f32 %v681, %v684
    %v686 = vmul.f32 %v685, 1.442695
    %v687 = vpow.pop %v686
    %v688 = vsel %vm559, %v687, 0.0
    %v689 = vsel %vm574, %v688, 0.0
    %690 = vadd.xlane.f32.xlu0 %v689
    %v691 = vpop.xlane.xlu0 %690
    %v692 = vmax.f32 %v691, 1e-30
    %v693 = vrcp.pop %v692
    %v694 = vmul.f32 %v692, %v693
    %v695 = vsub.f32 2.0, %v694
    %v696 = vmul.f32 %v693, %v695
    %v697 = vmul.f32 %v688, %v696
    %s698 = scalar_lea.vmem %s5, 8
    %v699 = vld [vmem:[%s698] sm:$0x3f]
    %v701 = vsel %vm574, %v697, 0
    %v704 = vsel %vm595, %v699, 0
    %706 = vmatprep.subr.mxu0 0.0
    %707 = vmatpush1.msra.mxu0 0.0
    %708 = vmatprep.subr.mxu0 0.0
    %709 = vmatpush1.msra.mxu0 0.0
    %710 = vmatprep.subr.mxu0 0.0
    %711 = vmatpush1.msra.mxu0 0.0
    %712 = vmatprep.subr.mxu0 0.0
    %713 = vmatpush1.msra.mxu0 0.0
    %714 = vmatprep.subr.mxu0 0.0
    %715 = vmatpush1.msra.mxu0 0.0
    %716 = vmatprep.subr.mxu0 0.0
    %717 = vmatpush1.msra.mxu0 0.0
    %718 = vmatprep.subr.mxu0 0.0
    %719 = vmatpush1.msra.mxu0 0.0
    %720 = vmatprep.subr.mxu0 0.0
    %721 = vmatpush1.msra.mxu0 0.0
    %722 = vmatprep.subr.mxu0 0.0
    %723 = vmatpush1.msra.mxu0 0.0
    %724 = vmatprep.subr.mxu0 0.0
    %725 = vmatpush1.msra.mxu0 0.0
    %726 = vmatprep.subr.mxu0 0.0
    %727 = vmatpush1.msra.mxu0 0.0
    %728 = vmatprep.subr.mxu0 0.0
    %729 = vmatpush1.msra.mxu0 0.0
    %730 = vmatprep.subr.mxu0 0.0
    %731 = vmatpush1.msra.mxu0 0.0
    %732 = vmatprep.subr.mxu0 0.0
    %733 = vmatpush1.msra.mxu0 0.0
    %734 = vmatprep.subr.mxu0 0.0
    %735 = vmatpush1.msra.mxu0 0.0
    %736 = vmatprep.subr.mxu0 0.0
    %737 = vmatpush1.msra.mxu0 %v704
    %738 = vmatprep.subr.mxu0 0.0
    %739 = vmatpush2.msra.mxu0 0.0
    %740 = vmatprep.subr.mxu0 0.0
    %741 = vmatpush2.msra.mxu0 0.0
    %742 = vmatprep.subr.mxu0 0.0
    %743 = vmatpush2.msra.mxu0 0.0
    %744 = vmatprep.subr.mxu0 0.0
    %745 = vmatpush2.msra.mxu0 0.0
    %746 = vmatprep.subr.mxu0 0.0
    %747 = vmatpush2.msra.mxu0 0.0
    %748 = vmatprep.subr.mxu0 0.0
    %749 = vmatpush2.msra.mxu0 0.0
    %750 = vmatprep.subr.mxu0 0.0
    %751 = vmatpush2.msra.mxu0 0.0
    %752 = vmatprep.subr.mxu0 0.0
    %753 = vmatpush2.msra.mxu0 0.0
    %754 = vmatprep.subr.mxu0 0.0
    %755 = vmatpush2.msra.mxu0 0.0
    %756 = vmatprep.subr.mxu0 0.0
    %757 = vmatpush2.msra.mxu0 0.0
    %758 = vmatprep.subr.mxu0 0.0
    %759 = vmatpush2.msra.mxu0 0.0
    %760 = vmatprep.subr.mxu0 0.0
    %761 = vmatpush2.msra.mxu0 0.0
    %762 = vmatprep.subr.mxu0 0.0
    %763 = vmatpush2.msra.mxu0 0.0
    %764 = vmatprep.subr.mxu0 0.0
    %765 = vmatpush2.msra.mxu0 0.0
    %766 = vmatprep.subr.mxu0 0.0
    %767 = vmatpush2.msra.mxu0 0.0
    %768 = vmatprep.subr.mxu0 0.0
    %769 = vmatpush2.msra.mxu0 0.0
    %770 = vmatprep.mubr.f32.mxu0 0.0
    %771 = vmatmul.mubr.f32.gmra.mxu0 %v701
    %v772 = vpop.f32.mrf.mxu0
    %v773 = vadd.f32 0.0, %v772
    %v774 = vpop.f32.mrf.mxu0
    %775 = vdwg.mxu0
    %776 = vset.pattern.permute.xlu0 38
    %777 = vperm.xlu0 %776, %v114
    %v778 = vpop.permute.xlu0 %777
    %v780 = vlaneseq
    %v781 = vshrl.u32 %v780, 7
    %v782 = vsub.s32 2, %v781
    %v783 = vrot.slane %v560, %v782
    %v784 = vadd.f32 %v778, %v783
    %vm785 = vcmp.gt.f32.partialorder %v784, 0.0
    %v786 = vmul.f32 %v784, 0.2
    %v787 = vsel %vm785, %v784, %v786
    %v788 = vsel %vm559, %v787, -1e+30
    %v789 = vsel %vm574, %v788, -inf
    %790 = vmax.xlane.f32.xlu0 %v789
    %v791 = vpop.xlane.xlu0 %790
    %v792 = vsub.f32 %v788, %v791
    %v793 = vmul.f32 %v792, 1.442695
    %v794 = vpow.pop %v793
    %v795 = vsel %vm559, %v794, 0.0
    %v796 = vsel %vm574, %v795, 0.0
    %797 = vadd.xlane.f32.xlu0 %v796
    %v798 = vpop.xlane.xlu0 %797
    %v799 = vmax.f32 %v798, 1e-30
    %v800 = vrcp.pop %v799
    %v801 = vmul.f32 %v799, %v800
    %v802 = vsub.f32 2.0, %v801
    %v803 = vmul.f32 %v800, %v802
    %v804 = vmul.f32 %v795, %v803
    %s805 = scalar_lea.vmem %s5, 16
    %v806 = vld [vmem:[%s805] sm:$0x3f]
    %v808 = vsel %vm574, %v804, 0
    %v811 = vsel %vm595, %v806, 0
    %813 = vmatprep.subr.mxu0 0.0
    %814 = vmatpush1.msra.mxu0 0.0
    %815 = vmatprep.subr.mxu0 0.0
    %816 = vmatpush1.msra.mxu0 0.0
    %817 = vmatprep.subr.mxu0 0.0
    %818 = vmatpush1.msra.mxu0 0.0
    %819 = vmatprep.subr.mxu0 0.0
    %820 = vmatpush1.msra.mxu0 0.0
    %821 = vmatprep.subr.mxu0 0.0
    %822 = vmatpush1.msra.mxu0 0.0
    %823 = vmatprep.subr.mxu0 0.0
    %824 = vmatpush1.msra.mxu0 0.0
    %825 = vmatprep.subr.mxu0 0.0
    %826 = vmatpush1.msra.mxu0 0.0
    %827 = vmatprep.subr.mxu0 0.0
    %828 = vmatpush1.msra.mxu0 0.0
    %829 = vmatprep.subr.mxu0 0.0
    %830 = vmatpush1.msra.mxu0 0.0
    %831 = vmatprep.subr.mxu0 0.0
    %832 = vmatpush1.msra.mxu0 0.0
    %833 = vmatprep.subr.mxu0 0.0
    %834 = vmatpush1.msra.mxu0 0.0
    %835 = vmatprep.subr.mxu0 0.0
    %836 = vmatpush1.msra.mxu0 0.0
    %837 = vmatprep.subr.mxu0 0.0
    %838 = vmatpush1.msra.mxu0 0.0
    %839 = vmatprep.subr.mxu0 0.0
    %840 = vmatpush1.msra.mxu0 0.0
    %841 = vmatprep.subr.mxu0 0.0
    %842 = vmatpush1.msra.mxu0 0.0
    %843 = vmatprep.subr.mxu0 0.0
    %844 = vmatpush1.msra.mxu0 %v811
    %845 = vmatprep.subr.mxu0 0.0
    %846 = vmatpush2.msra.mxu0 0.0
    %847 = vmatprep.subr.mxu0 0.0
    %848 = vmatpush2.msra.mxu0 0.0
    %849 = vmatprep.subr.mxu0 0.0
    %850 = vmatpush2.msra.mxu0 0.0
    %851 = vmatprep.subr.mxu0 0.0
    %852 = vmatpush2.msra.mxu0 0.0
    %853 = vmatprep.subr.mxu0 0.0
    %854 = vmatpush2.msra.mxu0 0.0
    %855 = vmatprep.subr.mxu0 0.0
    %856 = vmatpush2.msra.mxu0 0.0
    %857 = vmatprep.subr.mxu0 0.0
    %858 = vmatpush2.msra.mxu0 0.0
    %859 = vmatprep.subr.mxu0 0.0
    %860 = vmatpush2.msra.mxu0 0.0
    %861 = vmatprep.subr.mxu0 0.0
    %862 = vmatpush2.msra.mxu0 0.0
    %863 = vmatprep.subr.mxu0 0.0
    %864 = vmatpush2.msra.mxu0 0.0
    %865 = vmatprep.subr.mxu0 0.0
    %866 = vmatpush2.msra.mxu0 0.0
    %867 = vmatprep.subr.mxu0 0.0
    %868 = vmatpush2.msra.mxu0 0.0
    %869 = vmatprep.subr.mxu0 0.0
    %870 = vmatpush2.msra.mxu0 0.0
    %871 = vmatprep.subr.mxu0 0.0
    %872 = vmatpush2.msra.mxu0 0.0
    %873 = vmatprep.subr.mxu0 0.0
    %874 = vmatpush2.msra.mxu0 0.0
    %875 = vmatprep.subr.mxu0 0.0
    %876 = vmatpush2.msra.mxu0 0.0
    %877 = vmatprep.mubr.f32.mxu0 0.0
    %878 = vmatmul.mubr.f32.gmra.mxu0 %v808
    %v879 = vpop.f32.mrf.mxu0
    %v880 = vadd.f32 0.0, %v879
    %v881 = vpop.f32.mrf.mxu0
    %882 = vdwg.mxu0
    %883 = vset.pattern.permute.xlu0 39
    %884 = vperm.xlu0 %883, %v114
    %v885 = vpop.permute.xlu0 %884
    %v887 = vlaneseq
    %v888 = vshrl.u32 %v887, 7
    %v889 = vsub.s32 3, %v888
    %v890 = vrot.slane %v560, %v889
    %v891 = vadd.f32 %v885, %v890
    %vm892 = vcmp.gt.f32.partialorder %v891, 0.0
    %v893 = vmul.f32 %v891, 0.2
    %v894 = vsel %vm892, %v891, %v893
    %v895 = vsel %vm559, %v894, -1e+30
    %v896 = vsel %vm574, %v895, -inf
    %897 = vmax.xlane.f32.xlu0 %v896
    %v898 = vpop.xlane.xlu0 %897
    %v899 = vsub.f32 %v895, %v898
    %v900 = vmul.f32 %v899, 1.442695
    %v901 = vpow.pop %v900
    %v902 = vsel %vm559, %v901, 0.0
    %v903 = vsel %vm574, %v902, 0.0
    %904 = vadd.xlane.f32.xlu0 %v903
    %v905 = vpop.xlane.xlu0 %904
    %v906 = vmax.f32 %v905, 1e-30
    %v907 = vrcp.pop %v906
    %v908 = vmul.f32 %v906, %v907
    %v909 = vsub.f32 2.0, %v908
    %v910 = vmul.f32 %v907, %v909
    %v911 = vmul.f32 %v902, %v910
    %s912 = scalar_lea.vmem %s5, 24
    %v913 = vld [vmem:[%s912] sm:$0x3f]
    %v915 = vsel %vm574, %v911, 0
    %v918 = vsel %vm595, %v913, 0
    %920 = vmatprep.subr.mxu0 0.0
    %921 = vmatpush1.msra.mxu0 0.0
    %922 = vmatprep.subr.mxu0 0.0
    %923 = vmatpush1.msra.mxu0 0.0
    %924 = vmatprep.subr.mxu0 0.0
    %925 = vmatpush1.msra.mxu0 0.0
    %926 = vmatprep.subr.mxu0 0.0
    %927 = vmatpush1.msra.mxu0 0.0
    %928 = vmatprep.subr.mxu0 0.0
    %929 = vmatpush1.msra.mxu0 0.0
    %930 = vmatprep.subr.mxu0 0.0
    %931 = vmatpush1.msra.mxu0 0.0
    %932 = vmatprep.subr.mxu0 0.0
    %933 = vmatpush1.msra.mxu0 0.0
    %934 = vmatprep.subr.mxu0 0.0
    %935 = vmatpush1.msra.mxu0 0.0
    %936 = vmatprep.subr.mxu0 0.0
    %937 = vmatpush1.msra.mxu0 0.0
    %938 = vmatprep.subr.mxu0 0.0
    %939 = vmatpush1.msra.mxu0 0.0
    %940 = vmatprep.subr.mxu0 0.0
    %941 = vmatpush1.msra.mxu0 0.0
    %942 = vmatprep.subr.mxu0 0.0
    %943 = vmatpush1.msra.mxu0 0.0
    %944 = vmatprep.subr.mxu0 0.0
    %945 = vmatpush1.msra.mxu0 0.0
    %946 = vmatprep.subr.mxu0 0.0
    %947 = vmatpush1.msra.mxu0 0.0
    %948 = vmatprep.subr.mxu0 0.0
    %949 = vmatpush1.msra.mxu0 0.0
    %950 = vmatprep.subr.mxu0 0.0
    %951 = vmatpush1.msra.mxu0 %v918
    %952 = vmatprep.subr.mxu0 0.0
    %953 = vmatpush2.msra.mxu0 0.0
    %954 = vmatprep.subr.mxu0 0.0
    %955 = vmatpush2.msra.mxu0 0.0
    %956 = vmatprep.subr.mxu0 0.0
    %957 = vmatpush2.msra.mxu0 0.0
    %958 = vmatprep.subr.mxu0 0.0
    %959 = vmatpush2.msra.mxu0 0.0
    %960 = vmatprep.subr.mxu0 0.0
    %961 = vmatpush2.msra.mxu0 0.0
    %962 = vmatprep.subr.mxu0 0.0
    %963 = vmatpush2.msra.mxu0 0.0
    %964 = vmatprep.subr.mxu0 0.0
    %965 = vmatpush2.msra.mxu0 0.0
    %966 = vmatprep.subr.mxu0 0.0
    %967 = vmatpush2.msra.mxu0 0.0
    %968 = vmatprep.subr.mxu0 0.0
    %969 = vmatpush2.msra.mxu0 0.0
    %970 = vmatprep.subr.mxu0 0.0
    %971 = vmatpush2.msra.mxu0 0.0
    %972 = vmatprep.subr.mxu0 0.0
    %973 = vmatpush2.msra.mxu0 0.0
    %974 = vmatprep.subr.mxu0 0.0
    %975 = vmatpush2.msra.mxu0 0.0
    %976 = vmatprep.subr.mxu0 0.0
    %977 = vmatpush2.msra.mxu0 0.0
    %978 = vmatprep.subr.mxu0 0.0
    %979 = vmatpush2.msra.mxu0 0.0
    %980 = vmatprep.subr.mxu0 0.0
    %981 = vmatpush2.msra.mxu0 0.0
    %982 = vmatprep.subr.mxu0 0.0
    %983 = vmatpush2.msra.mxu0 0.0
    %984 = vmatprep.mubr.f32.mxu0 0.0
    %985 = vmatmul.mubr.f32.gmra.mxu0 %v915
    %v986 = vpop.f32.mrf.mxu0
    %v987 = vadd.f32 0.0, %v986
    %v988 = vpop.f32.mrf.mxu0
    %989 = vdwg.mxu0
    %991 = vrot.lane.b32.xlu0 %v773, 8
    %v992 = vpop.permute.xlu0 %991
    %995 = vrot.lane.b32.xlu0 %v880, 16
    %v996 = vpop.permute.xlu0 %995
    %999 = vrot.lane.b32.xlu0 %v987, 24
    %v1000 = vpop.permute.xlu0 %999
    %v1002 = vsel %vm136, %v666, %v992
    %v1003 = vsel %vm43, %v1002, %v996
    %v1004 = vsel %vm553, %v1003, %v1000
    %v1005 = vadd.f32 %v555, %v1004
    %v1006 = vmax.f32 %v1005, 0.0
    %vm1007 = vcmask 261120
    %v1008 = vsel %vm1007, %v1006, 0.0
    %1009 = vst [vmem:[#allocation2] sm:$0xff] %v1008
    // Predicated region
    $region38: #{_lambda_.8} parent=1 // pred_check
      _
    $region39: #{_lambda_.8} parent=1 // pred_check_branch
      %1011 = sbr.rel (0) target = $region41
    $region40: #{_lambda_.8} parent=1 // pred_region
      %s1013 = ssub.s32 128, 128
      %1014 = vsyncadd [#allocation3], %s1013
      %s1016 = sshll.u32 [#allocation2], 4
      %s1017 = int_to_ptr.vmem [resolvable:$true] %s1016
      %1019 = dma.vmem_to_hbm [thread:$0]  %s1017, 128, %s9, [#allocation3]
    $region41: #{_lambda_.8} parent=1 // pred_fallthru
      _
    // Predicated region
    $region42: #{_lambda_.8} parent=1 // pred_check
      _
    $region43: #{_lambda_.8} parent=1 // pred_check_branch
      %1021 = sbr.rel (0) target = $region45
    $region44: #{_lambda_.8} parent=1 // pred_region
      %1022 = dma.done [#allocation3], 128
    $region45: #{_lambda_.8} parent=1 // pred_fallthru
      _
    %1023 = vsyncpa [#allocation3], 1

</llo_original>
